<compile_context>
chip_gen: v7x
topology: tpu7x:2x2x1
jax: 0.10.0
libtpu: 0.0.40
codegen_flags: <defaults>
</compile_context>

<pallas_src>
import functools
import math

import jax
import jax.numpy as jnp
from jax import lax
from jax.experimental import pallas as pl
from jax.experimental.pallas import tpu as pltpu

# ----------------------------- model dimensions -----------------------------
B, S, H, NH, L = 2, 8, 32, 4, 14        # batch, seq, hidden, heads, num_labels
HD = H // NH                            # head dim
F = 4 * H                               # FFN dim
VOCAB = 64
NUM_LAYERS = 2                          # ALBERT: one shared layer applied N times
T = B * S                               # tokens (batch folded into rows)


# ------------------------------ kernel helpers -------------------------------
def _gelu(x):
    # tanh approximation (ALBERT "gelu_new")
    return 0.5 * x * (1.0 + jnp.tanh(0.7978845608028654 * (x + 0.044715 * x * x * x)))


def _layernorm(x, gamma, beta, eps=1e-12):
    mu = jnp.mean(x, axis=-1, keepdims=True)
    var = jnp.mean((x - mu) ** 2, axis=-1, keepdims=True)
    return (x - mu) * lax.rsqrt(var + eps) * gamma + beta


# --------------------------- fully fused forward kernel ----------------------
def model_kernel(x_ref, mask_ref, maskt_ref, labels_ref,
                 eg_ref, eb_ref,
                 wq_ref, bq_ref, wk_ref, bk_ref, wv_ref, bv_ref,
                 wo_ref, bo_ref, g1_ref, be1_ref,
                 w1_ref, b1_ref, w2_ref, b2_ref, g2_ref, be2_ref,
                 wcls_ref, bcls_ref,
                 probs_ref, loss_ref):
    """Embedding LN -> NUM_LAYERS shared encoder layers -> classifier ->
    softmax + CE loss, all in one kernel; activations never leave VMEM."""
    # embedding layernorm; activations are a (T, H) slab with batch folded in
    x = _layernorm(x_ref[...], eg_ref[...], eb_ref[...])

    # additive attention bias, computed once and reused by every layer / head
    neg = ((1.0 - mask_ref[...]) * (-1e9))[:, None, :]          # (B, 1, S)

    scale = jnp.float32(1.0 / math.sqrt(HD))
    wo = wo_ref[...]                                            # (H, H)

    def shared_layer(x):
        # QKV projections on the batch-folded slab; 1/sqrt(HD) folded into q once
        q = (jnp.dot(x, wq_ref[...], preferred_element_type=jnp.float32)
             + bq_ref[...]) * scale
        k = jnp.dot(x, wk_ref[...], preferred_element_type=jnp.float32) + bk_ref[...]
        v = jnp.dot(x, wv_ref[...], preferred_element_type=jnp.float32) + bv_ref[...]
        q3 = q.reshape(B, S, H)
        k3 = k.reshape(B, S, H)
        v3 = v.reshape(B, S, H)

        # attention: static head loop (NH=4), batched over B inside each head;
        # each head's context is folded straight into the output projection,
        # so there is no per-head concatenate / lane relayout.
        attn = bo_ref[...]                                      # (1, H), broadcasts
        for h in range(NH):
            lo, hi = h * HD, (h + 1) * HD
            s = jnp.einsum('bqd,bkd->bqk', q3[:, :, lo:hi], k3[:, :, lo:hi],
                           preferred_element_type=jnp.float32) + neg
            m = jnp.max(s, axis=-1, keepdims=True)
            e = jnp.exp(s - m)
            p = e / jnp.sum(e, axis=-1, keepdims=True)
            ctx = jnp.einsum('bqk,bkd->bqd', p, v3[:, :, lo:hi],
                             preferred_element_type=jnp.float32)        # (B, S, HD)
            attn = attn + jnp.dot(ctx.reshape(T, HD), wo[lo:hi, :],
                                  preferred_element_type=jnp.float32)   # (T, H)

        h1 = _layernorm(x + attn, g1_ref[...], be1_ref[...])
        ff = _gelu(jnp.dot(h1, w1_ref[...], preferred_element_type=jnp.float32)
                   + b1_ref[...])
        ff = jnp.dot(ff, w2_ref[...], preferred_element_type=jnp.float32) + b2_ref[...]
        return _layernorm(h1 + ff, g2_ref[...], be2_ref[...])

    for _ in range(NUM_LAYERS):            # ALBERT weight sharing: same refs each pass
        x = shared_layer(x)

    # classifier head; single log-softmax pass, probs derived from it
    logits = (jnp.dot(x, wcls_ref[...], preferred_element_type=jnp.float32)
              + bcls_ref[...])                                   # (T, L)
    m = jnp.max(logits, axis=-1, keepdims=True)
    z = logits - m
    lse = jnp.log(jnp.sum(jnp.exp(z), axis=-1, keepdims=True))
    logp = z - lse                                               # (T, L)
    probs_ref[...] = jnp.exp(logp)          # Softmax(dim=2); one contiguous (T, L) store

    # token-level cross-entropy on the RAW logits.  HF token-classification
    # (transformers of the indic-bert era) masks padded positions via the
    # attention mask (equivalent to label=-100 being ignored), so weight the
    # per-token NLL by the mask and average over unmasked tokens.
    onehot = labels_ref[...] == lax.broadcasted_iota(jnp.int32, (T, L), 1)
    nll = -jnp.sum(jnp.where(onehot, logp, 0.0), axis=-1, keepdims=True)   # (T, 1)
    w = maskt_ref[...]                                                      # (T, 1)
    loss_ref[0, 0] = jnp.sum(nll * w) / jnp.maximum(jnp.sum(w), 1.0)


# ------------------------------ parameter init --------------------------------
def init_params(key):
    def w(key, shape, scale=0.02):
        return (scale * jax.random.normal(key, shape)).astype(jnp.float32)

    ks = jax.random.split(key, 12)
    params = {}
    params["word_emb"] = w(ks[0], (VOCAB, H))
    params["pos_emb"] = w(ks[1], (S, H))
    params["emb_gamma"] = jnp.ones((1, H), jnp.float32)
    params["emb_beta"] = jnp.zeros((1, H), jnp.float32)
    # one shared encoder layer (ALBERT-style parameter sharing)
    params["layer"] = (
        w(ks[2], (H, H)), jnp.zeros((1, H), jnp.float32),   # wq, bq
        w(ks[3], (H, H)), jnp.zeros((1, H), jnp.float32),   # wk, bk
        w(ks[4], (H, H)), jnp.zeros((1, H), jnp.float32),   # wv, bv
        w(ks[5], (H, H)), jnp.zeros((1, H), jnp.float32),   # wo, bo
        jnp.ones((1, H), jnp.float32), jnp.zeros((1, H), jnp.float32),   # ln1
        w(ks[6], (H, F)), jnp.zeros((1, F), jnp.float32),   # ffn in
        w(ks[7], (F, H)), jnp.zeros((1, H), jnp.float32),   # ffn out
        jnp.ones((1, H), jnp.float32), jnp.zeros((1, H), jnp.float32),   # ln2
    )
    params["cls_w"] = w(ks[8], (H, L))
    params["cls_b"] = jnp.zeros((1, L), jnp.float32)
    return params


# --------------------------------- forward -----------------------------------
def forward(params, t, mask, l):
    """Mirrors IndicBertClassifier.forward(t, mask, l) -> (softmax(logits), loss)."""
    # embedding gather kept as plain-JAX glue (gather-dominated); everything
    # else runs in the single fused Pallas kernel below.
    x = (params["word_emb"][t] + params["pos_emb"][None, :, :]).reshape(T, H)
    mask_f = mask.astype(jnp.float32)            # (B, S)  -> attention bias
    mask_t = mask_f.reshape(T, 1)                # (T, 1)  -> loss weighting
    labels = l.reshape(T, 1).astype(jnp.int32)   # (T, 1)

    args = (x, mask_f, mask_t, labels,
            params["emb_gamma"], params["emb_beta"],
            *params["layer"], params["cls_w"], params["cls_b"])

    probs_flat, loss = pl.pallas_call(
        model_kernel,
        out_shape=(jax.ShapeDtypeStruct((T, L), jnp.float32),
                   jax.ShapeDtypeStruct((1, 1), jnp.float32)),
        # single grid point: every input lives whole in VMEM (no per-block
        # index_maps, no double-buffering) — total footprint is well under 1 MiB.
        in_specs=[pl.BlockSpec(memory_space=pltpu.MemorySpace.VMEM) for _ in args],
        out_specs=(pl.BlockSpec(memory_space=pltpu.MemorySpace.VMEM),
                   pl.BlockSpec(memory_space=pltpu.MemorySpace.SMEM)),
    )(*args)
    return probs_flat.reshape(B, S, L), loss[0, 0]


# ----------------------------------- main -------------------------------------
if __name__ == "__main__":
    key = jax.random.PRNGKey(0)
    kt, kl, kp = jax.random.split(key, 3)

    t = jax.random.randint(kt, (B, S), 0, VOCAB, dtype=jnp.int32)        # input_ids
    mask = jnp.ones((B, S), jnp.int32).at[:, S - 2:].set(0)              # attention_mask
    l = jax.random.randint(kl, (B, S), 0, L, dtype=jnp.int32)            # labels

    params = init_params(kp)

    probs, loss = jax.jit(functools.partial(forward, params))(t, mask, l)
    jax.block_until_ready((probs, loss))

    assert probs.shape == (B, S, L)
    assert jnp.allclose(jnp.sum(probs, axis=2), 1.0, atol=1e-4)   # softmax over dim=2
    assert jnp.isfinite(loss)
    print("KERNEL_OK")
</pallas_src>

<mosaic_0001>
module attributes {stable_mosaic.version = 11 : i64} {
  func.func @model_kernel(%arg0: memref<16x32xf32, #tpu.memory_space<vmem>>, %arg1: memref<2x8xf32, #tpu.memory_space<vmem>>, %arg2: memref<16x1xf32, #tpu.memory_space<vmem>>, %arg3: memref<16x1xi32, #tpu.memory_space<vmem>>, %arg4: memref<1x32xf32, #tpu.memory_space<vmem>>, %arg5: memref<1x32xf32, #tpu.memory_space<vmem>>, %arg6: memref<32x32xf32, #tpu.memory_space<vmem>>, %arg7: memref<1x32xf32, #tpu.memory_space<vmem>>, %arg8: memref<32x32xf32, #tpu.memory_space<vmem>>, %arg9: memref<1x32xf32, #tpu.memory_space<vmem>>, %arg10: memref<32x32xf32, #tpu.memory_space<vmem>>, %arg11: memref<1x32xf32, #tpu.memory_space<vmem>>, %arg12: memref<32x32xf32, #tpu.memory_space<vmem>>, %arg13: memref<1x32xf32, #tpu.memory_space<vmem>>, %arg14: memref<1x32xf32, #tpu.memory_space<vmem>>, %arg15: memref<1x32xf32, #tpu.memory_space<vmem>>, %arg16: memref<32x128xf32, #tpu.memory_space<vmem>>, %arg17: memref<1x128xf32, #tpu.memory_space<vmem>>, %arg18: memref<128x32xf32, #tpu.memory_space<vmem>>, %arg19: memref<1x32xf32, #tpu.memory_space<vmem>>, %arg20: memref<1x32xf32, #tpu.memory_space<vmem>>, %arg21: memref<1x32xf32, #tpu.memory_space<vmem>>, %arg22: memref<32x14xf32, #tpu.memory_space<vmem>>, %arg23: memref<1x14xf32, #tpu.memory_space<vmem>>, %arg24: memref<16x14xf32, #tpu.memory_space<vmem>>, %arg25: memref<1x1xf32, #tpu.memory_space<smem>>) attributes {dimension_semantics = [], scalar_prefetch = 0 : i64, scratch_operands = 0 : i64, tpu.core_type = #tpu.core_type<tc>} {
    %c0 = arith.constant 0 : index
    %c0_0 = arith.constant 0 : index
    %0 = vector.load %arg0[%c0, %c0_0] : memref<16x32xf32, #tpu.memory_space<vmem>>, vector<16x32xf32>
    %c0_1 = arith.constant 0 : index
    %c0_2 = arith.constant 0 : index
    %1 = vector.load %arg4[%c0_1, %c0_2] : memref<1x32xf32, #tpu.memory_space<vmem>>, vector<1x32xf32>
    %c0_3 = arith.constant 0 : index
    %c0_4 = arith.constant 0 : index
    %2 = vector.load %arg5[%c0_3, %c0_4] : memref<1x32xf32, #tpu.memory_space<vmem>>, vector<1x32xf32>
    %cst = arith.constant dense<0.000000e+00> : vector<16xf32>
    %3 = vector.multi_reduction <add>, %0, %cst [1] : vector<16x32xf32> to vector<16xf32>
    %4 = vector.shape_cast %3 : vector<16xf32> to vector<16x1xf32>
    %cst_5 = arith.constant 3.200000e+01 : f32
    %5 = vector.broadcast %cst_5 : f32 to vector<16x1xf32>
    %6 = arith.divf %4, %5 : vector<16x1xf32>
    %7 = vector.broadcast %6 : vector<16x1xf32> to vector<16x32xf32>
    %8 = arith.subf %0, %7 : vector<16x32xf32>
    %9 = arith.mulf %8, %8 : vector<16x32xf32>
    %cst_6 = arith.constant dense<0.000000e+00> : vector<16xf32>
    %10 = vector.multi_reduction <add>, %9, %cst_6 [1] : vector<16x32xf32> to vector<16xf32>
    %11 = vector.shape_cast %10 : vector<16xf32> to vector<16x1xf32>
    %cst_7 = arith.constant 3.200000e+01 : f32
    %12 = vector.broadcast %cst_7 : f32 to vector<16x1xf32>
    %13 = arith.divf %11, %12 : vector<16x1xf32>
    %14 = vector.broadcast %6 : vector<16x1xf32> to vector<16x32xf32>
    %15 = arith.subf %0, %14 : vector<16x32xf32>
    %cst_8 = arith.constant 9.99999996E-13 : f32
    %16 = vector.broadcast %cst_8 : f32 to vector<16x1xf32>
    %17 = arith.addf %13, %16 : vector<16x1xf32>
    %18 = math.rsqrt %17 : vector<16x1xf32>
    %19 = vector.broadcast %18 : vector<16x1xf32> to vector<16x32xf32>
    %20 = arith.mulf %15, %19 : vector<16x32xf32>
    %21 = vector.broadcast %1 : vector<1x32xf32> to vector<16x32xf32>
    %22 = arith.mulf %20, %21 : vector<16x32xf32>
    %23 = vector.broadcast %2 : vector<1x32xf32> to vector<16x32xf32>
    %24 = arith.addf %22, %23 : vector<16x32xf32>
    %c0_9 = arith.constant 0 : index
    %c0_10 = arith.constant 0 : index
    %25 = vector.load %arg1[%c0_9, %c0_10] : memref<2x8xf32, #tpu.memory_space<vmem>>, vector<2x8xf32>
    %cst_11 = arith.constant 1.000000e+00 : f32
    %26 = vector.broadcast %cst_11 : f32 to vector<2x8xf32>
    %27 = arith.subf %26, %25 : vector<2x8xf32>
    %cst_12 = arith.constant -1.000000e+09 : f32
    %28 = vector.broadcast %cst_12 : f32 to vector<2x8xf32>
    %29 = arith.mulf %27, %28 : vector<2x8xf32>
    %30 = vector.shape_cast %29 : vector<2x8xf32> to vector<2x1x8xf32>
    %c0_13 = arith.constant 0 : index
    %c0_14 = arith.constant 0 : index
    %31 = vector.load %arg12[%c0_13, %c0_14] : memref<32x32xf32, #tpu.memory_space<vmem>>, vector<32x32xf32>
    %c0_15 = arith.constant 0 : index
    %c0_16 = arith.constant 0 : index
    %32 = vector.load %arg6[%c0_15, %c0_16] : memref<32x32xf32, #tpu.memory_space<vmem>>, vector<32x32xf32>
    %cst_17 = arith.constant dense<0.000000e+00> : vector<16x32xf32>
    %33 = tpu.matmul %24, %32, %cst_17 {dimension_numbers = #tpu.dot_dimension_numbers<[1], [0], [0], [1], [0, 0, 1, 1], [], []>} : vector<16x32xf32>, vector<32x32xf32>, vector<16x32xf32> -> vector<16x32xf32>
    %c0_18 = arith.constant 0 : index
    %c0_19 = arith.constant 0 : index
    %34 = vector.load %arg7[%c0_18, %c0_19] : memref<1x32xf32, #tpu.memory_space<vmem>>, vector<1x32xf32>
    %35 = vector.broadcast %34 : vector<1x32xf32> to vector<16x32xf32>
    %36 = arith.addf %33, %35 : vector<16x32xf32>
    %cst_20 = arith.constant 0.353553385 : f32
    %37 = vector.broadcast %cst_20 : f32 to vector<16x32xf32>
    %38 = arith.mulf %36, %37 : vector<16x32xf32>
    %c0_21 = arith.constant 0 : index
    %c0_22 = arith.constant 0 : index
    %39 = vector.load %arg8[%c0_21, %c0_22] : memref<32x32xf32, #tpu.memory_space<vmem>>, vector<32x32xf32>
    %cst_23 = arith.constant dense<0.000000e+00> : vector<16x32xf32>
    %40 = tpu.matmul %24, %39, %cst_23 {dimension_numbers = #tpu.dot_dimension_numbers<[1], [0], [0], [1], [0, 0, 1, 1], [], []>} : vector<16x32xf32>, vector<32x32xf32>, vector<16x32xf32> -> vector<16x32xf32>
    %c0_24 = arith.constant 0 : index
    %c0_25 = arith.constant 0 : index
    %41 = vector.load %arg9[%c0_24, %c0_25] : memref<1x32xf32, #tpu.memory_space<vmem>>, vector<1x32xf32>
    %42 = vector.broadcast %41 : vector<1x32xf32> to vector<16x32xf32>
    %43 = arith.addf %40, %42 : vector<16x32xf32>
    %c0_26 = arith.constant 0 : index
    %c0_27 = arith.constant 0 : index
    %44 = vector.load %arg10[%c0_26, %c0_27] : memref<32x32xf32, #tpu.memory_space<vmem>>, vector<32x32xf32>
    %cst_28 = arith.constant dense<0.000000e+00> : vector<16x32xf32>
    %45 = tpu.matmul %24, %44, %cst_28 {dimension_numbers = #tpu.dot_dimension_numbers<[1], [0], [0], [1], [0, 0, 1, 1], [], []>} : vector<16x32xf32>, vector<32x32xf32>, vector<16x32xf32> -> vector<16x32xf32>
    %c0_29 = arith.constant 0 : index
    %c0_30 = arith.constant 0 : index
    %46 = vector.load %arg11[%c0_29, %c0_30] : memref<1x32xf32, #tpu.memory_space<vmem>>, vector<1x32xf32>
    %47 = vector.broadcast %46 : vector<1x32xf32> to vector<16x32xf32>
    %48 = arith.addf %45, %47 : vector<16x32xf32>
    %49 = vector.shape_cast %38 : vector<16x32xf32> to vector<2x8x32xf32>
    %50 = vector.shape_cast %43 : vector<16x32xf32> to vector<2x8x32xf32>
    %51 = vector.shape_cast %48 : vector<16x32xf32> to vector<2x8x32xf32>
    %c0_31 = arith.constant 0 : index
    %c0_32 = arith.constant 0 : index
    %52 = vector.load %arg13[%c0_31, %c0_32] : memref<1x32xf32, #tpu.memory_space<vmem>>, vector<1x32xf32>
    %53 = vector.extract_strided_slice %49 {offsets = [0, 0, 0], sizes = [2, 8, 8], strides = [1, 1, 1]} : vector<2x8x32xf32> to vector<2x8x8xf32>
    %54 = vector.extract_strided_slice %50 {offsets = [0, 0, 0], sizes = [2, 8, 8], strides = [1, 1, 1]} : vector<2x8x32xf32> to vector<2x8x8xf32>
    "tpu.trace_start"() <{level = 10 : i32, message = "bqd,bkd->bqk"}> : () -> ()
    %cst_33 = arith.constant dense<0.000000e+00> : vector<2x8x8xf32>
    %55 = tpu.matmul %53, %54, %cst_33 {dimension_numbers = #tpu.dot_dimension_numbers<[2], [2], [1], [1], [0, 0, 0, 1, 1, 1], [0], [0]>} : vector<2x8x8xf32>, vector<2x8x8xf32>, vector<2x8x8xf32> -> vector<2x8x8xf32>
    "tpu.trace_stop"() : () -> ()
    %56 = vector.broadcast %30 : vector<2x1x8xf32> to vector<2x8x8xf32>
    %57 = arith.addf %55, %56 : vector<2x8x8xf32>
    %cst_34 = arith.constant dense<0xFF800000> : vector<2x8xf32>
    %58 = vector.multi_reduction <maximumf>, %57, %cst_34 [2] : vector<2x8x8xf32> to vector<2x8xf32>
    %59 = vector.shape_cast %58 : vector<2x8xf32> to vector<2x8x1xf32>
    %60 = vector.broadcast %59 : vector<2x8x1xf32> to vector<2x8x8xf32>
    %61 = arith.subf %57, %60 : vector<2x8x8xf32>
    %62 = math.exp %61 : vector<2x8x8xf32>
    %cst_35 = arith.constant dense<0.000000e+00> : vector<2x8xf32>
    %63 = vector.multi_reduction <add>, %62, %cst_35 [2] : vector<2x8x8xf32> to vector<2x8xf32>
    %64 = vector.shape_cast %63 : vector<2x8xf32> to vector<2x8x1xf32>
    %65 = vector.broadcast %64 : vector<2x8x1xf32> to vector<2x8x8xf32>
    %66 = arith.divf %62, %65 : vector<2x8x8xf32>
    %67 = vector.extract_strided_slice %51 {offsets = [0, 0, 0], sizes = [2, 8, 8], strides = [1, 1, 1]} : vector<2x8x32xf32> to vector<2x8x8xf32>
    "tpu.trace_start"() <{level = 10 : i32, message = "bqk,bkd->bqd"}> : () -> ()
    %cst_36 = arith.constant dense<0.000000e+00> : vector<2x8x8xf32>
    %68 = tpu.matmul %66, %67, %cst_36 {dimension_numbers = #tpu.dot_dimension_numbers<[2], [1], [1], [2], [0, 0, 0, 1, 1, 2], [0], [0]>} : vector<2x8x8xf32>, vector<2x8x8xf32>, vector<2x8x8xf32> -> vector<2x8x8xf32>
    "tpu.trace_stop"() : () -> ()
    %69 = vector.shape_cast %68 : vector<2x8x8xf32> to vector<16x8xf32>
    %70 = vector.extract_strided_slice %31 {offsets = [0, 0], sizes = [8, 32], strides = [1, 1]} : vector<32x32xf32> to vector<8x32xf32>
    %cst_37 = arith.constant dense<0.000000e+00> : vector<16x32xf32>
    %71 = tpu.matmul %69, %70, %cst_37 {dimension_numbers = #tpu.dot_dimension_numbers<[1], [0], [0], [1], [0, 0, 1, 1], [], []>} : vector<16x8xf32>, vector<8x32xf32>, vector<16x32xf32> -> vector<16x32xf32>
    %72 = vector.broadcast %52 : vector<1x32xf32> to vector<16x32xf32>
    %73 = arith.addf %72, %71 : vector<16x32xf32>
    %74 = vector.extract_strided_slice %49 {offsets = [0, 0, 8], sizes = [2, 8, 8], strides = [1, 1, 1]} : vector<2x8x32xf32> to vector<2x8x8xf32>
    %75 = vector.extract_strided_slice %50 {offsets = [0, 0, 8], sizes = [2, 8, 8], strides = [1, 1, 1]} : vector<2x8x32xf32> to vector<2x8x8xf32>
    "tpu.trace_start"() <{level = 10 : i32, message = "bqd,bkd->bqk"}> : () -> ()
    %cst_38 = arith.constant dense<0.000000e+00> : vector<2x8x8xf32>
    %76 = tpu.matmul %74, %75, %cst_38 {dimension_numbers = #tpu.dot_dimension_numbers<[2], [2], [1], [1], [0, 0, 0, 1, 1, 1], [0], [0]>} : vector<2x8x8xf32>, vector<2x8x8xf32>, vector<2x8x8xf32> -> vector<2x8x8xf32>
    "tpu.trace_stop"() : () -> ()
    %77 = vector.broadcast %30 : vector<2x1x8xf32> to vector<2x8x8xf32>
    %78 = arith.addf %76, %77 : vector<2x8x8xf32>
    %cst_39 = arith.constant dense<0xFF800000> : vector<2x8xf32>
    %79 = vector.multi_reduction <maximumf>, %78, %cst_39 [2] : vector<2x8x8xf32> to vector<2x8xf32>
    %80 = vector.shape_cast %79 : vector<2x8xf32> to vector<2x8x1xf32>
    %81 = vector.broadcast %80 : vector<2x8x1xf32> to vector<2x8x8xf32>
    %82 = arith.subf %78, %81 : vector<2x8x8xf32>
    %83 = math.exp %82 : vector<2x8x8xf32>
    %cst_40 = arith.constant dense<0.000000e+00> : vector<2x8xf32>
    %84 = vector.multi_reduction <add>, %83, %cst_40 [2] : vector<2x8x8xf32> to vector<2x8xf32>
    %85 = vector.shape_cast %84 : vector<2x8xf32> to vector<2x8x1xf32>
    %86 = vector.broadcast %85 : vector<2x8x1xf32> to vector<2x8x8xf32>
    %87 = arith.divf %83, %86 : vector<2x8x8xf32>
    %88 = vector.extract_strided_slice %51 {offsets = [0, 0, 8], sizes = [2, 8, 8], strides = [1, 1, 1]} : vector<2x8x32xf32> to vector<2x8x8xf32>
    "tpu.trace_start"() <{level = 10 : i32, message = "bqk,bkd->bqd"}> : () -> ()
    %cst_41 = arith.constant dense<0.000000e+00> : vector<2x8x8xf32>
    %89 = tpu.matmul %87, %88, %cst_41 {dimension_numbers = #tpu.dot_dimension_numbers<[2], [1], [1], [2], [0, 0, 0, 1, 1, 2], [0], [0]>} : vector<2x8x8xf32>, vector<2x8x8xf32>, vector<2x8x8xf32> -> vector<2x8x8xf32>
    "tpu.trace_stop"() : () -> ()
    %90 = vector.shape_cast %89 : vector<2x8x8xf32> to vector<16x8xf32>
    %91 = vector.extract_strided_slice %31 {offsets = [8, 0], sizes = [8, 32], strides = [1, 1]} : vector<32x32xf32> to vector<8x32xf32>
    %cst_42 = arith.constant dense<0.000000e+00> : vector<16x32xf32>
    %92 = tpu.matmul %90, %91, %cst_42 {dimension_numbers = #tpu.dot_dimension_numbers<[1], [0], [0], [1], [0, 0, 1, 1], [], []>} : vector<16x8xf32>, vector<8x32xf32>, vector<16x32xf32> -> vector<16x32xf32>
    %93 = arith.addf %73, %92 : vector<16x32xf32>
    %94 = vector.extract_strided_slice %49 {offsets = [0, 0, 16], sizes = [2, 8, 8], strides = [1, 1, 1]} : vector<2x8x32xf32> to vector<2x8x8xf32>
    %95 = vector.extract_strided_slice %50 {offsets = [0, 0, 16], sizes = [2, 8, 8], strides = [1, 1, 1]} : vector<2x8x32xf32> to vector<2x8x8xf32>
    "tpu.trace_start"() <{level = 10 : i32, message = "bqd,bkd->bqk"}> : () -> ()
    %cst_43 = arith.constant dense<0.000000e+00> : vector<2x8x8xf32>
    %96 = tpu.matmul %94, %95, %cst_43 {dimension_numbers = #tpu.dot_dimension_numbers<[2], [2], [1], [1], [0, 0, 0, 1, 1, 1], [0], [0]>} : vector<2x8x8xf32>, vector<2x8x8xf32>, vector<2x8x8xf32> -> vector<2x8x8xf32>
    "tpu.trace_stop"() : () -> ()
    %97 = vector.broadcast %30 : vector<2x1x8xf32> to vector<2x8x8xf32>
    %98 = arith.addf %96, %97 : vector<2x8x8xf32>
    %cst_44 = arith.constant dense<0xFF800000> : vector<2x8xf32>
    %99 = vector.multi_reduction <maximumf>, %98, %cst_44 [2] : vector<2x8x8xf32> to vector<2x8xf32>
    %100 = vector.shape_cast %99 : vector<2x8xf32> to vector<2x8x1xf32>
    %101 = vector.broadcast %100 : vector<2x8x1xf32> to vector<2x8x8xf32>
    %102 = arith.subf %98, %101 : vector<2x8x8xf32>
    %103 = math.exp %102 : vector<2x8x8xf32>
    %cst_45 = arith.constant dense<0.000000e+00> : vector<2x8xf32>
    %104 = vector.multi_reduction <add>, %103, %cst_45 [2] : vector<2x8x8xf32> to vector<2x8xf32>
    %105 = vector.shape_cast %104 : vector<2x8xf32> to vector<2x8x1xf32>
    %106 = vector.broadcast %105 : vector<2x8x1xf32> to vector<2x8x8xf32>
    %107 = arith.divf %103, %106 : vector<2x8x8xf32>
    %108 = vector.extract_strided_slice %51 {offsets = [0, 0, 16], sizes = [2, 8, 8], strides = [1, 1, 1]} : vector<2x8x32xf32> to vector<2x8x8xf32>
    "tpu.trace_start"() <{level = 10 : i32, message = "bqk,bkd->bqd"}> : () -> ()
    %cst_46 = arith.constant dense<0.000000e+00> : vector<2x8x8xf32>
    %109 = tpu.matmul %107, %108, %cst_46 {dimension_numbers = #tpu.dot_dimension_numbers<[2], [1], [1], [2], [0, 0, 0, 1, 1, 2], [0], [0]>} : vector<2x8x8xf32>, vector<2x8x8xf32>, vector<2x8x8xf32> -> vector<2x8x8xf32>
    "tpu.trace_stop"() : () -> ()
    %110 = vector.shape_cast %109 : vector<2x8x8xf32> to vector<16x8xf32>
    %111 = vector.extract_strided_slice %31 {offsets = [16, 0], sizes = [8, 32], strides = [1, 1]} : vector<32x32xf32> to vector<8x32xf32>
    %cst_47 = arith.constant dense<0.000000e+00> : vector<16x32xf32>
    %112 = tpu.matmul %110, %111, %cst_47 {dimension_numbers = #tpu.dot_dimension_numbers<[1], [0], [0], [1], [0, 0, 1, 1], [], []>} : vector<16x8xf32>, vector<8x32xf32>, vector<16x32xf32> -> vector<16x32xf32>
    %113 = arith.addf %93, %112 : vector<16x32xf32>
    %114 = vector.extract_strided_slice %49 {offsets = [0, 0, 24], sizes = [2, 8, 8], strides = [1, 1, 1]} : vector<2x8x32xf32> to vector<2x8x8xf32>
    %115 = vector.extract_strided_slice %50 {offsets = [0, 0, 24], sizes = [2, 8, 8], strides = [1, 1, 1]} : vector<2x8x32xf32> to vector<2x8x8xf32>
    "tpu.trace_start"() <{level = 10 : i32, message = "bqd,bkd->bqk"}> : () -> ()
    %cst_48 = arith.constant dense<0.000000e+00> : vector<2x8x8xf32>
    %116 = tpu.matmul %114, %115, %cst_48 {dimension_numbers = #tpu.dot_dimension_numbers<[2], [2], [1], [1], [0, 0, 0, 1, 1, 1], [0], [0]>} : vector<2x8x8xf32>, vector<2x8x8xf32>, vector<2x8x8xf32> -> vector<2x8x8xf32>
    "tpu.trace_stop"() : () -> ()
    %117 = vector.broadcast %30 : vector<2x1x8xf32> to vector<2x8x8xf32>
    %118 = arith.addf %116, %117 : vector<2x8x8xf32>
    %cst_49 = arith.constant dense<0xFF800000> : vector<2x8xf32>
    %119 = vector.multi_reduction <maximumf>, %118, %cst_49 [2] : vector<2x8x8xf32> to vector<2x8xf32>
    %120 = vector.shape_cast %119 : vector<2x8xf32> to vector<2x8x1xf32>
    %121 = vector.broadcast %120 : vector<2x8x1xf32> to vector<2x8x8xf32>
    %122 = arith.subf %118, %121 : vector<2x8x8xf32>
    %123 = math.exp %122 : vector<2x8x8xf32>
    %cst_50 = arith.constant dense<0.000000e+00> : vector<2x8xf32>
    %124 = vector.multi_reduction <add>, %123, %cst_50 [2] : vector<2x8x8xf32> to vector<2x8xf32>
    %125 = vector.shape_cast %124 : vector<2x8xf32> to vector<2x8x1xf32>
    %126 = vector.broadcast %125 : vector<2x8x1xf32> to vector<2x8x8xf32>
    %127 = arith.divf %123, %126 : vector<2x8x8xf32>
    %128 = vector.extract_strided_slice %51 {offsets = [0, 0, 24], sizes = [2, 8, 8], strides = [1, 1, 1]} : vector<2x8x32xf32> to vector<2x8x8xf32>
    "tpu.trace_start"() <{level = 10 : i32, message = "bqk,bkd->bqd"}> : () -> ()
    %cst_51 = arith.constant dense<0.000000e+00> : vector<2x8x8xf32>
    %129 = tpu.matmul %127, %128, %cst_51 {dimension_numbers = #tpu.dot_dimension_numbers<[2], [1], [1], [2], [0, 0, 0, 1, 1, 2], [0], [0]>} : vector<2x8x8xf32>, vector<2x8x8xf32>, vector<2x8x8xf32> -> vector<2x8x8xf32>
    "tpu.trace_stop"() : () -> ()
    %130 = vector.shape_cast %129 : vector<2x8x8xf32> to vector<16x8xf32>
    %131 = vector.extract_strided_slice %31 {offsets = [24, 0], sizes = [8, 32], strides = [1, 1]} : vector<32x32xf32> to vector<8x32xf32>
    %cst_52 = arith.constant dense<0.000000e+00> : vector<16x32xf32>
    %132 = tpu.matmul %130, %131, %cst_52 {dimension_numbers = #tpu.dot_dimension_numbers<[1], [0], [0], [1], [0, 0, 1, 1], [], []>} : vector<16x8xf32>, vector<8x32xf32>, vector<16x32xf32> -> vector<16x32xf32>
    %133 = arith.addf %113, %132 : vector<16x32xf32>
    %134 = arith.addf %24, %133 : vector<16x32xf32>
    %c0_53 = arith.constant 0 : index
    %c0_54 = arith.constant 0 : index
    %135 = vector.load %arg14[%c0_53, %c0_54] : memref<1x32xf32, #tpu.memory_space<vmem>>, vector<1x32xf32>
    %c0_55 = arith.constant 0 : index
    %c0_56 = arith.constant 0 : index
    %136 = vector.load %arg15[%c0_55, %c0_56] : memref<1x32xf32, #tpu.memory_space<vmem>>, vector<1x32xf32>
    %cst_57 = arith.constant dense<0.000000e+00> : vector<16xf32>
    %137 = vector.multi_reduction <add>, %134, %cst_57 [1] : vector<16x32xf32> to vector<16xf32>
    %138 = vector.shape_cast %137 : vector<16xf32> to vector<16x1xf32>
    %cst_58 = arith.constant 3.200000e+01 : f32
    %139 = vector.broadcast %cst_58 : f32 to vector<16x1xf32>
    %140 = arith.divf %138, %139 : vector<16x1xf32>
    %141 = vector.broadcast %140 : vector<16x1xf32> to vector<16x32xf32>
    %142 = arith.subf %134, %141 : vector<16x32xf32>
    %143 = arith.mulf %142, %142 : vector<16x32xf32>
    %cst_59 = arith.constant dense<0.000000e+00> : vector<16xf32>
    %144 = vector.multi_reduction <add>, %143, %cst_59 [1] : vector<16x32xf32> to vector<16xf32>
    %145 = vector.shape_cast %144 : vector<16xf32> to vector<16x1xf32>
    %cst_60 = arith.constant 3.200000e+01 : f32
    %146 = vector.broadcast %cst_60 : f32 to vector<16x1xf32>
    %147 = arith.divf %145, %146 : vector<16x1xf32>
    %148 = vector.broadcast %140 : vector<16x1xf32> to vector<16x32xf32>
    %149 = arith.subf %134, %148 : vector<16x32xf32>
    %cst_61 = arith.constant 9.99999996E-13 : f32
    %150 = vector.broadcast %cst_61 : f32 to vector<16x1xf32>
    %151 = arith.addf %147, %150 : vector<16x1xf32>
    %152 = math.rsqrt %151 : vector<16x1xf32>
    %153 = vector.broadcast %152 : vector<16x1xf32> to vector<16x32xf32>
    %154 = arith.mulf %149, %153 : vector<16x32xf32>
    %155 = vector.broadcast %135 : vector<1x32xf32> to vector<16x32xf32>
    %156 = arith.mulf %154, %155 : vector<16x32xf32>
    %157 = vector.broadcast %136 : vector<1x32xf32> to vector<16x32xf32>
    %158 = arith.addf %156, %157 : vector<16x32xf32>
    %c0_62 = arith.constant 0 : index
    %c0_63 = arith.constant 0 : index
    %159 = vector.load %arg16[%c0_62, %c0_63] : memref<32x128xf32, #tpu.memory_space<vmem>>, vector<32x128xf32>
    %cst_64 = arith.constant dense<0.000000e+00> : vector<16x128xf32>
    %160 = tpu.matmul %158, %159, %cst_64 {dimension_numbers = #tpu.dot_dimension_numbers<[1], [0], [0], [1], [0, 0, 1, 1], [], []>} : vector<16x32xf32>, vector<32x128xf32>, vector<16x128xf32> -> vector<16x128xf32>
    %c0_65 = arith.constant 0 : index
    %c0_66 = arith.constant 0 : index
    %161 = vector.load %arg17[%c0_65, %c0_66] : memref<1x128xf32, #tpu.memory_space<vmem>>, vector<1x128xf32>
    %162 = vector.broadcast %161 : vector<1x128xf32> to vector<16x128xf32>
    %163 = arith.addf %160, %162 : vector<16x128xf32>
    %cst_67 = arith.constant 5.000000e-01 : f32
    %164 = vector.broadcast %cst_67 : f32 to vector<16x128xf32>
    %165 = arith.mulf %164, %163 : vector<16x128xf32>
    %cst_68 = arith.constant 4.471500e-02 : f32
    %166 = vector.broadcast %cst_68 : f32 to vector<16x128xf32>
    %167 = arith.mulf %166, %163 : vector<16x128xf32>
    %168 = arith.mulf %167, %163 : vector<16x128xf32>
    %169 = arith.mulf %168, %163 : vector<16x128xf32>
    %170 = arith.addf %163, %169 : vector<16x128xf32>
    %cst_69 = arith.constant 0.797884583 : f32
    %171 = vector.broadcast %cst_69 : f32 to vector<16x128xf32>
    %172 = arith.mulf %171, %170 : vector<16x128xf32>
    %173 = math.tanh %172 : vector<16x128xf32>
    %cst_70 = arith.constant 1.000000e+00 : f32
    %174 = vector.broadcast %cst_70 : f32 to vector<16x128xf32>
    %175 = arith.addf %174, %173 : vector<16x128xf32>
    %176 = arith.mulf %165, %175 : vector<16x128xf32>
    %c0_71 = arith.constant 0 : index
    %c0_72 = arith.constant 0 : index
    %177 = vector.load %arg18[%c0_71, %c0_72] : memref<128x32xf32, #tpu.memory_space<vmem>>, vector<128x32xf32>
    %cst_73 = arith.constant dense<0.000000e+00> : vector<16x32xf32>
    %178 = tpu.matmul %176, %177, %cst_73 {dimension_numbers = #tpu.dot_dimension_numbers<[1], [0], [0], [1], [0, 0, 1, 1], [], []>} : vector<16x128xf32>, vector<128x32xf32>, vector<16x32xf32> -> vector<16x32xf32>
    %c0_74 = arith.constant 0 : index
    %c0_75 = arith.constant 0 : index
    %179 = vector.load %arg19[%c0_74, %c0_75] : memref<1x32xf32, #tpu.memory_space<vmem>>, vector<1x32xf32>
    %180 = vector.broadcast %179 : vector<1x32xf32> to vector<16x32xf32>
    %181 = arith.addf %178, %180 : vector<16x32xf32>
    %182 = arith.addf %158, %181 : vector<16x32xf32>
    %c0_76 = arith.constant 0 : index
    %c0_77 = arith.constant 0 : index
    %183 = vector.load %arg20[%c0_76, %c0_77] : memref<1x32xf32, #tpu.memory_space<vmem>>, vector<1x32xf32>
    %c0_78 = arith.constant 0 : index
    %c0_79 = arith.constant 0 : index
    %184 = vector.load %arg21[%c0_78, %c0_79] : memref<1x32xf32, #tpu.memory_space<vmem>>, vector<1x32xf32>
    %cst_80 = arith.constant dense<0.000000e+00> : vector<16xf32>
    %185 = vector.multi_reduction <add>, %182, %cst_80 [1] : vector<16x32xf32> to vector<16xf32>
    %186 = vector.shape_cast %185 : vector<16xf32> to vector<16x1xf32>
    %cst_81 = arith.constant 3.200000e+01 : f32
    %187 = vector.broadcast %cst_81 : f32 to vector<16x1xf32>
    %188 = arith.divf %186, %187 : vector<16x1xf32>
    %189 = vector.broadcast %188 : vector<16x1xf32> to vector<16x32xf32>
    %190 = arith.subf %182, %189 : vector<16x32xf32>
    %191 = arith.mulf %190, %190 : vector<16x32xf32>
    %cst_82 = arith.constant dense<0.000000e+00> : vector<16xf32>
    %192 = vector.multi_reduction <add>, %191, %cst_82 [1] : vector<16x32xf32> to vector<16xf32>
    %193 = vector.shape_cast %192 : vector<16xf32> to vector<16x1xf32>
    %cst_83 = arith.constant 3.200000e+01 : f32
    %194 = vector.broadcast %cst_83 : f32 to vector<16x1xf32>
    %195 = arith.divf %193, %194 : vector<16x1xf32>
    %196 = vector.broadcast %188 : vector<16x1xf32> to vector<16x32xf32>
    %197 = arith.subf %182, %196 : vector<16x32xf32>
    %cst_84 = arith.constant 9.99999996E-13 : f32
    %198 = vector.broadcast %cst_84 : f32 to vector<16x1xf32>
    %199 = arith.addf %195, %198 : vector<16x1xf32>
    %200 = math.rsqrt %199 : vector<16x1xf32>
    %201 = vector.broadcast %200 : vector<16x1xf32> to vector<16x32xf32>
    %202 = arith.mulf %197, %201 : vector<16x32xf32>
    %203 = vector.broadcast %183 : vector<1x32xf32> to vector<16x32xf32>
    %204 = arith.mulf %202, %203 : vector<16x32xf32>
    %205 = vector.broadcast %184 : vector<1x32xf32> to vector<16x32xf32>
    %206 = arith.addf %204, %205 : vector<16x32xf32>
    %c0_85 = arith.constant 0 : index
    %c0_86 = arith.constant 0 : index
    %207 = vector.load %arg6[%c0_85, %c0_86] : memref<32x32xf32, #tpu.memory_space<vmem>>, vector<32x32xf32>
    %cst_87 = arith.constant dense<0.000000e+00> : vector<16x32xf32>
    %208 = tpu.matmul %206, %207, %cst_87 {dimension_numbers = #tpu.dot_dimension_numbers<[1], [0], [0], [1], [0, 0, 1, 1], [], []>} : vector<16x32xf32>, vector<32x32xf32>, vector<16x32xf32> -> vector<16x32xf32>
    %c0_88 = arith.constant 0 : index
    %c0_89 = arith.constant 0 : index
    %209 = vector.load %arg7[%c0_88, %c0_89] : memref<1x32xf32, #tpu.memory_space<vmem>>, vector<1x32xf32>
    %210 = vector.broadcast %209 : vector<1x32xf32> to vector<16x32xf32>
    %211 = arith.addf %208, %210 : vector<16x32xf32>
    %cst_90 = arith.constant 0.353553385 : f32
    %212 = vector.broadcast %cst_90 : f32 to vector<16x32xf32>
    %213 = arith.mulf %211, %212 : vector<16x32xf32>
    %c0_91 = arith.constant 0 : index
    %c0_92 = arith.constant 0 : index
    %214 = vector.load %arg8[%c0_91, %c0_92] : memref<32x32xf32, #tpu.memory_space<vmem>>, vector<32x32xf32>
    %cst_93 = arith.constant dense<0.000000e+00> : vector<16x32xf32>
    %215 = tpu.matmul %206, %214, %cst_93 {dimension_numbers = #tpu.dot_dimension_numbers<[1], [0], [0], [1], [0, 0, 1, 1], [], []>} : vector<16x32xf32>, vector<32x32xf32>, vector<16x32xf32> -> vector<16x32xf32>
    %c0_94 = arith.constant 0 : index
    %c0_95 = arith.constant 0 : index
    %216 = vector.load %arg9[%c0_94, %c0_95] : memref<1x32xf32, #tpu.memory_space<vmem>>, vector<1x32xf32>
    %217 = vector.broadcast %216 : vector<1x32xf32> to vector<16x32xf32>
    %218 = arith.addf %215, %217 : vector<16x32xf32>
    %c0_96 = arith.constant 0 : index
    %c0_97 = arith.constant 0 : index
    %219 = vector.load %arg10[%c0_96, %c0_97] : memref<32x32xf32, #tpu.memory_space<vmem>>, vector<32x32xf32>
    %cst_98 = arith.constant dense<0.000000e+00> : vector<16x32xf32>
    %220 = tpu.matmul %206, %219, %cst_98 {dimension_numbers = #tpu.dot_dimension_numbers<[1], [0], [0], [1], [0, 0, 1, 1], [], []>} : vector<16x32xf32>, vector<32x32xf32>, vector<16x32xf32> -> vector<16x32xf32>
    %c0_99 = arith.constant 0 : index
    %c0_100 = arith.constant 0 : index
    %221 = vector.load %arg11[%c0_99, %c0_100] : memref<1x32xf32, #tpu.memory_space<vmem>>, vector<1x32xf32>
    %222 = vector.broadcast %221 : vector<1x32xf32> to vector<16x32xf32>
    %223 = arith.addf %220, %222 : vector<16x32xf32>
    %224 = vector.shape_cast %213 : vector<16x32xf32> to vector<2x8x32xf32>
    %225 = vector.shape_cast %218 : vector<16x32xf32> to vector<2x8x32xf32>
    %226 = vector.shape_cast %223 : vector<16x32xf32> to vector<2x8x32xf32>
    %c0_101 = arith.constant 0 : index
    %c0_102 = arith.constant 0 : index
    %227 = vector.load %arg13[%c0_101, %c0_102] : memref<1x32xf32, #tpu.memory_space<vmem>>, vector<1x32xf32>
    %228 = vector.extract_strided_slice %224 {offsets = [0, 0, 0], sizes = [2, 8, 8], strides = [1, 1, 1]} : vector<2x8x32xf32> to vector<2x8x8xf32>
    %229 = vector.extract_strided_slice %225 {offsets = [0, 0, 0], sizes = [2, 8, 8], strides = [1, 1, 1]} : vector<2x8x32xf32> to vector<2x8x8xf32>
    "tpu.trace_start"() <{level = 10 : i32, message = "bqd,bkd->bqk"}> : () -> ()
    %cst_103 = arith.constant dense<0.000000e+00> : vector<2x8x8xf32>
    %230 = tpu.matmul %228, %229, %cst_103 {dimension_numbers = #tpu.dot_dimension_numbers<[2], [2], [1], [1], [0, 0, 0, 1, 1, 1], [0], [0]>} : vector<2x8x8xf32>, vector<2x8x8xf32>, vector<2x8x8xf32> -> vector<2x8x8xf32>
    "tpu.trace_stop"() : () -> ()
    %231 = vector.broadcast %30 : vector<2x1x8xf32> to vector<2x8x8xf32>
    %232 = arith.addf %230, %231 : vector<2x8x8xf32>
    %cst_104 = arith.constant dense<0xFF800000> : vector<2x8xf32>
    %233 = vector.multi_reduction <maximumf>, %232, %cst_104 [2] : vector<2x8x8xf32> to vector<2x8xf32>
    %234 = vector.shape_cast %233 : vector<2x8xf32> to vector<2x8x1xf32>
    %235 = vector.broadcast %234 : vector<2x8x1xf32> to vector<2x8x8xf32>
    %236 = arith.subf %232, %235 : vector<2x8x8xf32>
    %237 = math.exp %236 : vector<2x8x8xf32>
    %cst_105 = arith.constant dense<0.000000e+00> : vector<2x8xf32>
    %238 = vector.multi_reduction <add>, %237, %cst_105 [2] : vector<2x8x8xf32> to vector<2x8xf32>
    %239 = vector.shape_cast %238 : vector<2x8xf32> to vector<2x8x1xf32>
    %240 = vector.broadcast %239 : vector<2x8x1xf32> to vector<2x8x8xf32>
    %241 = arith.divf %237, %240 : vector<2x8x8xf32>
    %242 = vector.extract_strided_slice %226 {offsets = [0, 0, 0], sizes = [2, 8, 8], strides = [1, 1, 1]} : vector<2x8x32xf32> to vector<2x8x8xf32>
    "tpu.trace_start"() <{level = 10 : i32, message = "bqk,bkd->bqd"}> : () -> ()
    %cst_106 = arith.constant dense<0.000000e+00> : vector<2x8x8xf32>
    %243 = tpu.matmul %241, %242, %cst_106 {dimension_numbers = #tpu.dot_dimension_numbers<[2], [1], [1], [2], [0, 0, 0, 1, 1, 2], [0], [0]>} : vector<2x8x8xf32>, vector<2x8x8xf32>, vector<2x8x8xf32> -> vector<2x8x8xf32>
    "tpu.trace_stop"() : () -> ()
    %244 = vector.shape_cast %243 : vector<2x8x8xf32> to vector<16x8xf32>
    %245 = vector.extract_strided_slice %31 {offsets = [0, 0], sizes = [8, 32], strides = [1, 1]} : vector<32x32xf32> to vector<8x32xf32>
    %cst_107 = arith.constant dense<0.000000e+00> : vector<16x32xf32>
    %246 = tpu.matmul %244, %245, %cst_107 {dimension_numbers = #tpu.dot_dimension_numbers<[1], [0], [0], [1], [0, 0, 1, 1], [], []>} : vector<16x8xf32>, vector<8x32xf32>, vector<16x32xf32> -> vector<16x32xf32>
    %247 = vector.broadcast %227 : vector<1x32xf32> to vector<16x32xf32>
    %248 = arith.addf %247, %246 : vector<16x32xf32>
    %249 = vector.extract_strided_slice %224 {offsets = [0, 0, 8], sizes = [2, 8, 8], strides = [1, 1, 1]} : vector<2x8x32xf32> to vector<2x8x8xf32>
    %250 = vector.extract_strided_slice %225 {offsets = [0, 0, 8], sizes = [2, 8, 8], strides = [1, 1, 1]} : vector<2x8x32xf32> to vector<2x8x8xf32>
    "tpu.trace_start"() <{level = 10 : i32, message = "bqd,bkd->bqk"}> : () -> ()
    %cst_108 = arith.constant dense<0.000000e+00> : vector<2x8x8xf32>
    %251 = tpu.matmul %249, %250, %cst_108 {dimension_numbers = #tpu.dot_dimension_numbers<[2], [2], [1], [1], [0, 0, 0, 1, 1, 1], [0], [0]>} : vector<2x8x8xf32>, vector<2x8x8xf32>, vector<2x8x8xf32> -> vector<2x8x8xf32>
    "tpu.trace_stop"() : () -> ()
    %252 = vector.broadcast %30 : vector<2x1x8xf32> to vector<2x8x8xf32>
    %253 = arith.addf %251, %252 : vector<2x8x8xf32>
    %cst_109 = arith.constant dense<0xFF800000> : vector<2x8xf32>
    %254 = vector.multi_reduction <maximumf>, %253, %cst_109 [2] : vector<2x8x8xf32> to vector<2x8xf32>
    %255 = vector.shape_cast %254 : vector<2x8xf32> to vector<2x8x1xf32>
    %256 = vector.broadcast %255 : vector<2x8x1xf32> to vector<2x8x8xf32>
    %257 = arith.subf %253, %256 : vector<2x8x8xf32>
    %258 = math.exp %257 : vector<2x8x8xf32>
    %cst_110 = arith.constant dense<0.000000e+00> : vector<2x8xf32>
    %259 = vector.multi_reduction <add>, %258, %cst_110 [2] : vector<2x8x8xf32> to vector<2x8xf32>
    %260 = vector.shape_cast %259 : vector<2x8xf32> to vector<2x8x1xf32>
    %261 = vector.broadcast %260 : vector<2x8x1xf32> to vector<2x8x8xf32>
    %262 = arith.divf %258, %261 : vector<2x8x8xf32>
    %263 = vector.extract_strided_slice %226 {offsets = [0, 0, 8], sizes = [2, 8, 8], strides = [1, 1, 1]} : vector<2x8x32xf32> to vector<2x8x8xf32>
    "tpu.trace_start"() <{level = 10 : i32, message = "bqk,bkd->bqd"}> : () -> ()
    %cst_111 = arith.constant dense<0.000000e+00> : vector<2x8x8xf32>
    %264 = tpu.matmul %262, %263, %cst_111 {dimension_numbers = #tpu.dot_dimension_numbers<[2], [1], [1], [2], [0, 0, 0, 1, 1, 2], [0], [0]>} : vector<2x8x8xf32>, vector<2x8x8xf32>, vector<2x8x8xf32> -> vector<2x8x8xf32>
    "tpu.trace_stop"() : () -> ()
    %265 = vector.shape_cast %264 : vector<2x8x8xf32> to vector<16x8xf32>
    %266 = vector.extract_strided_slice %31 {offsets = [8, 0], sizes = [8, 32], strides = [1, 1]} : vector<32x32xf32> to vector<8x32xf32>
    %cst_112 = arith.constant dense<0.000000e+00> : vector<16x32xf32>
    %267 = tpu.matmul %265, %266, %cst_112 {dimension_numbers = #tpu.dot_dimension_numbers<[1], [0], [0], [1], [0, 0, 1, 1], [], []>} : vector<16x8xf32>, vector<8x32xf32>, vector<16x32xf32> -> vector<16x32xf32>
    %268 = arith.addf %248, %267 : vector<16x32xf32>
    %269 = vector.extract_strided_slice %224 {offsets = [0, 0, 16], sizes = [2, 8, 8], strides = [1, 1, 1]} : vector<2x8x32xf32> to vector<2x8x8xf32>
    %270 = vector.extract_strided_slice %225 {offsets = [0, 0, 16], sizes = [2, 8, 8], strides = [1, 1, 1]} : vector<2x8x32xf32> to vector<2x8x8xf32>
    "tpu.trace_start"() <{level = 10 : i32, message = "bqd,bkd->bqk"}> : () -> ()
    %cst_113 = arith.constant dense<0.000000e+00> : vector<2x8x8xf32>
    %271 = tpu.matmul %269, %270, %cst_113 {dimension_numbers = #tpu.dot_dimension_numbers<[2], [2], [1], [1], [0, 0, 0, 1, 1, 1], [0], [0]>} : vector<2x8x8xf32>, vector<2x8x8xf32>, vector<2x8x8xf32> -> vector<2x8x8xf32>
    "tpu.trace_stop"() : () -> ()
    %272 = vector.broadcast %30 : vector<2x1x8xf32> to vector<2x8x8xf32>
    %273 = arith.addf %271, %272 : vector<2x8x8xf32>
    %cst_114 = arith.constant dense<0xFF800000> : vector<2x8xf32>
    %274 = vector.multi_reduction <maximumf>, %273, %cst_114 [2] : vector<2x8x8xf32> to vector<2x8xf32>
    %275 = vector.shape_cast %274 : vector<2x8xf32> to vector<2x8x1xf32>
    %276 = vector.broadcast %275 : vector<2x8x1xf32> to vector<2x8x8xf32>
    %277 = arith.subf %273, %276 : vector<2x8x8xf32>
    %278 = math.exp %277 : vector<2x8x8xf32>
    %cst_115 = arith.constant dense<0.000000e+00> : vector<2x8xf32>
    %279 = vector.multi_reduction <add>, %278, %cst_115 [2] : vector<2x8x8xf32> to vector<2x8xf32>
    %280 = vector.shape_cast %279 : vector<2x8xf32> to vector<2x8x1xf32>
    %281 = vector.broadcast %280 : vector<2x8x1xf32> to vector<2x8x8xf32>
    %282 = arith.divf %278, %281 : vector<2x8x8xf32>
    %283 = vector.extract_strided_slice %226 {offsets = [0, 0, 16], sizes = [2, 8, 8], strides = [1, 1, 1]} : vector<2x8x32xf32> to vector<2x8x8xf32>
    "tpu.trace_start"() <{level = 10 : i32, message = "bqk,bkd->bqd"}> : () -> ()
    %cst_116 = arith.constant dense<0.000000e+00> : vector<2x8x8xf32>
    %284 = tpu.matmul %282, %283, %cst_116 {dimension_numbers = #tpu.dot_dimension_numbers<[2], [1], [1], [2], [0, 0, 0, 1, 1, 2], [0], [0]>} : vector<2x8x8xf32>, vector<2x8x8xf32>, vector<2x8x8xf32> -> vector<2x8x8xf32>
    "tpu.trace_stop"() : () -> ()
    %285 = vector.shape_cast %284 : vector<2x8x8xf32> to vector<16x8xf32>
    %286 = vector.extract_strided_slice %31 {offsets = [16, 0], sizes = [8, 32], strides = [1, 1]} : vector<32x32xf32> to vector<8x32xf32>
    %cst_117 = arith.constant dense<0.000000e+00> : vector<16x32xf32>
    %287 = tpu.matmul %285, %286, %cst_117 {dimension_numbers = #tpu.dot_dimension_numbers<[1], [0], [0], [1], [0, 0, 1, 1], [], []>} : vector<16x8xf32>, vector<8x32xf32>, vector<16x32xf32> -> vector<16x32xf32>
    %288 = arith.addf %268, %287 : vector<16x32xf32>
    %289 = vector.extract_strided_slice %224 {offsets = [0, 0, 24], sizes = [2, 8, 8], strides = [1, 1, 1]} : vector<2x8x32xf32> to vector<2x8x8xf32>
    %290 = vector.extract_strided_slice %225 {offsets = [0, 0, 24], sizes = [2, 8, 8], strides = [1, 1, 1]} : vector<2x8x32xf32> to vector<2x8x8xf32>
    "tpu.trace_start"() <{level = 10 : i32, message = "bqd,bkd->bqk"}> : () -> ()
    %cst_118 = arith.constant dense<0.000000e+00> : vector<2x8x8xf32>
    %291 = tpu.matmul %289, %290, %cst_118 {dimension_numbers = #tpu.dot_dimension_numbers<[2], [2], [1], [1], [0, 0, 0, 1, 1, 1], [0], [0]>} : vector<2x8x8xf32>, vector<2x8x8xf32>, vector<2x8x8xf32> -> vector<2x8x8xf32>
    "tpu.trace_stop"() : () -> ()
    %292 = vector.broadcast %30 : vector<2x1x8xf32> to vector<2x8x8xf32>
    %293 = arith.addf %291, %292 : vector<2x8x8xf32>
    %cst_119 = arith.constant dense<0xFF800000> : vector<2x8xf32>
    %294 = vector.multi_reduction <maximumf>, %293, %cst_119 [2] : vector<2x8x8xf32> to vector<2x8xf32>
    %295 = vector.shape_cast %294 : vector<2x8xf32> to vector<2x8x1xf32>
    %296 = vector.broadcast %295 : vector<2x8x1xf32> to vector<2x8x8xf32>
    %297 = arith.subf %293, %296 : vector<2x8x8xf32>
    %298 = math.exp %297 : vector<2x8x8xf32>
    %cst_120 = arith.constant dense<0.000000e+00> : vector<2x8xf32>
    %299 = vector.multi_reduction <add>, %298, %cst_120 [2] : vector<2x8x8xf32> to vector<2x8xf32>
    %300 = vector.shape_cast %299 : vector<2x8xf32> to vector<2x8x1xf32>
    %301 = vector.broadcast %300 : vector<2x8x1xf32> to vector<2x8x8xf32>
    %302 = arith.divf %298, %301 : vector<2x8x8xf32>
    %303 = vector.extract_strided_slice %226 {offsets = [0, 0, 24], sizes = [2, 8, 8], strides = [1, 1, 1]} : vector<2x8x32xf32> to vector<2x8x8xf32>
    "tpu.trace_start"() <{level = 10 : i32, message = "bqk,bkd->bqd"}> : () -> ()
    %cst_121 = arith.constant dense<0.000000e+00> : vector<2x8x8xf32>
    %304 = tpu.matmul %302, %303, %cst_121 {dimension_numbers = #tpu.dot_dimension_numbers<[2], [1], [1], [2], [0, 0, 0, 1, 1, 2], [0], [0]>} : vector<2x8x8xf32>, vector<2x8x8xf32>, vector<2x8x8xf32> -> vector<2x8x8xf32>
    "tpu.trace_stop"() : () -> ()
    %305 = vector.shape_cast %304 : vector<2x8x8xf32> to vector<16x8xf32>
    %306 = vector.extract_strided_slice %31 {offsets = [24, 0], sizes = [8, 32], strides = [1, 1]} : vector<32x32xf32> to vector<8x32xf32>
    %cst_122 = arith.constant dense<0.000000e+00> : vector<16x32xf32>
    %307 = tpu.matmul %305, %306, %cst_122 {dimension_numbers = #tpu.dot_dimension_numbers<[1], [0], [0], [1], [0, 0, 1, 1], [], []>} : vector<16x8xf32>, vector<8x32xf32>, vector<16x32xf32> -> vector<16x32xf32>
    %308 = arith.addf %288, %307 : vector<16x32xf32>
    %309 = arith.addf %206, %308 : vector<16x32xf32>
    %c0_123 = arith.constant 0 : index
    %c0_124 = arith.constant 0 : index
    %310 = vector.load %arg14[%c0_123, %c0_124] : memref<1x32xf32, #tpu.memory_space<vmem>>, vector<1x32xf32>
    %c0_125 = arith.constant 0 : index
    %c0_126 = arith.constant 0 : index
    %311 = vector.load %arg15[%c0_125, %c0_126] : memref<1x32xf32, #tpu.memory_space<vmem>>, vector<1x32xf32>
    %cst_127 = arith.constant dense<0.000000e+00> : vector<16xf32>
    %312 = vector.multi_reduction <add>, %309, %cst_127 [1] : vector<16x32xf32> to vector<16xf32>
    %313 = vector.shape_cast %312 : vector<16xf32> to vector<16x1xf32>
    %cst_128 = arith.constant 3.200000e+01 : f32
    %314 = vector.broadcast %cst_128 : f32 to vector<16x1xf32>
    %315 = arith.divf %313, %314 : vector<16x1xf32>
    %316 = vector.broadcast %315 : vector<16x1xf32> to vector<16x32xf32>
    %317 = arith.subf %309, %316 : vector<16x32xf32>
    %318 = arith.mulf %317, %317 : vector<16x32xf32>
    %cst_129 = arith.constant dense<0.000000e+00> : vector<16xf32>
    %319 = vector.multi_reduction <add>, %318, %cst_129 [1] : vector<16x32xf32> to vector<16xf32>
    %320 = vector.shape_cast %319 : vector<16xf32> to vector<16x1xf32>
    %cst_130 = arith.constant 3.200000e+01 : f32
    %321 = vector.broadcast %cst_130 : f32 to vector<16x1xf32>
    %322 = arith.divf %320, %321 : vector<16x1xf32>
    %323 = vector.broadcast %315 : vector<16x1xf32> to vector<16x32xf32>
    %324 = arith.subf %309, %323 : vector<16x32xf32>
    %cst_131 = arith.constant 9.99999996E-13 : f32
    %325 = vector.broadcast %cst_131 : f32 to vector<16x1xf32>
    %326 = arith.addf %322, %325 : vector<16x1xf32>
    %327 = math.rsqrt %326 : vector<16x1xf32>
    %328 = vector.broadcast %327 : vector<16x1xf32> to vector<16x32xf32>
    %329 = arith.mulf %324, %328 : vector<16x32xf32>
    %330 = vector.broadcast %310 : vector<1x32xf32> to vector<16x32xf32>
    %331 = arith.mulf %329, %330 : vector<16x32xf32>
    %332 = vector.broadcast %311 : vector<1x32xf32> to vector<16x32xf32>
    %333 = arith.addf %331, %332 : vector<16x32xf32>
    %c0_132 = arith.constant 0 : index
    %c0_133 = arith.constant 0 : index
    %334 = vector.load %arg16[%c0_132, %c0_133] : memref<32x128xf32, #tpu.memory_space<vmem>>, vector<32x128xf32>
    %cst_134 = arith.constant dense<0.000000e+00> : vector<16x128xf32>
    %335 = tpu.matmul %333, %334, %cst_134 {dimension_numbers = #tpu.dot_dimension_numbers<[1], [0], [0], [1], [0, 0, 1, 1], [], []>} : vector<16x32xf32>, vector<32x128xf32>, vector<16x128xf32> -> vector<16x128xf32>
    %c0_135 = arith.constant 0 : index
    %c0_136 = arith.constant 0 : index
    %336 = vector.load %arg17[%c0_135, %c0_136] : memref<1x128xf32, #tpu.memory_space<vmem>>, vector<1x128xf32>
    %337 = vector.broadcast %336 : vector<1x128xf32> to vector<16x128xf32>
    %338 = arith.addf %335, %337 : vector<16x128xf32>
    %cst_137 = arith.constant 5.000000e-01 : f32
    %339 = vector.broadcast %cst_137 : f32 to vector<16x128xf32>
    %340 = arith.mulf %339, %338 : vector<16x128xf32>
    %cst_138 = arith.constant 4.471500e-02 : f32
    %341 = vector.broadcast %cst_138 : f32 to vector<16x128xf32>
    %342 = arith.mulf %341, %338 : vector<16x128xf32>
    %343 = arith.mulf %342, %338 : vector<16x128xf32>
    %344 = arith.mulf %343, %338 : vector<16x128xf32>
    %345 = arith.addf %338, %344 : vector<16x128xf32>
    %cst_139 = arith.constant 0.797884583 : f32
    %346 = vector.broadcast %cst_139 : f32 to vector<16x128xf32>
    %347 = arith.mulf %346, %345 : vector<16x128xf32>
    %348 = math.tanh %347 : vector<16x128xf32>
    %cst_140 = arith.constant 1.000000e+00 : f32
    %349 = vector.broadcast %cst_140 : f32 to vector<16x128xf32>
    %350 = arith.addf %349, %348 : vector<16x128xf32>
    %351 = arith.mulf %340, %350 : vector<16x128xf32>
    %c0_141 = arith.constant 0 : index
    %c0_142 = arith.constant 0 : index
    %352 = vector.load %arg18[%c0_141, %c0_142] : memref<128x32xf32, #tpu.memory_space<vmem>>, vector<128x32xf32>
    %cst_143 = arith.constant dense<0.000000e+00> : vector<16x32xf32>
    %353 = tpu.matmul %351, %352, %cst_143 {dimension_numbers = #tpu.dot_dimension_numbers<[1], [0], [0], [1], [0, 0, 1, 1], [], []>} : vector<16x128xf32>, vector<128x32xf32>, vector<16x32xf32> -> vector<16x32xf32>
    %c0_144 = arith.constant 0 : index
    %c0_145 = arith.constant 0 : index
    %354 = vector.load %arg19[%c0_144, %c0_145] : memref<1x32xf32, #tpu.memory_space<vmem>>, vector<1x32xf32>
    %355 = vector.broadcast %354 : vector<1x32xf32> to vector<16x32xf32>
    %356 = arith.addf %353, %355 : vector<16x32xf32>
    %357 = arith.addf %333, %356 : vector<16x32xf32>
    %c0_146 = arith.constant 0 : index
    %c0_147 = arith.constant 0 : index
    %358 = vector.load %arg20[%c0_146, %c0_147] : memref<1x32xf32, #tpu.memory_space<vmem>>, vector<1x32xf32>
    %c0_148 = arith.constant 0 : index
    %c0_149 = arith.constant 0 : index
    %359 = vector.load %arg21[%c0_148, %c0_149] : memref<1x32xf32, #tpu.memory_space<vmem>>, vector<1x32xf32>
    %cst_150 = arith.constant dense<0.000000e+00> : vector<16xf32>
    %360 = vector.multi_reduction <add>, %357, %cst_150 [1] : vector<16x32xf32> to vector<16xf32>
    %361 = vector.shape_cast %360 : vector<16xf32> to vector<16x1xf32>
    %cst_151 = arith.constant 3.200000e+01 : f32
    %362 = vector.broadcast %cst_151 : f32 to vector<16x1xf32>
    %363 = arith.divf %361, %362 : vector<16x1xf32>
    %364 = vector.broadcast %363 : vector<16x1xf32> to vector<16x32xf32>
    %365 = arith.subf %357, %364 : vector<16x32xf32>
    %366 = arith.mulf %365, %365 : vector<16x32xf32>
    %cst_152 = arith.constant dense<0.000000e+00> : vector<16xf32>
    %367 = vector.multi_reduction <add>, %366, %cst_152 [1] : vector<16x32xf32> to vector<16xf32>
    %368 = vector.shape_cast %367 : vector<16xf32> to vector<16x1xf32>
    %cst_153 = arith.constant 3.200000e+01 : f32
    %369 = vector.broadcast %cst_153 : f32 to vector<16x1xf32>
    %370 = arith.divf %368, %369 : vector<16x1xf32>
    %371 = vector.broadcast %363 : vector<16x1xf32> to vector<16x32xf32>
    %372 = arith.subf %357, %371 : vector<16x32xf32>
    %cst_154 = arith.constant 9.99999996E-13 : f32
    %373 = vector.broadcast %cst_154 : f32 to vector<16x1xf32>
    %374 = arith.addf %370, %373 : vector<16x1xf32>
    %375 = math.rsqrt %374 : vector<16x1xf32>
    %376 = vector.broadcast %375 : vector<16x1xf32> to vector<16x32xf32>
    %377 = arith.mulf %372, %376 : vector<16x32xf32>
    %378 = vector.broadcast %358 : vector<1x32xf32> to vector<16x32xf32>
    %379 = arith.mulf %377, %378 : vector<16x32xf32>
    %380 = vector.broadcast %359 : vector<1x32xf32> to vector<16x32xf32>
    %381 = arith.addf %379, %380 : vector<16x32xf32>
    %c0_155 = arith.constant 0 : index
    %c0_156 = arith.constant 0 : index
    %382 = vector.load %arg22[%c0_155, %c0_156] : memref<32x14xf32, #tpu.memory_space<vmem>>, vector<32x14xf32>
    %cst_157 = arith.constant dense<0.000000e+00> : vector<16x14xf32>
    %383 = tpu.matmul %381, %382, %cst_157 {dimension_numbers = #tpu.dot_dimension_numbers<[1], [0], [0], [1], [0, 0, 1, 1], [], []>} : vector<16x32xf32>, vector<32x14xf32>, vector<16x14xf32> -> vector<16x14xf32>
    %c0_158 = arith.constant 0 : index
    %c0_159 = arith.constant 0 : index
    %384 = vector.load %arg23[%c0_158, %c0_159] : memref<1x14xf32, #tpu.memory_space<vmem>>, vector<1x14xf32>
    %385 = vector.broadcast %384 : vector<1x14xf32> to vector<16x14xf32>
    %386 = arith.addf %383, %385 : vector<16x14xf32>
    %cst_160 = arith.constant dense<0xFF800000> : vector<16xf32>
    %387 = vector.multi_reduction <maximumf>, %386, %cst_160 [1] : vector<16x14xf32> to vector<16xf32>
    %388 = vector.shape_cast %387 : vector<16xf32> to vector<16x1xf32>
    %389 = vector.broadcast %388 : vector<16x1xf32> to vector<16x14xf32>
    %390 = arith.subf %386, %389 : vector<16x14xf32>
    %391 = math.exp %390 : vector<16x14xf32>
    %cst_161 = arith.constant dense<0.000000e+00> : vector<16xf32>
    %392 = vector.multi_reduction <add>, %391, %cst_161 [1] : vector<16x14xf32> to vector<16xf32>
    %393 = vector.shape_cast %392 : vector<16xf32> to vector<16x1xf32>
    %394 = math.log %393 : vector<16x1xf32>
    %395 = vector.broadcast %394 : vector<16x1xf32> to vector<16x14xf32>
    %396 = arith.subf %390, %395 : vector<16x14xf32>
    %397 = math.exp %396 : vector<16x14xf32>
    %c0_162 = arith.constant 0 : index
    %c0_163 = arith.constant 0 : index
    %398 = vector.load %arg24[%c0_162, %c0_163] : memref<16x14xf32, #tpu.memory_space<vmem>>, vector<16x14xf32>
    tpu.vector_store %arg24[%c0_162, %c0_163], %397 {strides = array<i32>} : memref<16x14xf32, #tpu.memory_space<vmem>>, vector<16x14xf32>,
    %c0_164 = arith.constant 0 : index
    %c0_165 = arith.constant 0 : index
    %399 = vector.load %arg3[%c0_164, %c0_165] : memref<16x1xi32, #tpu.memory_space<vmem>>, vector<16x1xi32>
    %400 = tpu.iota {dimensions = array<i32: 1>} : vector<16x14xi32>
    %401 = vector.broadcast %399 : vector<16x1xi32> to vector<16x14xi32>
    %402 = arith.cmpi eq, %401, %400 : vector<16x14xi32>
    %cst_166 = arith.constant 0.000000e+00 : f32
    %403 = vector.broadcast %cst_166 : f32 to vector<16x14xf32>
    %404 = arith.select %402, %396, %403 : vector<16x14xi1>, vector<16x14xf32>
    %cst_167 = arith.constant dense<0.000000e+00> : vector<16xf32>
    %405 = vector.multi_reduction <add>, %404, %cst_167 [1] : vector<16x14xf32> to vector<16xf32>
    %406 = vector.shape_cast %405 : vector<16xf32> to vector<16x1xf32>
    %cst_168 = arith.constant 0.000000e+00 : f32
    %407 = vector.broadcast %cst_168 : f32 to vector<16x1xf32>
    %408 = arith.subf %407, %406 : vector<16x1xf32>
    %c0_169 = arith.constant 0 : index
    %c0_170 = arith.constant 0 : index
    %409 = vector.load %arg2[%c0_169, %c0_170] : memref<16x1xf32, #tpu.memory_space<vmem>>, vector<16x1xf32>
    %410 = arith.mulf %408, %409 : vector<16x1xf32>
    %411 = vector.shape_cast %410 : vector<16x1xf32> to vector<1x16x1xf32>
    %cst_171 = arith.constant dense<0.000000e+00> : vector<1xf32>
    %412 = vector.multi_reduction <add>, %411, %cst_171 [1, 2] : vector<1x16x1xf32> to vector<1xf32>
    %413 = vector.shape_cast %412 : vector<1xf32> to vector<1x1x1xf32>
    %414 = vector.extract %413[0, 0, 0] : f32 from vector<1x1x1xf32>
    %415 = vector.shape_cast %409 : vector<16x1xf32> to vector<1x16x1xf32>
    %cst_172 = arith.constant dense<0.000000e+00> : vector<1xf32>
    %416 = vector.multi_reduction <add>, %415, %cst_172 [1, 2] : vector<1x16x1xf32> to vector<1xf32>
    %417 = vector.shape_cast %416 : vector<1xf32> to vector<1x1x1xf32>
    %418 = vector.extract %417[0, 0, 0] : f32 from vector<1x1x1xf32>
    %cst_173 = arith.constant 1.000000e+00 : f32
    %419 = arith.maximumf %418, %cst_173 : f32
    %420 = arith.divf %414, %419 : f32
    %c0_174 = arith.constant 0 : index
    %c0_175 = arith.constant 0 : index
    %421 = memref.load %arg25[%c0_174, %c0_175] : memref<1x1xf32, #tpu.memory_space<smem>>
    memref.store %420, %arg25[%c0_174, %c0_175] : memref<1x1xf32, #tpu.memory_space<smem>>
    return
  }
}

</mosaic_0001>

<llo_original>
// kernel: forward.1
$region0: #{forward.1}
  #allocation0 [shape = 'u32[]', space=smem, size = 0x4, offset = 0x4, fixed_abs, tag = 'smem constant byte address 0x4 - core index']
  #allocation1 [shape = 'u32[144,128]{1,0:T(1,128)}', space=vmem, size = 0x12000, scoped, tag = 'internal scratch']
  %s0 = inlined_call_operand.vmem [shape: f32[16,32], index: 0, kind: input, shape index: {}]
  %s1 = inlined_call_operand.vmem [shape: f32[2,8], index: 1, kind: input, shape index: {}]
  %s2 = inlined_call_operand.vmem [shape: f32[16,1], index: 2, kind: input, shape index: {}]
  %s3 = inlined_call_operand.vmem [shape: s32[16,1], index: 3, kind: input, shape index: {}]
  %s4 = inlined_call_operand.vmem [shape: f32[1,32], index: 4, kind: input, shape index: {}, may-alias: {4,14,20}]
  %s5 = inlined_call_operand.vmem [shape: f32[1,32], index: 5, kind: input, shape index: {}, may-alias: {5,7,9,11,13,15,19,21}]
  %s6 = inlined_call_operand.hbm [shape: f32[32,32], index: 6, kind: input, shape index: {}]
  %s7 = inlined_call_operand.vmem [shape: f32[1,32], index: 7, kind: input, shape index: {}, may-alias: {5,7,9,11,13,15,19,21}]
  %s8 = inlined_call_operand.hbm [shape: f32[32,32], index: 8, kind: input, shape index: {}]
  %s9 = inlined_call_operand.vmem [shape: f32[1,32], index: 9, kind: input, shape index: {}, may-alias: {5,7,9,11,13,15,19,21}]
  %s10 = inlined_call_operand.hbm [shape: f32[32,32], index: 10, kind: input, shape index: {}]
  %s11 = inlined_call_operand.vmem [shape: f32[1,32], index: 11, kind: input, shape index: {}, may-alias: {5,7,9,11,13,15,19,21}]
  %s12 = inlined_call_operand.vmem [shape: f32[32,32], index: 12, kind: input, shape index: {}]
  %s13 = inlined_call_operand.vmem [shape: f32[1,32], index: 13, kind: input, shape index: {}, may-alias: {5,7,9,11,13,15,19,21}]
  %s14 = inlined_call_operand.vmem [shape: f32[1,32], index: 14, kind: input, shape index: {}, may-alias: {4,14,20}]
  %s15 = inlined_call_operand.vmem [shape: f32[1,32], index: 15, kind: input, shape index: {}, may-alias: {5,7,9,11,13,15,19,21}]
  %s16 = inlined_call_operand.vmem [shape: f32[32,128], index: 16, kind: input, shape index: {}]
  %s17 = inlined_call_operand.vmem [shape: f32[1,128], index: 17, kind: input, shape index: {}]
  %s18 = inlined_call_operand.vmem [shape: f32[128,32], index: 18, kind: input, shape index: {}]
  %s19 = inlined_call_operand.vmem [shape: f32[1,32], index: 19, kind: input, shape index: {}, may-alias: {5,7,9,11,13,15,19,21}]
  %s20 = inlined_call_operand.vmem [shape: f32[1,32], index: 20, kind: input, shape index: {}, may-alias: {4,14,20}]
  %s21 = inlined_call_operand.vmem [shape: f32[1,32], index: 21, kind: input, shape index: {}, may-alias: {5,7,9,11,13,15,19,21}]
  %s22 = inlined_call_operand.vmem [shape: f32[32,14], index: 22, kind: input, shape index: {}]
  %s23 = inlined_call_operand.vmem [shape: f32[1,14], index: 23, kind: input, shape index: {}]
  %s24 = inlined_call_operand.hbm [shape: f32[16,14], index: 24, kind: output, shape index: {0}]
  %s25 = inlined_call_operand.hbm [shape: f32[1,1], index: 25, kind: output, shape index: {1}]
  %26 = xla_tuple %s24, %s25
  %s27 = sld [smem:[#allocation0]]
  $region126: #{forward.1} parent=0
    _
  %s29 = ssub.s32 1, %s27
  %s30 = scalar_select 0, %s29, %s27
  $region1: #{forward.1} parent=0
    #allocation2 [shape = 'u8[16384]{0}', space=vmem, size = 0x4000, scoped, tag = 'input window, operand 6, single buffered']
    #allocation3 [shape = 's32[1]{0}', space=sflag, size = 0x4, scoped, tag = 'scoped memory for forward.1']
    #allocation4 [shape = 's32[1]{0}', space=sflag, size = 0x4, scoped, tag = 'scoped memory for forward.1']
    #allocation5 [shape = 's32[1]{0}', space=sflag, size = 0x4, scoped, tag = 'scoped memory for forward.1']
    #allocation6 [shape = 'u8[16384]{0}', space=vmem, size = 0x4000, scoped, tag = 'input window, operand 8, single buffered']
    #allocation7 [shape = 's32[1]{0}', space=sflag, size = 0x4, scoped, tag = 'scoped memory for forward.1']
    #allocation8 [shape = 'u8[16384]{0}', space=vmem, size = 0x4000, scoped, tag = 'input window, operand 10, single buffered']
    #allocation9 [shape = 'u8[8192]{0}', space=vmem, size = 0x2000, scoped, tag = 'output window, operand 0, single buffered']
    #allocation10 [shape = 'u8[512]{0}', space=smem, size = 0x200, scoped, tag = 'output window, operand 1, single buffered']
    %31 = vsyncpa [#allocation3], 0
    %32 = vsyncpa [#allocation7], 0
    %33 = vsyncpa [#allocation4], 0
    %34 = vsyncpa [#allocation5], 0
    // Predicated region
    $region2: #{forward.1} parent=1 // pred_check
      _
    $region3: #{forward.1} parent=1 // pred_check_branch
      %36 = sbr.rel (0) target = $region5
    $region4: #{forward.1} parent=1 // pred_region
      _
    $region5: #{forward.1} parent=1 // pred_fallthru
      _
    // Predicated region
    $region6: #{forward.1} parent=1 // pred_check
      _
    $region7: #{forward.1} parent=1 // pred_check_branch
      %38 = sbr.rel (0) target = $region9
    $region8: #{forward.1} parent=1 // pred_region
      _
    $region9: #{forward.1} parent=1 // pred_fallthru
      _
    // Predicated region
    $region10: #{forward.1} parent=1 // pred_check
      _
    $region11: #{forward.1} parent=1 // pred_check_branch
      %40 = sbr.rel (0) target = $region13
    $region12: #{forward.1} parent=1 // pred_region
      _
    $region13: #{forward.1} parent=1 // pred_fallthru
      _
    // Predicated region
    $region14: #{forward.1} parent=1 // pred_check
      _
    $region15: #{forward.1} parent=1 // pred_check_branch
      %42 = sbr.rel (0) target = $region17
    $region16: #{forward.1} parent=1 // pred_region
      _
    $region17: #{forward.1} parent=1 // pred_fallthru
      _
    // Predicated region
    $region18: #{forward.1} parent=1 // pred_check
      _
    $region19: #{forward.1} parent=1 // pred_check_branch
      %44 = sbr.rel (0) target = $region21
    $region20: #{forward.1} parent=1 // pred_region
      _
    $region21: #{forward.1} parent=1 // pred_fallthru
      _
    // Predicated region
    $region22: #{forward.1} parent=1 // pred_check
      _
    $region23: #{forward.1} parent=1 // pred_check_branch
      %46 = sbr.rel (0) target = $region25
    $region24: #{forward.1} parent=1 // pred_region
      _
    $region25: #{forward.1} parent=1 // pred_fallthru
      _
    // Predicated region
    $region26: #{forward.1} parent=1 // pred_check
      _
    $region27: #{forward.1} parent=1 // pred_check_branch
      %48 = sbr.rel (0) target = $region29
    $region28: #{forward.1} parent=1 // pred_region
      %s50 = ssub.s32 512, 512
      %51 = vsyncadd [#allocation3], %s50
      %s52 = sshll.u32 [#allocation2], 4
      %s53 = int_to_ptr.vmem [resolvable:$true] %s52
      %58 = dma.hbm_to_vmem [thread:$0]  %s6, 512, %s53, [#allocation3], 128, 128, 8
    $region29: #{forward.1} parent=1 // pred_fallthru
      _
    // Predicated region
    $region30: #{forward.1} parent=1 // pred_check
      _
    $region31: #{forward.1} parent=1 // pred_check_branch
      %60 = sbr.rel (0) target = $region33
    $region32: #{forward.1} parent=1 // pred_region
      _
    $region33: #{forward.1} parent=1 // pred_fallthru
      _
    // Predicated region
    $region34: #{forward.1} parent=1 // pred_check
      _
    $region35: #{forward.1} parent=1 // pred_check_branch
      %62 = sbr.rel (0) target = $region37
    $region36: #{forward.1} parent=1 // pred_region
      %s64 = ssub.s32 512, 512
      %65 = vsyncadd [#allocation7], %s64
      %s66 = sshll.u32 [#allocation6], 4
      %s67 = int_to_ptr.vmem [resolvable:$true] %s66
      %72 = dma.hbm_to_vmem [thread:$0]  %s8, 512, %s67, [#allocation7], 128, 128, 8
    $region37: #{forward.1} parent=1 // pred_fallthru
      _
    // Predicated region
    $region38: #{forward.1} parent=1 // pred_check
      _
    $region39: #{forward.1} parent=1 // pred_check_branch
      %74 = sbr.rel (0) target = $region41
    $region40: #{forward.1} parent=1 // pred_region
      _
    $region41: #{forward.1} parent=1 // pred_fallthru
      _
    // Predicated region
    $region42: #{forward.1} parent=1 // pred_check
      _
    $region43: #{forward.1} parent=1 // pred_check_branch
      %76 = sbr.rel (0) target = $region45
    $region44: #{forward.1} parent=1 // pred_region
      %s78 = ssub.s32 512, 512
      %79 = vsyncadd [#allocation7], %s78
      %s80 = sshll.u32 [#allocation8], 4
      %s81 = int_to_ptr.vmem [resolvable:$true] %s80
      %86 = dma.hbm_to_vmem [thread:$0]  %s10, 512, %s81, [#allocation7], 128, 128, 8
    $region45: #{forward.1} parent=1 // pred_fallthru
      _
    // Predicated region
    $region46: #{forward.1} parent=1 // pred_check
      _
    $region47: #{forward.1} parent=1 // pred_check_branch
      %88 = sbr.rel (0) target = $region49
    $region48: #{forward.1} parent=1 // pred_region
      _
    $region49: #{forward.1} parent=1 // pred_fallthru
      _
    // Predicated region
    $region50: #{forward.1} parent=1 // pred_check
      _
    $region51: #{forward.1} parent=1 // pred_check_branch
      %90 = sbr.rel (0) target = $region53
    $region52: #{forward.1} parent=1 // pred_region
      _
    $region53: #{forward.1} parent=1 // pred_fallthru
      _
    // Predicated region
    $region54: #{forward.1} parent=1 // pred_check
      _
    $region55: #{forward.1} parent=1 // pred_check_branch
      %92 = sbr.rel (0) target = $region57
    $region56: #{forward.1} parent=1 // pred_region
      _
    $region57: #{forward.1} parent=1 // pred_fallthru
      _
    // Predicated region
    $region58: #{forward.1} parent=1 // pred_check
      _
    $region59: #{forward.1} parent=1 // pred_check_branch
      %94 = sbr.rel (0) target = $region61
    $region60: #{forward.1} parent=1 // pred_region
      _
    $region61: #{forward.1} parent=1 // pred_fallthru
      _
    // Predicated region
    $region62: #{forward.1} parent=1 // pred_check
      _
    $region63: #{forward.1} parent=1 // pred_check_branch
      %96 = sbr.rel (0) target = $region65
    $region64: #{forward.1} parent=1 // pred_region
      _
    $region65: #{forward.1} parent=1 // pred_fallthru
      _
    // Predicated region
    $region66: #{forward.1} parent=1 // pred_check
      _
    $region67: #{forward.1} parent=1 // pred_check_branch
      %98 = sbr.rel (0) target = $region69
    $region68: #{forward.1} parent=1 // pred_region
      _
    $region69: #{forward.1} parent=1 // pred_fallthru
      _
    // Predicated region
    $region70: #{forward.1} parent=1 // pred_check
      _
    $region71: #{forward.1} parent=1 // pred_check_branch
      %100 = sbr.rel (0) target = $region73
    $region72: #{forward.1} parent=1 // pred_region
      _
    $region73: #{forward.1} parent=1 // pred_fallthru
      _
    // Predicated region
    $region74: #{forward.1} parent=1 // pred_check
      _
    $region75: #{forward.1} parent=1 // pred_check_branch
      %102 = sbr.rel (0) target = $region77
    $region76: #{forward.1} parent=1 // pred_region
      _
    $region77: #{forward.1} parent=1 // pred_fallthru
      _
    // Predicated region
    $region78: #{forward.1} parent=1 // pred_check
      _
    $region79: #{forward.1} parent=1 // pred_check_branch
      %104 = sbr.rel (0) target = $region81
    $region80: #{forward.1} parent=1 // pred_region
      _
    $region81: #{forward.1} parent=1 // pred_fallthru
      _
    // Predicated region
    $region82: #{forward.1} parent=1 // pred_check
      _
    $region83: #{forward.1} parent=1 // pred_check_branch
      %106 = sbr.rel (0) target = $region85
    $region84: #{forward.1} parent=1 // pred_region
      _
    $region85: #{forward.1} parent=1 // pred_fallthru
      _
    // Predicated region
    $region86: #{forward.1} parent=1 // pred_check
      _
    $region87: #{forward.1} parent=1 // pred_check_branch
      %108 = sbr.rel (0) target = $region89
    $region88: #{forward.1} parent=1 // pred_region
      _
    $region89: #{forward.1} parent=1 // pred_fallthru
      _
    // Predicated region
    $region90: #{forward.1} parent=1 // pred_check
      _
    $region91: #{forward.1} parent=1 // pred_check_branch
      %110 = sbr.rel (0) target = $region93
    $region92: #{forward.1} parent=1 // pred_region
      _
    $region93: #{forward.1} parent=1 // pred_fallthru
      _
    // Predicated region
    $region94: #{forward.1} parent=1 // pred_check
      _
    $region95: #{forward.1} parent=1 // pred_check_branch
      %112 = sbr.rel (0) target = $region97
    $region96: #{forward.1} parent=1 // pred_region
      _
    $region97: #{forward.1} parent=1 // pred_fallthru
      _
    // Predicated region
    $region98: #{forward.1} parent=1 // pred_check
      _
    $region99: #{forward.1} parent=1 // pred_check_branch
      %114 = sbr.rel (0) target = $region101
    $region100: #{forward.1} parent=1 // pred_region
      %115 = dma.done [#allocation3], 512
    $region101: #{forward.1} parent=1 // pred_fallthru
      _
    // Predicated region
    $region102: #{forward.1} parent=1 // pred_check
      _
    $region103: #{forward.1} parent=1 // pred_check_branch
      %117 = sbr.rel (0) target = $region105
    $region104: #{forward.1} parent=1 // pred_region
      %118 = dma.done [#allocation7], 512
    $region105: #{forward.1} parent=1 // pred_fallthru
      _
    // Predicated region
    $region106: #{forward.1} parent=1 // pred_check
      _
    $region107: #{forward.1} parent=1 // pred_check_branch
      %120 = sbr.rel (0) target = $region109
    $region108: #{forward.1} parent=1 // pred_region
      %121 = dma.done [#allocation7], 512
    $region109: #{forward.1} parent=1 // pred_fallthru
      _
    %v122 = vld [vmem:[%s0] sm:$0xff]
    %v123 = vld [vmem:[%s0 + $0x8] sm:$0xff]
    %v124 = vld [vmem:[%s4] sm:$0x1]
    %v125 = vld [vmem:[%s5] sm:$0x1]
    %vm126 = vcmask 261120
    %v127 = vsel %vm126, %v122, 0.0
    %128 = vadd.xlane.f32.xlu0 %v127
    %v129 = vpop.xlane.xlu0 %128
    %v130 = vsel %vm126, %v123, 0.0
    %131 = vadd.xlane.f32.xlu0 %v130
    %v132 = vpop.xlane.xlu0 %131
    %v133 = vrcp.pop 32.0
    %v134 = vmul.f32 %v129, %v133
    %v135 = vmul.f32 %v132, %v133
    %v136 = vsub.f32 %v122, %v134
    %v137 = vsub.f32 %v123, %v135
    %v138 = vmul.f32 %v136, %v136
    %v139 = vmul.f32 %v137, %v137
    %v140 = vsel %vm126, %v138, 0.0
    %141 = vadd.xlane.f32.xlu0 %v140
    %v142 = vpop.xlane.xlu0 %141
    %v143 = vsel %vm126, %v139, 0.0
    %144 = vadd.xlane.f32.xlu0 %v143
    %v145 = vpop.xlane.xlu0 %144
    %v146 = vmul.f32 %v142, %v133
    %v147 = vmul.f32 %v145, %v133
    %v148 = vadd.f32 %v146, 1e-12
    %v149 = vadd.f32 %v147, 1e-12
    %v150 = vrsqrt.pop %v148
    %v151 = vrsqrt.pop %v149
    %v152 = vmul.f32 %v136, %v150
    %v153 = vmul.f32 %v137, %v151
    %v155 = vlaneseq
    %v156 = vshrl.u32 %v155, 7
    %v157 = vsub.s32 0, %v156
    %v158 = vrot.slane %v124, %v157
    %v160 = vmul.f32 %v152, %v158
    %v161 = vmul.f32 %v153, %v158
    %v163 = vlaneseq
    %v164 = vshrl.u32 %v163, 7
    %v165 = vsub.s32 0, %v164
    %v166 = vrot.slane %v125, %v165
    %v168 = vadd.f32 %v160, %v166
    %v169 = vadd.f32 %v161, %v166
    %v170 = vld [vmem:[%s1] sm:$0x3]
    %v171 = vsub.f32 1.0, %v170
    %v172 = vmul.f32 %v171, -1e+09
    %v175 = vunpack.c.l.s4 1966171168
    %v176 = vunpack.c.0.s8 %v175
    %v177 = vlaneseq
    %v178 = vshrl.u32 %v177, 7
    %v179 = vsub.s32 %v176, %v178
    %v180 = vrot.slane %v172, %v179
    %v181 = vcombine.high %v180, %v180
    %v183 = vunpack.c.l.s4 1966171168
    %v184 = vunpack.c.0.s8 %v183
    %v185 = vlaneseq
    %v186 = vshrl.u32 %v185, 7
    %v187 = vsub.s32 %v184, %v186
    %v188 = vrot.slane %v180, %v187
    %v190 = vunpack.c.l.s4 1966171168
    %v191 = vunpack.c.0.s8 %v190
    %v192 = vlaneseq
    %v193 = vshrl.u32 %v192, 7
    %v194 = vsub.s32 %v191, %v193
    %v195 = vrot.slane %v181, %v194
    %v196 = vld [vmem:[%s12] sm:$0xff]
    %v197 = vld [vmem:[%s12 + $0x8] sm:$0xff]
    %v198 = vld [vmem:[%s12 + $0x10] sm:$0xff]
    %v199 = vld [vmem:[%s12 + $0x18] sm:$0xff]
    %v200 = vld [vmem:[#allocation2] sm:$0xff]
    %v201 = vld [vmem:[#allocation2 + $0x8] sm:$0xff]
    %v202 = vld [vmem:[#allocation2 + $0x10] sm:$0xff]
    %v203 = vld [vmem:[#allocation2 + $0x18] sm:$0xff]
    %v204 = vld [vmem:[%s7] sm:$0x1]
    %v206 = vlaneseq
    %v207 = vshrl.u32 %v206, 7
    %v208 = vsub.s32 0, %v207
    %v209 = vrot.slane %v204, %v208
    %v212 = vsel %vm126, %v168, 0
    %v215 = vsel %vm126, %v169, 0
    %217 = vmatprep.subr.mxu0 0.0
    %218 = vmatpush1.msra.mxu0 %v200
    %219 = vmatprep.subr.mxu0 0.0
    %220 = vmatpush1.msra.mxu0 %v201
    %221 = vmatprep.subr.mxu0 0.0
    %222 = vmatpush1.msra.mxu0 %v202
    %223 = vmatprep.subr.mxu0 0.0
    %224 = vmatpush1.msra.mxu0 %v203
    %225 = vmatprep.subr.mxu0 0.0
    %226 = vmatpush1.msra.mxu0 0.0
    %227 = vmatprep.subr.mxu0 0.0
    %228 = vmatpush1.msra.mxu0 0.0
    %229 = vmatprep.subr.mxu0 0.0
    %230 = vmatpush1.msra.mxu0 0.0
    %231 = vmatprep.subr.mxu0 0.0
    %232 = vmatpush1.msra.mxu0 0.0
    %233 = vmatprep.subr.mxu0 0.0
    %234 = vmatpush1.msra.mxu0 0.0
    %235 = vmatprep.subr.mxu0 0.0
    %236 = vmatpush1.msra.mxu0 0.0
    %237 = vmatprep.subr.mxu0 0.0
    %238 = vmatpush1.msra.mxu0 0.0
    %239 = vmatprep.subr.mxu0 0.0
    %240 = vmatpush1.msra.mxu0 0.0
    %241 = vmatprep.subr.mxu0 0.0
    %242 = vmatpush1.msra.mxu0 0.0
    %243 = vmatprep.subr.mxu0 0.0
    %244 = vmatpush1.msra.mxu0 0.0
    %245 = vmatprep.subr.mxu0 0.0
    %246 = vmatpush1.msra.mxu0 0.0
    %247 = vmatprep.subr.mxu0 0.0
    %248 = vmatpush1.msra.mxu0 0.0
    %249 = vmatprep.subr.mxu0 0.0
    %250 = vmatpush1.msra.mxu0 0.0
    %251 = vmatprep.subr.mxu0 0.0
    %252 = vmatpush1.msra.mxu0 0.0
    %253 = vmatprep.subr.mxu0 0.0
    %254 = vmatpush1.msra.mxu0 0.0
    %255 = vmatprep.subr.mxu0 0.0
    %256 = vmatpush1.msra.mxu0 0.0
    %257 = vmatprep.subr.mxu0 0.0
    %258 = vmatpush1.msra.mxu0 0.0
    %259 = vmatprep.subr.mxu0 0.0
    %260 = vmatpush1.msra.mxu0 0.0
    %261 = vmatprep.subr.mxu0 0.0
    %262 = vmatpush1.msra.mxu0 0.0
    %263 = vmatprep.subr.mxu0 0.0
    %264 = vmatpush1.msra.mxu0 0.0
    %265 = vmatprep.subr.mxu0 0.0
    %266 = vmatpush1.msra.mxu0 0.0
    %267 = vmatprep.subr.mxu0 0.0
    %268 = vmatpush1.msra.mxu0 0.0
    %269 = vmatprep.subr.mxu0 0.0
    %270 = vmatpush1.msra.mxu0 0.0
    %271 = vmatprep.subr.mxu0 0.0
    %272 = vmatpush1.msra.mxu0 0.0
    %273 = vmatprep.subr.mxu0 0.0
    %274 = vmatpush1.msra.mxu0 0.0
    %275 = vmatprep.subr.mxu0 0.0
    %276 = vmatpush1.msra.mxu0 0.0
    %277 = vmatprep.subr.mxu0 0.0
    %278 = vmatpush1.msra.mxu0 0.0
    %279 = vmatprep.subr.mxu0 0.0
    %280 = vmatpush1.msra.mxu0 0.0
    %281 = vmatprep.mubr.f32.mxu0 0.0
    %282 = vmatmul.mubr.f32.gmra.mrb[0].mxu0 %v212
    %v283 = vpop.f32.mrb[0].mxu0
    %v284 = vadd.f32 %v209, %v283
    %v285 = vpop.f32.mrb[0].mxu0
    %286 = vmatprep.mubr.f32.mxu0 0.0
    %287 = vmatmul.mubr.f32.gmra.mrb[0].mxu0 %v215
    %v288 = vpop.f32.mrb[0].mxu0
    %v289 = vadd.f32 %v209, %v288
    %v290 = vpop.f32.mrb[0].mxu0
    %291 = vdwg.mxu0
    %v292 = vmul.f32 %v284, 0.35355338
    %v293 = vmul.f32 %v289, 0.35355338
    %v294 = vld [vmem:[#allocation6] sm:$0xff]
    %v295 = vld [vmem:[#allocation6 + $0x8] sm:$0xff]
    %v296 = vld [vmem:[#allocation6 + $0x10] sm:$0xff]
    %v297 = vld [vmem:[#allocation6 + $0x18] sm:$0xff]
    %v298 = vld [vmem:[%s9] sm:$0x1]
    %v300 = vlaneseq
    %v301 = vshrl.u32 %v300, 7
    %v302 = vsub.s32 0, %v301
    %v303 = vrot.slane %v298, %v302
    %305 = vmatprep.subr.mxu0 0.0
    %306 = vmatpush1.msra.mxu0 %v294
    %307 = vmatprep.subr.mxu0 0.0
    %308 = vmatpush1.msra.mxu0 %v295
    %309 = vmatprep.subr.mxu0 0.0
    %310 = vmatpush1.msra.mxu0 %v296
    %311 = vmatprep.subr.mxu0 0.0
    %312 = vmatpush1.msra.mxu0 %v297
    %313 = vmatprep.subr.mxu0 0.0
    %314 = vmatpush1.msra.mxu0 0.0
    %315 = vmatprep.subr.mxu0 0.0
    %316 = vmatpush1.msra.mxu0 0.0
    %317 = vmatprep.subr.mxu0 0.0
    %318 = vmatpush1.msra.mxu0 0.0
    %319 = vmatprep.subr.mxu0 0.0
    %320 = vmatpush1.msra.mxu0 0.0
    %321 = vmatprep.subr.mxu0 0.0
    %322 = vmatpush1.msra.mxu0 0.0
    %323 = vmatprep.subr.mxu0 0.0
    %324 = vmatpush1.msra.mxu0 0.0
    %325 = vmatprep.subr.mxu0 0.0
    %326 = vmatpush1.msra.mxu0 0.0
    %327 = vmatprep.subr.mxu0 0.0
    %328 = vmatpush1.msra.mxu0 0.0
    %329 = vmatprep.subr.mxu0 0.0
    %330 = vmatpush1.msra.mxu0 0.0
    %331 = vmatprep.subr.mxu0 0.0
    %332 = vmatpush1.msra.mxu0 0.0
    %333 = vmatprep.subr.mxu0 0.0
    %334 = vmatpush1.msra.mxu0 0.0
    %335 = vmatprep.subr.mxu0 0.0
    %336 = vmatpush1.msra.mxu0 0.0
    %337 = vmatprep.subr.mxu0 0.0
    %338 = vmatpush1.msra.mxu0 0.0
    %339 = vmatprep.subr.mxu0 0.0
    %340 = vmatpush1.msra.mxu0 0.0
    %341 = vmatprep.subr.mxu0 0.0
    %342 = vmatpush1.msra.mxu0 0.0
    %343 = vmatprep.subr.mxu0 0.0
    %344 = vmatpush1.msra.mxu0 0.0
    %345 = vmatprep.subr.mxu0 0.0
    %346 = vmatpush1.msra.mxu0 0.0
    %347 = vmatprep.subr.mxu0 0.0
    %348 = vmatpush1.msra.mxu0 0.0
    %349 = vmatprep.subr.mxu0 0.0
    %350 = vmatpush1.msra.mxu0 0.0
    %351 = vmatprep.subr.mxu0 0.0
    %352 = vmatpush1.msra.mxu0 0.0
    %353 = vmatprep.subr.mxu0 0.0
    %354 = vmatpush1.msra.mxu0 0.0
    %355 = vmatprep.subr.mxu0 0.0
    %356 = vmatpush1.msra.mxu0 0.0
    %357 = vmatprep.subr.mxu0 0.0
    %358 = vmatpush1.msra.mxu0 0.0
    %359 = vmatprep.subr.mxu0 0.0
    %360 = vmatpush1.msra.mxu0 0.0
    %361 = vmatprep.subr.mxu0 0.0
    %362 = vmatpush1.msra.mxu0 0.0
    %363 = vmatprep.subr.mxu0 0.0
    %364 = vmatpush1.msra.mxu0 0.0
    %365 = vmatprep.subr.mxu0 0.0
    %366 = vmatpush1.msra.mxu0 0.0
    %367 = vmatprep.subr.mxu0 0.0
    %368 = vmatpush1.msra.mxu0 0.0
    %369 = vmatprep.mubr.f32.mxu0 0.0
    %370 = vmatmul.mubr.f32.gmra.mrb[0].mxu0 %v212
    %v371 = vpop.f32.mrb[0].mxu0
    %v372 = vadd.f32 %v303, %v371
    %v373 = vpop.f32.mrb[0].mxu0
    %374 = vmatprep.mubr.f32.mxu0 0.0
    %375 = vmatmul.mubr.f32.gmra.mrb[0].mxu0 %v215
    %v376 = vpop.f32.mrb[0].mxu0
    %v377 = vadd.f32 %v303, %v376
    %v378 = vpop.f32.mrb[0].mxu0
    %379 = vdwg.mxu0
    %v380 = vld [vmem:[#allocation8] sm:$0xff]
    %v381 = vld [vmem:[#allocation8 + $0x8] sm:$0xff]
    %v382 = vld [vmem:[#allocation8 + $0x10] sm:$0xff]
    %v383 = vld [vmem:[#allocation8 + $0x18] sm:$0xff]
    %v384 = vld [vmem:[%s11] sm:$0x1]
    %v386 = vlaneseq
    %v387 = vshrl.u32 %v386, 7
    %v388 = vsub.s32 0, %v387
    %v389 = vrot.slane %v384, %v388
    %391 = vmatprep.subr.mxu0 0.0
    %392 = vmatpush1.msra.mxu0 %v380
    %393 = vmatprep.subr.mxu0 0.0
    %394 = vmatpush1.msra.mxu0 %v381
    %395 = vmatprep.subr.mxu0 0.0
    %396 = vmatpush1.msra.mxu0 %v382
    %397 = vmatprep.subr.mxu0 0.0
    %398 = vmatpush1.msra.mxu0 %v383
    %399 = vmatprep.subr.mxu0 0.0
    %400 = vmatpush1.msra.mxu0 0.0
    %401 = vmatprep.subr.mxu0 0.0
    %402 = vmatpush1.msra.mxu0 0.0
    %403 = vmatprep.subr.mxu0 0.0
    %404 = vmatpush1.msra.mxu0 0.0
    %405 = vmatprep.subr.mxu0 0.0
    %406 = vmatpush1.msra.mxu0 0.0
    %407 = vmatprep.subr.mxu0 0.0
    %408 = vmatpush1.msra.mxu0 0.0
    %409 = vmatprep.subr.mxu0 0.0
    %410 = vmatpush1.msra.mxu0 0.0
    %411 = vmatprep.subr.mxu0 0.0
    %412 = vmatpush1.msra.mxu0 0.0
    %413 = vmatprep.subr.mxu0 0.0
    %414 = vmatpush1.msra.mxu0 0.0
    %415 = vmatprep.subr.mxu0 0.0
    %416 = vmatpush1.msra.mxu0 0.0
    %417 = vmatprep.subr.mxu0 0.0
    %418 = vmatpush1.msra.mxu0 0.0
    %419 = vmatprep.subr.mxu0 0.0
    %420 = vmatpush1.msra.mxu0 0.0
    %421 = vmatprep.subr.mxu0 0.0
    %422 = vmatpush1.msra.mxu0 0.0
    %423 = vmatprep.subr.mxu0 0.0
    %424 = vmatpush1.msra.mxu0 0.0
    %425 = vmatprep.subr.mxu0 0.0
    %426 = vmatpush1.msra.mxu0 0.0
    %427 = vmatprep.subr.mxu0 0.0
    %428 = vmatpush1.msra.mxu0 0.0
    %429 = vmatprep.subr.mxu0 0.0
    %430 = vmatpush1.msra.mxu0 0.0
    %431 = vmatprep.subr.mxu0 0.0
    %432 = vmatpush1.msra.mxu0 0.0
    %433 = vmatprep.subr.mxu0 0.0
    %434 = vmatpush1.msra.mxu0 0.0
    %435 = vmatprep.subr.mxu0 0.0
    %436 = vmatpush1.msra.mxu0 0.0
    %437 = vmatprep.subr.mxu0 0.0
    %438 = vmatpush1.msra.mxu0 0.0
    %439 = vmatprep.subr.mxu0 0.0
    %440 = vmatpush1.msra.mxu0 0.0
    %441 = vmatprep.subr.mxu0 0.0
    %442 = vmatpush1.msra.mxu0 0.0
    %443 = vmatprep.subr.mxu0 0.0
    %444 = vmatpush1.msra.mxu0 0.0
    %445 = vmatprep.subr.mxu0 0.0
    %446 = vmatpush1.msra.mxu0 0.0
    %447 = vmatprep.subr.mxu0 0.0
    %448 = vmatpush1.msra.mxu0 0.0
    %449 = vmatprep.subr.mxu0 0.0
    %450 = vmatpush1.msra.mxu0 0.0
    %451 = vmatprep.subr.mxu0 0.0
    %452 = vmatpush1.msra.mxu0 0.0
    %453 = vmatprep.subr.mxu0 0.0
    %454 = vmatpush1.msra.mxu0 0.0
    %455 = vmatprep.mubr.f32.mxu0 0.0
    %456 = vmatmul.mubr.f32.gmra.mrb[0].mxu0 %v212
    %v457 = vpop.f32.mrb[0].mxu0
    %v458 = vadd.f32 %v389, %v457
    %v459 = vpop.f32.mrb[0].mxu0
    %460 = vmatprep.mubr.f32.mxu0 0.0
    %461 = vmatmul.mubr.f32.gmra.mrb[0].mxu0 %v215
    %v462 = vpop.f32.mrb[0].mxu0
    %v463 = vadd.f32 %v389, %v462
    %v464 = vpop.f32.mrb[0].mxu0
    %465 = vdwg.mxu0
    %v466 = vld [vmem:[%s13] sm:$0x1]
    %v467 = vlaneseq
    %v468 = vshrl.u32 %v467, 7
    %v469 = vsub.s32 0, %v468
    %v470 = vrot.slane %v188, %v469
    %v471 = vlaneseq
    %v472 = vshrl.u32 %v471, 7
    %v473 = vsub.s32 0, %v472
    %v474 = vrot.slane %v195, %v473
    %vm477 = vcmask 64512
    %v479 = vsel %vm477, %v292, 0
    %v482 = vsel %vm477, %v372, 0
    %484 = vmatprep.subr.mxu0 0.0
    %485 = vmatpush1.xpose.msra.mxu0 %v482
    %486 = vmatprep.subr.mxu0 0.0
    %487 = vmatpush1.xpose.msra.mxu0 0.0
    %488 = vmatprep.subr.mxu0 0.0
    %489 = vmatpush1.xpose.msra.mxu0 0.0
    %490 = vmatprep.subr.mxu0 0.0
    %491 = vmatpush1.xpose.msra.mxu0 0.0
    %492 = vmatprep.subr.mxu0 0.0
    %493 = vmatpush1.xpose.msra.mxu0 0.0
    %494 = vmatprep.subr.mxu0 0.0
    %495 = vmatpush1.xpose.msra.mxu0 0.0
    %496 = vmatprep.subr.mxu0 0.0
    %497 = vmatpush1.xpose.msra.mxu0 0.0
    %498 = vmatprep.subr.mxu0 0.0
    %499 = vmatpush1.xpose.msra.mxu0 0.0
    %500 = vmatprep.subr.mxu0 0.0
    %501 = vmatpush1.xpose.msra.mxu0 0.0
    %502 = vmatprep.subr.mxu0 0.0
    %503 = vmatpush1.xpose.msra.mxu0 0.0
    %504 = vmatprep.subr.mxu0 0.0
    %505 = vmatpush1.xpose.msra.mxu0 0.0
    %506 = vmatprep.subr.mxu0 0.0
    %507 = vmatpush1.xpose.msra.mxu0 0.0
    %508 = vmatprep.subr.mxu0 0.0
    %509 = vmatpush1.xpose.msra.mxu0 0.0
    %510 = vmatprep.subr.mxu0 0.0
    %511 = vmatpush1.xpose.msra.mxu0 0.0
    %512 = vmatprep.subr.mxu0 0.0
    %513 = vmatpush1.xpose.msra.mxu0 0.0
    %514 = vmatprep.subr.mxu0 0.0
    %515 = vmatpush1.xpose.msra.mxu0 0.0
    %516 = vmatprep.subr.mxu0 0.0
    %517 = vmatpush1.xpose.msra.mxu0 0.0
    %518 = vmatprep.subr.mxu0 0.0
    %519 = vmatpush1.xpose.msra.mxu0 0.0
    %520 = vmatprep.subr.mxu0 0.0
    %521 = vmatpush1.xpose.msra.mxu0 0.0
    %522 = vmatprep.subr.mxu0 0.0
    %523 = vmatpush1.xpose.msra.mxu0 0.0
    %524 = vmatprep.subr.mxu0 0.0
    %525 = vmatpush1.xpose.msra.mxu0 0.0
    %526 = vmatprep.subr.mxu0 0.0
    %527 = vmatpush1.xpose.msra.mxu0 0.0
    %528 = vmatprep.subr.mxu0 0.0
    %529 = vmatpush1.xpose.msra.mxu0 0.0
    %530 = vmatprep.subr.mxu0 0.0
    %531 = vmatpush1.xpose.msra.mxu0 0.0
    %532 = vmatprep.subr.mxu0 0.0
    %533 = vmatpush1.xpose.msra.mxu0 0.0
    %534 = vmatprep.subr.mxu0 0.0
    %535 = vmatpush1.xpose.msra.mxu0 0.0
    %536 = vmatprep.subr.mxu0 0.0
    %537 = vmatpush1.xpose.msra.mxu0 0.0
    %538 = vmatprep.subr.mxu0 0.0
    %539 = vmatpush1.xpose.msra.mxu0 0.0
    %540 = vmatprep.subr.mxu0 0.0
    %541 = vmatpush1.xpose.msra.mxu0 0.0
    %542 = vmatprep.subr.mxu0 0.0
    %543 = vmatpush1.xpose.msra.mxu0 0.0
    %544 = vmatprep.subr.mxu0 0.0
    %545 = vmatpush1.xpose.msra.mxu0 0.0
    %546 = vmatprep.subr.mxu0 0.0
    %547 = vmatpush1.xpose.msra.mxu0 0.0
    %548 = vmatprep.mubr.f32.mxu0 0.0
    %549 = vmatmul.mubr.f32.gmra.mrb[0].mxu0 %v479
    %v550 = vpop.f32.mrb[0].mxu0
    %v551 = vadd.f32 %v470, %v550
    %v552 = vpop.f32.mrb[0].mxu0
    %553 = vdwg.mxu0
    %v555 = vsel %vm477, %v293, 0
    %v558 = vsel %vm477, %v377, 0
    %560 = vmatprep.subr.mxu0 0.0
    %561 = vmatpush1.xpose.msra.mxu0 %v558
    %562 = vmatprep.subr.mxu0 0.0
    %563 = vmatpush1.xpose.msra.mxu0 0.0
    %564 = vmatprep.subr.mxu0 0.0
    %565 = vmatpush1.xpose.msra.mxu0 0.0
    %566 = vmatprep.subr.mxu0 0.0
    %567 = vmatpush1.xpose.msra.mxu0 0.0
    %568 = vmatprep.subr.mxu0 0.0
    %569 = vmatpush1.xpose.msra.mxu0 0.0
    %570 = vmatprep.subr.mxu0 0.0
    %571 = vmatpush1.xpose.msra.mxu0 0.0
    %572 = vmatprep.subr.mxu0 0.0
    %573 = vmatpush1.xpose.msra.mxu0 0.0
    %574 = vmatprep.subr.mxu0 0.0
    %575 = vmatpush1.xpose.msra.mxu0 0.0
    %576 = vmatprep.subr.mxu0 0.0
    %577 = vmatpush1.xpose.msra.mxu0 0.0
    %578 = vmatprep.subr.mxu0 0.0
    %579 = vmatpush1.xpose.msra.mxu0 0.0
    %580 = vmatprep.subr.mxu0 0.0
    %581 = vmatpush1.xpose.msra.mxu0 0.0
    %582 = vmatprep.subr.mxu0 0.0
    %583 = vmatpush1.xpose.msra.mxu0 0.0
    %584 = vmatprep.subr.mxu0 0.0
    %585 = vmatpush1.xpose.msra.mxu0 0.0
    %586 = vmatprep.subr.mxu0 0.0
    %587 = vmatpush1.xpose.msra.mxu0 0.0
    %588 = vmatprep.subr.mxu0 0.0
    %589 = vmatpush1.xpose.msra.mxu0 0.0
    %590 = vmatprep.subr.mxu0 0.0
    %591 = vmatpush1.xpose.msra.mxu0 0.0
    %592 = vmatprep.subr.mxu0 0.0
    %593 = vmatpush1.xpose.msra.mxu0 0.0
    %594 = vmatprep.subr.mxu0 0.0
    %595 = vmatpush1.xpose.msra.mxu0 0.0
    %596 = vmatprep.subr.mxu0 0.0
    %597 = vmatpush1.xpose.msra.mxu0 0.0
    %598 = vmatprep.subr.mxu0 0.0
    %599 = vmatpush1.xpose.msra.mxu0 0.0
    %600 = vmatprep.subr.mxu0 0.0
    %601 = vmatpush1.xpose.msra.mxu0 0.0
    %602 = vmatprep.subr.mxu0 0.0
    %603 = vmatpush1.xpose.msra.mxu0 0.0
    %604 = vmatprep.subr.mxu0 0.0
    %605 = vmatpush1.xpose.msra.mxu0 0.0
    %606 = vmatprep.subr.mxu0 0.0
    %607 = vmatpush1.xpose.msra.mxu0 0.0
    %608 = vmatprep.subr.mxu0 0.0
    %609 = vmatpush1.xpose.msra.mxu0 0.0
    %610 = vmatprep.subr.mxu0 0.0
    %611 = vmatpush1.xpose.msra.mxu0 0.0
    %612 = vmatprep.subr.mxu0 0.0
    %613 = vmatpush1.xpose.msra.mxu0 0.0
    %614 = vmatprep.subr.mxu0 0.0
    %615 = vmatpush1.xpose.msra.mxu0 0.0
    %616 = vmatprep.subr.mxu0 0.0
    %617 = vmatpush1.xpose.msra.mxu0 0.0
    %618 = vmatprep.subr.mxu0 0.0
    %619 = vmatpush1.xpose.msra.mxu0 0.0
    %620 = vmatprep.subr.mxu0 0.0
    %621 = vmatpush1.xpose.msra.mxu0 0.0
    %622 = vmatprep.subr.mxu0 0.0
    %623 = vmatpush1.xpose.msra.mxu0 0.0
    %624 = vmatprep.mubr.f32.mxu0 0.0
    %625 = vmatmul.mubr.f32.gmra.mrb[0].mxu0 %v555
    %v626 = vpop.f32.mrb[0].mxu0
    %v627 = vadd.f32 %v474, %v626
    %v628 = vpop.f32.mrb[0].mxu0
    %629 = vdwg.mxu0
    %v630 = vsel %vm477, %v551, -inf
    %631 = vmax.xlane.f32.xlu0 %v630
    %v632 = vpop.xlane.xlu0 %631
    %v633 = vsel %vm477, %v627, -inf
    %634 = vmax.xlane.f32.xlu0 %v633
    %v635 = vpop.xlane.xlu0 %634
    %v636 = vsub.f32 %v551, %v632
    %v637 = vsub.f32 %v627, %v635
    %v638 = vmul.f32 %v636, 1.442695
    %v639 = vpow.pop %v638
    %v640 = vmul.f32 %v637, 1.442695
    %v641 = vpow.pop %v640
    %v642 = vsel %vm477, %v639, 0.0
    %643 = vadd.xlane.f32.xlu0 %v642
    %v644 = vpop.xlane.xlu0 %643
    %v645 = vsel %vm477, %v641, 0.0
    %646 = vadd.xlane.f32.xlu0 %v645
    %v647 = vpop.xlane.xlu0 %646
    %v648 = vrcp.pop %v644
    %v649 = vmul.f32 %v639, %v648
    %v650 = vrcp.pop %v647
    %v651 = vmul.f32 %v641, %v650
    %v653 = vsel %vm477, %v649, 0
    %655 = vmatprep.subr.mxu0 0.0
    %656 = vmatpush1.msra.mxu0 %v458
    %657 = vmatprep.subr.mxu0 0.0
    %658 = vmatpush1.msra.mxu0 0.0
    %659 = vmatprep.subr.mxu0 0.0
    %660 = vmatpush1.msra.mxu0 0.0
    %661 = vmatprep.subr.mxu0 0.0
    %662 = vmatpush1.msra.mxu0 0.0
    %663 = vmatprep.subr.mxu0 0.0
    %664 = vmatpush1.msra.mxu0 0.0
    %665 = vmatprep.subr.mxu0 0.0
    %666 = vmatpush1.msra.mxu0 0.0
    %667 = vmatprep.subr.mxu0 0.0
    %668 = vmatpush1.msra.mxu0 0.0
    %669 = vmatprep.subr.mxu0 0.0
    %670 = vmatpush1.msra.mxu0 0.0
    %671 = vmatprep.subr.mxu0 0.0
    %672 = vmatpush1.msra.mxu0 0.0
    %673 = vmatprep.subr.mxu0 0.0
    %674 = vmatpush1.msra.mxu0 0.0
    %675 = vmatprep.subr.mxu0 0.0
    %676 = vmatpush1.msra.mxu0 0.0
    %677 = vmatprep.subr.mxu0 0.0
    %678 = vmatpush1.msra.mxu0 0.0
    %679 = vmatprep.subr.mxu0 0.0
    %680 = vmatpush1.msra.mxu0 0.0
    %681 = vmatprep.subr.mxu0 0.0
    %682 = vmatpush1.msra.mxu0 0.0
    %683 = vmatprep.subr.mxu0 0.0
    %684 = vmatpush1.msra.mxu0 0.0
    %685 = vmatprep.subr.mxu0 0.0
    %686 = vmatpush1.msra.mxu0 0.0
    %687 = vmatprep.subr.mxu0 0.0
    %688 = vmatpush1.msra.mxu0 0.0
    %689 = vmatprep.subr.mxu0 0.0
    %690 = vmatpush1.msra.mxu0 0.0
    %691 = vmatprep.subr.mxu0 0.0
    %692 = vmatpush1.msra.mxu0 0.0
    %693 = vmatprep.subr.mxu0 0.0
    %694 = vmatpush1.msra.mxu0 0.0
    %695 = vmatprep.subr.mxu0 0.0
    %696 = vmatpush1.msra.mxu0 0.0
    %697 = vmatprep.subr.mxu0 0.0
    %698 = vmatpush1.msra.mxu0 0.0
    %699 = vmatprep.subr.mxu0 0.0
    %700 = vmatpush1.msra.mxu0 0.0
    %701 = vmatprep.subr.mxu0 0.0
    %702 = vmatpush1.msra.mxu0 0.0
    %703 = vmatprep.subr.mxu0 0.0
    %704 = vmatpush1.msra.mxu0 0.0
    %705 = vmatprep.subr.mxu0 0.0
    %706 = vmatpush1.msra.mxu0 0.0
    %707 = vmatprep.subr.mxu0 0.0
    %708 = vmatpush1.msra.mxu0 0.0
    %709 = vmatprep.subr.mxu0 0.0
    %710 = vmatpush1.msra.mxu0 0.0
    %711 = vmatprep.subr.mxu0 0.0
    %712 = vmatpush1.msra.mxu0 0.0
    %713 = vmatprep.subr.mxu0 0.0
    %714 = vmatpush1.msra.mxu0 0.0
    %715 = vmatprep.subr.mxu0 0.0
    %716 = vmatpush1.msra.mxu0 0.0
    %717 = vmatprep.subr.mxu0 0.0
    %718 = vmatpush1.msra.mxu0 0.0
    %719 = vmatprep.mubr.f32.mxu0 0.0
    %720 = vmatmul.mubr.f32.gmra.mrb[0].mxu0 %v653
    %v721 = vpop.f32.mrb[0].mxu0
    %v722 = vadd.f32 0.0, %v721
    %v723 = vpop.f32.mrb[0].mxu0
    %724 = vdwg.mxu0
    %v726 = vsel %vm477, %v651, 0
    %728 = vmatprep.subr.mxu0 0.0
    %729 = vmatpush1.msra.mxu0 %v463
    %730 = vmatprep.subr.mxu0 0.0
    %731 = vmatpush1.msra.mxu0 0.0
    %732 = vmatprep.subr.mxu0 0.0
    %733 = vmatpush1.msra.mxu0 0.0
    %734 = vmatprep.subr.mxu0 0.0
    %735 = vmatpush1.msra.mxu0 0.0
    %736 = vmatprep.subr.mxu0 0.0
    %737 = vmatpush1.msra.mxu0 0.0
    %738 = vmatprep.subr.mxu0 0.0
    %739 = vmatpush1.msra.mxu0 0.0
    %740 = vmatprep.subr.mxu0 0.0
    %741 = vmatpush1.msra.mxu0 0.0
    %742 = vmatprep.subr.mxu0 0.0
    %743 = vmatpush1.msra.mxu0 0.0
    %744 = vmatprep.subr.mxu0 0.0
    %745 = vmatpush1.msra.mxu0 0.0
    %746 = vmatprep.subr.mxu0 0.0
    %747 = vmatpush1.msra.mxu0 0.0
    %748 = vmatprep.subr.mxu0 0.0
    %749 = vmatpush1.msra.mxu0 0.0
    %750 = vmatprep.subr.mxu0 0.0
    %751 = vmatpush1.msra.mxu0 0.0
    %752 = vmatprep.subr.mxu0 0.0
    %753 = vmatpush1.msra.mxu0 0.0
    %754 = vmatprep.subr.mxu0 0.0
    %755 = vmatpush1.msra.mxu0 0.0
    %756 = vmatprep.subr.mxu0 0.0
    %757 = vmatpush1.msra.mxu0 0.0
    %758 = vmatprep.subr.mxu0 0.0
    %759 = vmatpush1.msra.mxu0 0.0
    %760 = vmatprep.subr.mxu0 0.0
    %761 = vmatpush1.msra.mxu0 0.0
    %762 = vmatprep.subr.mxu0 0.0
    %763 = vmatpush1.msra.mxu0 0.0
    %764 = vmatprep.subr.mxu0 0.0
    %765 = vmatpush1.msra.mxu0 0.0
    %766 = vmatprep.subr.mxu0 0.0
    %767 = vmatpush1.msra.mxu0 0.0
    %768 = vmatprep.subr.mxu0 0.0
    %769 = vmatpush1.msra.mxu0 0.0
    %770 = vmatprep.subr.mxu0 0.0
    %771 = vmatpush1.msra.mxu0 0.0
    %772 = vmatprep.subr.mxu0 0.0
    %773 = vmatpush1.msra.mxu0 0.0
    %774 = vmatprep.subr.mxu0 0.0
    %775 = vmatpush1.msra.mxu0 0.0
    %776 = vmatprep.subr.mxu0 0.0
    %777 = vmatpush1.msra.mxu0 0.0
    %778 = vmatprep.subr.mxu0 0.0
    %779 = vmatpush1.msra.mxu0 0.0
    %780 = vmatprep.subr.mxu0 0.0
    %781 = vmatpush1.msra.mxu0 0.0
    %782 = vmatprep.subr.mxu0 0.0
    %783 = vmatpush1.msra.mxu0 0.0
    %784 = vmatprep.subr.mxu0 0.0
    %785 = vmatpush1.msra.mxu0 0.0
    %786 = vmatprep.subr.mxu0 0.0
    %787 = vmatpush1.msra.mxu0 0.0
    %788 = vmatprep.subr.mxu0 0.0
    %789 = vmatpush1.msra.mxu0 0.0
    %790 = vmatprep.subr.mxu0 0.0
    %791 = vmatpush1.msra.mxu0 0.0
    %792 = vmatprep.mubr.f32.mxu0 0.0
    %793 = vmatmul.mubr.f32.gmra.mrb[0].mxu0 %v726
    %v794 = vpop.f32.mrb[0].mxu0
    %v795 = vadd.f32 0.0, %v794
    %v796 = vpop.f32.mrb[0].mxu0
    %797 = vdwg.mxu0
    %v799 = vsel %vm477, %v722, 0
    %v802 = vsel %vm477, %v795, 0
    %804 = vmatprep.subr.mxu0 0.0
    %805 = vmatpush1.msra.mxu0 %v196
    %806 = vmatprep.subr.mxu0 0.0
    %807 = vmatpush1.msra.mxu0 0.0
    %808 = vmatprep.subr.mxu0 0.0
    %809 = vmatpush1.msra.mxu0 0.0
    %810 = vmatprep.subr.mxu0 0.0
    %811 = vmatpush1.msra.mxu0 0.0
    %812 = vmatprep.subr.mxu0 0.0
    %813 = vmatpush1.msra.mxu0 0.0
    %814 = vmatprep.subr.mxu0 0.0
    %815 = vmatpush1.msra.mxu0 0.0
    %816 = vmatprep.subr.mxu0 0.0
    %817 = vmatpush1.msra.mxu0 0.0
    %818 = vmatprep.subr.mxu0 0.0
    %819 = vmatpush1.msra.mxu0 0.0
    %820 = vmatprep.subr.mxu0 0.0
    %821 = vmatpush1.msra.mxu0 0.0
    %822 = vmatprep.subr.mxu0 0.0
    %823 = vmatpush1.msra.mxu0 0.0
    %824 = vmatprep.subr.mxu0 0.0
    %825 = vmatpush1.msra.mxu0 0.0
    %826 = vmatprep.subr.mxu0 0.0
    %827 = vmatpush1.msra.mxu0 0.0
    %828 = vmatprep.subr.mxu0 0.0
    %829 = vmatpush1.msra.mxu0 0.0
    %830 = vmatprep.subr.mxu0 0.0
    %831 = vmatpush1.msra.mxu0 0.0
    %832 = vmatprep.subr.mxu0 0.0
    %833 = vmatpush1.msra.mxu0 0.0
    %834 = vmatprep.subr.mxu0 0.0
    %835 = vmatpush1.msra.mxu0 0.0
    %836 = vmatprep.subr.mxu0 0.0
    %837 = vmatpush1.msra.mxu0 0.0
    %838 = vmatprep.subr.mxu0 0.0
    %839 = vmatpush1.msra.mxu0 0.0
    %840 = vmatprep.subr.mxu0 0.0
    %841 = vmatpush1.msra.mxu0 0.0
    %842 = vmatprep.subr.mxu0 0.0
    %843 = vmatpush1.msra.mxu0 0.0
    %844 = vmatprep.subr.mxu0 0.0
    %845 = vmatpush1.msra.mxu0 0.0
    %846 = vmatprep.subr.mxu0 0.0
    %847 = vmatpush1.msra.mxu0 0.0
    %848 = vmatprep.subr.mxu0 0.0
    %849 = vmatpush1.msra.mxu0 0.0
    %850 = vmatprep.subr.mxu0 0.0
    %851 = vmatpush1.msra.mxu0 0.0
    %852 = vmatprep.subr.mxu0 0.0
    %853 = vmatpush1.msra.mxu0 0.0
    %854 = vmatprep.subr.mxu0 0.0
    %855 = vmatpush1.msra.mxu0 0.0
    %856 = vmatprep.subr.mxu0 0.0
    %857 = vmatpush1.msra.mxu0 0.0
    %858 = vmatprep.subr.mxu0 0.0
    %859 = vmatpush1.msra.mxu0 0.0
    %860 = vmatprep.subr.mxu0 0.0
    %861 = vmatpush1.msra.mxu0 0.0
    %862 = vmatprep.subr.mxu0 0.0
    %863 = vmatpush1.msra.mxu0 0.0
    %864 = vmatprep.subr.mxu0 0.0
    %865 = vmatpush1.msra.mxu0 0.0
    %866 = vmatprep.subr.mxu0 0.0
    %867 = vmatpush1.msra.mxu0 0.0
    %868 = vmatprep.mubr.f32.mxu0 0.0
    %869 = vmatmul.mubr.f32.gmra.mrb[0].mxu0 %v799
    %v870 = vpop.f32.mrb[0].mxu0
    %v871 = vadd.f32 0.0, %v870
    %v872 = vpop.f32.mrb[0].mxu0
    %873 = vmatprep.mubr.f32.mxu0 0.0
    %874 = vmatmul.mubr.f32.gmra.mrb[0].mxu0 %v802
    %v875 = vpop.f32.mrb[0].mxu0
    %v876 = vadd.f32 0.0, %v875
    %v877 = vpop.f32.mrb[0].mxu0
    %878 = vdwg.mxu0
    %v880 = vlaneseq
    %v881 = vshrl.u32 %v880, 7
    %v882 = vsub.s32 0, %v881
    %v883 = vrot.slane %v466, %v882
    %v885 = vadd.f32 %v883, %v871
    %v886 = vadd.f32 %v883, %v876
    %887 = vrot.lane.b32.xlu0 %v292, 120
    %v888 = vpop.permute.xlu0 %887
    %889 = vrot.lane.b32.xlu0 %v372, 120
    %v890 = vpop.permute.xlu0 %889
    %v891 = vsel %vm477, %v888, 0
    %v893 = vsel %vm477, %v890, 0
    %895 = vmatprep.subr.mxu0 0.0
    %896 = vmatpush1.xpose.msra.mxu0 %v893
    %897 = vmatprep.subr.mxu0 0.0
    %898 = vmatpush1.xpose.msra.mxu0 0.0
    %899 = vmatprep.subr.mxu0 0.0
    %900 = vmatpush1.xpose.msra.mxu0 0.0
    %901 = vmatprep.subr.mxu0 0.0
    %902 = vmatpush1.xpose.msra.mxu0 0.0
    %903 = vmatprep.subr.mxu0 0.0
    %904 = vmatpush1.xpose.msra.mxu0 0.0
    %905 = vmatprep.subr.mxu0 0.0
    %906 = vmatpush1.xpose.msra.mxu0 0.0
    %907 = vmatprep.subr.mxu0 0.0
    %908 = vmatpush1.xpose.msra.mxu0 0.0
    %909 = vmatprep.subr.mxu0 0.0
    %910 = vmatpush1.xpose.msra.mxu0 0.0
    %911 = vmatprep.subr.mxu0 0.0
    %912 = vmatpush1.xpose.msra.mxu0 0.0
    %913 = vmatprep.subr.mxu0 0.0
    %914 = vmatpush1.xpose.msra.mxu0 0.0
    %915 = vmatprep.subr.mxu0 0.0
    %916 = vmatpush1.xpose.msra.mxu0 0.0
    %917 = vmatprep.subr.mxu0 0.0
    %918 = vmatpush1.xpose.msra.mxu0 0.0
    %919 = vmatprep.subr.mxu0 0.0
    %920 = vmatpush1.xpose.msra.mxu0 0.0
    %921 = vmatprep.subr.mxu0 0.0
    %922 = vmatpush1.xpose.msra.mxu0 0.0
    %923 = vmatprep.subr.mxu0 0.0
    %924 = vmatpush1.xpose.msra.mxu0 0.0
    %925 = vmatprep.subr.mxu0 0.0
    %926 = vmatpush1.xpose.msra.mxu0 0.0
    %927 = vmatprep.subr.mxu0 0.0
    %928 = vmatpush1.xpose.msra.mxu0 0.0
    %929 = vmatprep.subr.mxu0 0.0
    %930 = vmatpush1.xpose.msra.mxu0 0.0
    %931 = vmatprep.subr.mxu0 0.0
    %932 = vmatpush1.xpose.msra.mxu0 0.0
    %933 = vmatprep.subr.mxu0 0.0
    %934 = vmatpush1.xpose.msra.mxu0 0.0
    %935 = vmatprep.subr.mxu0 0.0
    %936 = vmatpush1.xpose.msra.mxu0 0.0
    %937 = vmatprep.subr.mxu0 0.0
    %938 = vmatpush1.xpose.msra.mxu0 0.0
    %939 = vmatprep.subr.mxu0 0.0
    %940 = vmatpush1.xpose.msra.mxu0 0.0
    %941 = vmatprep.subr.mxu0 0.0
    %942 = vmatpush1.xpose.msra.mxu0 0.0
    %943 = vmatprep.subr.mxu0 0.0
    %944 = vmatpush1.xpose.msra.mxu0 0.0
    %945 = vmatprep.subr.mxu0 0.0
    %946 = vmatpush1.xpose.msra.mxu0 0.0
    %947 = vmatprep.subr.mxu0 0.0
    %948 = vmatpush1.xpose.msra.mxu0 0.0
    %949 = vmatprep.subr.mxu0 0.0
    %950 = vmatpush1.xpose.msra.mxu0 0.0
    %951 = vmatprep.subr.mxu0 0.0
    %952 = vmatpush1.xpose.msra.mxu0 0.0
    %953 = vmatprep.subr.mxu0 0.0
    %954 = vmatpush1.xpose.msra.mxu0 0.0
    %955 = vmatprep.subr.mxu0 0.0
    %956 = vmatpush1.xpose.msra.mxu0 0.0
    %957 = vmatprep.subr.mxu0 0.0
    %958 = vmatpush1.xpose.msra.mxu0 0.0
    %959 = vmatprep.mubr.f32.mxu0 0.0
    %960 = vmatmul.mubr.f32.gmra.mrb[0].mxu0 %v891
    %v961 = vpop.f32.mrb[0].mxu0
    %v962 = vadd.f32 %v470, %v961
    %v963 = vpop.f32.mrb[0].mxu0
    %964 = vdwg.mxu0
    %965 = vrot.lane.b32.xlu0 %v293, 120
    %v966 = vpop.permute.xlu0 %965
    %967 = vrot.lane.b32.xlu0 %v377, 120
    %v968 = vpop.permute.xlu0 %967
    %v969 = vsel %vm477, %v966, 0
    %v971 = vsel %vm477, %v968, 0
    %973 = vmatprep.subr.mxu0 0.0
    %974 = vmatpush1.xpose.msra.mxu0 %v971
    %975 = vmatprep.subr.mxu0 0.0
    %976 = vmatpush1.xpose.msra.mxu0 0.0
    %977 = vmatprep.subr.mxu0 0.0
    %978 = vmatpush1.xpose.msra.mxu0 0.0
    %979 = vmatprep.subr.mxu0 0.0
    %980 = vmatpush1.xpose.msra.mxu0 0.0
    %981 = vmatprep.subr.mxu0 0.0
    %982 = vmatpush1.xpose.msra.mxu0 0.0
    %983 = vmatprep.subr.mxu0 0.0
    %984 = vmatpush1.xpose.msra.mxu0 0.0
    %985 = vmatprep.subr.mxu0 0.0
    %986 = vmatpush1.xpose.msra.mxu0 0.0
    %987 = vmatprep.subr.mxu0 0.0
    %988 = vmatpush1.xpose.msra.mxu0 0.0
    %989 = vmatprep.subr.mxu0 0.0
    %990 = vmatpush1.xpose.msra.mxu0 0.0
    %991 = vmatprep.subr.mxu0 0.0
    %992 = vmatpush1.xpose.msra.mxu0 0.0
    %993 = vmatprep.subr.mxu0 0.0
    %994 = vmatpush1.xpose.msra.mxu0 0.0
    %995 = vmatprep.subr.mxu0 0.0
    %996 = vmatpush1.xpose.msra.mxu0 0.0
    %997 = vmatprep.subr.mxu0 0.0
    %998 = vmatpush1.xpose.msra.mxu0 0.0
    %999 = vmatprep.subr.mxu0 0.0
    %1000 = vmatpush1.xpose.msra.mxu0 0.0
    %1001 = vmatprep.subr.mxu0 0.0
    %1002 = vmatpush1.xpose.msra.mxu0 0.0
    %1003 = vmatprep.subr.mxu0 0.0
    %1004 = vmatpush1.xpose.msra.mxu0 0.0
    %1005 = vmatprep.subr.mxu0 0.0
    %1006 = vmatpush1.xpose.msra.mxu0 0.0
    %1007 = vmatprep.subr.mxu0 0.0
    %1008 = vmatpush1.xpose.msra.mxu0 0.0
    %1009 = vmatprep.subr.mxu0 0.0
    %1010 = vmatpush1.xpose.msra.mxu0 0.0
    %1011 = vmatprep.subr.mxu0 0.0
    %1012 = vmatpush1.xpose.msra.mxu0 0.0
    %1013 = vmatprep.subr.mxu0 0.0
    %1014 = vmatpush1.xpose.msra.mxu0 0.0
    %1015 = vmatprep.subr.mxu0 0.0
    %1016 = vmatpush1.xpose.msra.mxu0 0.0
    %1017 = vmatprep.subr.mxu0 0.0
    %1018 = vmatpush1.xpose.msra.mxu0 0.0
    %1019 = vmatprep.subr.mxu0 0.0
    %1020 = vmatpush1.xpose.msra.mxu0 0.0
    %1021 = vmatprep.subr.mxu0 0.0
    %1022 = vmatpush1.xpose.msra.mxu0 0.0
    %1023 = vmatprep.subr.mxu0 0.0
    %1024 = vmatpush1.xpose.msra.mxu0 0.0
    %1025 = vmatprep.subr.mxu0 0.0
    %1026 = vmatpush1.xpose.msra.mxu0 0.0
    %1027 = vmatprep.subr.mxu0 0.0
    %1028 = vmatpush1.xpose.msra.mxu0 0.0
    %1029 = vmatprep.subr.mxu0 0.0
    %1030 = vmatpush1.xpose.msra.mxu0 0.0
    %1031 = vmatprep.subr.mxu0 0.0
    %1032 = vmatpush1.xpose.msra.mxu0 0.0
    %1033 = vmatprep.subr.mxu0 0.0
    %1034 = vmatpush1.xpose.msra.mxu0 0.0
    %1035 = vmatprep.subr.mxu0 0.0
    %1036 = vmatpush1.xpose.msra.mxu0 0.0
    %1037 = vmatprep.mubr.f32.mxu0 0.0
    %1038 = vmatmul.mubr.f32.gmra.mrb[0].mxu0 %v969
    %v1039 = vpop.f32.mrb[0].mxu0
    %v1040 = vadd.f32 %v474, %v1039
    %v1041 = vpop.f32.mrb[0].mxu0
    %1042 = vdwg.mxu0
    %v1043 = vsel %vm477, %v962, -inf
    %1044 = vmax.xlane.f32.xlu0 %v1043
    %v1045 = vpop.xlane.xlu0 %1044
    %v1046 = vsel %vm477, %v1040, -inf
    %1047 = vmax.xlane.f32.xlu0 %v1046
    %v1048 = vpop.xlane.xlu0 %1047
    %v1049 = vsub.f32 %v962, %v1045
    %v1050 = vsub.f32 %v1040, %v1048
    %v1051 = vmul.f32 %v1049, 1.442695
    %v1052 = vpow.pop %v1051
    %v1053 = vmul.f32 %v1050, 1.442695
    %v1054 = vpow.pop %v1053
    %v1055 = vsel %vm477, %v1052, 0.0
    %1056 = vadd.xlane.f32.xlu0 %v1055
    %v1057 = vpop.xlane.xlu0 %1056
    %v1058 = vsel %vm477, %v1054, 0.0
    %1059 = vadd.xlane.f32.xlu0 %v1058
    %v1060 = vpop.xlane.xlu0 %1059
    %v1061 = vrcp.pop %v1057
    %v1062 = vmul.f32 %v1052, %v1061
    %v1063 = vrcp.pop %v1060
    %v1064 = vmul.f32 %v1054, %v1063
    %1066 = vrot.lane.b32.xlu0 %v458, 120
    %v1067 = vpop.permute.xlu0 %1066
    %v1070 = vsel %vm477, %v1062, 0
    %1072 = vmatprep.subr.mxu0 0.0
    %1073 = vmatpush1.msra.mxu0 %v1067
    %1074 = vmatprep.subr.mxu0 0.0
    %1075 = vmatpush1.msra.mxu0 0.0
    %1076 = vmatprep.subr.mxu0 0.0
    %1077 = vmatpush1.msra.mxu0 0.0
    %1078 = vmatprep.subr.mxu0 0.0
    %1079 = vmatpush1.msra.mxu0 0.0
    %1080 = vmatprep.subr.mxu0 0.0
    %1081 = vmatpush1.msra.mxu0 0.0
    %1082 = vmatprep.subr.mxu0 0.0
    %1083 = vmatpush1.msra.mxu0 0.0
    %1084 = vmatprep.subr.mxu0 0.0
    %1085 = vmatpush1.msra.mxu0 0.0
    %1086 = vmatprep.subr.mxu0 0.0
    %1087 = vmatpush1.msra.mxu0 0.0
    %1088 = vmatprep.subr.mxu0 0.0
    %1089 = vmatpush1.msra.mxu0 0.0
    %1090 = vmatprep.subr.mxu0 0.0
    %1091 = vmatpush1.msra.mxu0 0.0
    %1092 = vmatprep.subr.mxu0 0.0
    %1093 = vmatpush1.msra.mxu0 0.0
    %1094 = vmatprep.subr.mxu0 0.0
    %1095 = vmatpush1.msra.mxu0 0.0
    %1096 = vmatprep.subr.mxu0 0.0
    %1097 = vmatpush1.msra.mxu0 0.0
    %1098 = vmatprep.subr.mxu0 0.0
    %1099 = vmatpush1.msra.mxu0 0.0
    %1100 = vmatprep.subr.mxu0 0.0
    %1101 = vmatpush1.msra.mxu0 0.0
    %1102 = vmatprep.subr.mxu0 0.0
    %1103 = vmatpush1.msra.mxu0 0.0
    %1104 = vmatprep.subr.mxu0 0.0
    %1105 = vmatpush1.msra.mxu0 0.0
    %1106 = vmatprep.subr.mxu0 0.0
    %1107 = vmatpush1.msra.mxu0 0.0
    %1108 = vmatprep.subr.mxu0 0.0
    %1109 = vmatpush1.msra.mxu0 0.0
    %1110 = vmatprep.subr.mxu0 0.0
    %1111 = vmatpush1.msra.mxu0 0.0
    %1112 = vmatprep.subr.mxu0 0.0
    %1113 = vmatpush1.msra.mxu0 0.0
    %1114 = vmatprep.subr.mxu0 0.0
    %1115 = vmatpush1.msra.mxu0 0.0
    %1116 = vmatprep.subr.mxu0 0.0
    %1117 = vmatpush1.msra.mxu0 0.0
    %1118 = vmatprep.subr.mxu0 0.0
    %1119 = vmatpush1.msra.mxu0 0.0
    %1120 = vmatprep.subr.mxu0 0.0
    %1121 = vmatpush1.msra.mxu0 0.0
    %1122 = vmatprep.subr.mxu0 0.0
    %1123 = vmatpush1.msra.mxu0 0.0
    %1124 = vmatprep.subr.mxu0 0.0
    %1125 = vmatpush1.msra.mxu0 0.0
    %1126 = vmatprep.subr.mxu0 0.0
    %1127 = vmatpush1.msra.mxu0 0.0
    %1128 = vmatprep.subr.mxu0 0.0
    %1129 = vmatpush1.msra.mxu0 0.0
    %1130 = vmatprep.subr.mxu0 0.0
    %1131 = vmatpush1.msra.mxu0 0.0
    %1132 = vmatprep.subr.mxu0 0.0
    %1133 = vmatpush1.msra.mxu0 0.0
    %1134 = vmatprep.subr.mxu0 0.0
    %1135 = vmatpush1.msra.mxu0 0.0
    %1136 = vmatprep.mubr.f32.mxu0 0.0
    %1137 = vmatmul.mubr.f32.gmra.mrb[0].mxu0 %v1070
    %v1138 = vpop.f32.mrb[0].mxu0
    %v1139 = vadd.f32 0.0, %v1138
    %v1140 = vpop.f32.mrb[0].mxu0
    %1141 = vdwg.mxu0
    %1143 = vrot.lane.b32.xlu0 %v463, 120
    %v1144 = vpop.permute.xlu0 %1143
    %v1147 = vsel %vm477, %v1064, 0
    %1149 = vmatprep.subr.mxu0 0.0
    %1150 = vmatpush1.msra.mxu0 %v1144
    %1151 = vmatprep.subr.mxu0 0.0
    %1152 = vmatpush1.msra.mxu0 0.0
    %1153 = vmatprep.subr.mxu0 0.0
    %1154 = vmatpush1.msra.mxu0 0.0
    %1155 = vmatprep.subr.mxu0 0.0
    %1156 = vmatpush1.msra.mxu0 0.0
    %1157 = vmatprep.subr.mxu0 0.0
    %1158 = vmatpush1.msra.mxu0 0.0
    %1159 = vmatprep.subr.mxu0 0.0
    %1160 = vmatpush1.msra.mxu0 0.0
    %1161 = vmatprep.subr.mxu0 0.0
    %1162 = vmatpush1.msra.mxu0 0.0
    %1163 = vmatprep.subr.mxu0 0.0
    %1164 = vmatpush1.msra.mxu0 0.0
    %1165 = vmatprep.subr.mxu0 0.0
    %1166 = vmatpush1.msra.mxu0 0.0
    %1167 = vmatprep.subr.mxu0 0.0
    %1168 = vmatpush1.msra.mxu0 0.0
    %1169 = vmatprep.subr.mxu0 0.0
    %1170 = vmatpush1.msra.mxu0 0.0
    %1171 = vmatprep.subr.mxu0 0.0
    %1172 = vmatpush1.msra.mxu0 0.0
    %1173 = vmatprep.subr.mxu0 0.0
    %1174 = vmatpush1.msra.mxu0 0.0
    %1175 = vmatprep.subr.mxu0 0.0
    %1176 = vmatpush1.msra.mxu0 0.0
    %1177 = vmatprep.subr.mxu0 0.0
    %1178 = vmatpush1.msra.mxu0 0.0
    %1179 = vmatprep.subr.mxu0 0.0
    %1180 = vmatpush1.msra.mxu0 0.0
    %1181 = vmatprep.subr.mxu0 0.0
    %1182 = vmatpush1.msra.mxu0 0.0
    %1183 = vmatprep.subr.mxu0 0.0
    %1184 = vmatpush1.msra.mxu0 0.0
    %1185 = vmatprep.subr.mxu0 0.0
    %1186 = vmatpush1.msra.mxu0 0.0
    %1187 = vmatprep.subr.mxu0 0.0
    %1188 = vmatpush1.msra.mxu0 0.0
    %1189 = vmatprep.subr.mxu0 0.0
    %1190 = vmatpush1.msra.mxu0 0.0
    %1191 = vmatprep.subr.mxu0 0.0
    %1192 = vmatpush1.msra.mxu0 0.0
    %1193 = vmatprep.subr.mxu0 0.0
    %1194 = vmatpush1.msra.mxu0 0.0
    %1195 = vmatprep.subr.mxu0 0.0
    %1196 = vmatpush1.msra.mxu0 0.0
    %1197 = vmatprep.subr.mxu0 0.0
    %1198 = vmatpush1.msra.mxu0 0.0
    %1199 = vmatprep.subr.mxu0 0.0
    %1200 = vmatpush1.msra.mxu0 0.0
    %1201 = vmatprep.subr.mxu0 0.0
    %1202 = vmatpush1.msra.mxu0 0.0
    %1203 = vmatprep.subr.mxu0 0.0
    %1204 = vmatpush1.msra.mxu0 0.0
    %1205 = vmatprep.subr.mxu0 0.0
    %1206 = vmatpush1.msra.mxu0 0.0
    %1207 = vmatprep.subr.mxu0 0.0
    %1208 = vmatpush1.msra.mxu0 0.0
    %1209 = vmatprep.subr.mxu0 0.0
    %1210 = vmatpush1.msra.mxu0 0.0
    %1211 = vmatprep.subr.mxu0 0.0
    %1212 = vmatpush1.msra.mxu0 0.0
    %1213 = vmatprep.mubr.f32.mxu0 0.0
    %1214 = vmatmul.mubr.f32.gmra.mrb[0].mxu0 %v1147
    %v1215 = vpop.f32.mrb[0].mxu0
    %v1216 = vadd.f32 0.0, %v1215
    %v1217 = vpop.f32.mrb[0].mxu0
    %1218 = vdwg.mxu0
    %v1220 = vsel %vm477, %v1139, 0
    %v1223 = vsel %vm477, %v1216, 0
    %1225 = vmatprep.subr.mxu0 0.0
    %1226 = vmatpush1.msra.mxu0 %v197
    %1227 = vmatprep.subr.mxu0 0.0
    %1228 = vmatpush1.msra.mxu0 0.0
    %1229 = vmatprep.subr.mxu0 0.0
    %1230 = vmatpush1.msra.mxu0 0.0
    %1231 = vmatprep.subr.mxu0 0.0
    %1232 = vmatpush1.msra.mxu0 0.0
    %1233 = vmatprep.subr.mxu0 0.0
    %1234 = vmatpush1.msra.mxu0 0.0
    %1235 = vmatprep.subr.mxu0 0.0
    %1236 = vmatpush1.msra.mxu0 0.0
    %1237 = vmatprep.subr.mxu0 0.0
    %1238 = vmatpush1.msra.mxu0 0.0
    %1239 = vmatprep.subr.mxu0 0.0
    %1240 = vmatpush1.msra.mxu0 0.0
    %1241 = vmatprep.subr.mxu0 0.0
    %1242 = vmatpush1.msra.mxu0 0.0
    %1243 = vmatprep.subr.mxu0 0.0
    %1244 = vmatpush1.msra.mxu0 0.0
    %1245 = vmatprep.subr.mxu0 0.0
    %1246 = vmatpush1.msra.mxu0 0.0
    %1247 = vmatprep.subr.mxu0 0.0
    %1248 = vmatpush1.msra.mxu0 0.0
    %1249 = vmatprep.subr.mxu0 0.0
    %1250 = vmatpush1.msra.mxu0 0.0
    %1251 = vmatprep.subr.mxu0 0.0
    %1252 = vmatpush1.msra.mxu0 0.0
    %1253 = vmatprep.subr.mxu0 0.0
    %1254 = vmatpush1.msra.mxu0 0.0
    %1255 = vmatprep.subr.mxu0 0.0
    %1256 = vmatpush1.msra.mxu0 0.0
    %1257 = vmatprep.subr.mxu0 0.0
    %1258 = vmatpush1.msra.mxu0 0.0
    %1259 = vmatprep.subr.mxu0 0.0
    %1260 = vmatpush1.msra.mxu0 0.0
    %1261 = vmatprep.subr.mxu0 0.0
    %1262 = vmatpush1.msra.mxu0 0.0
    %1263 = vmatprep.subr.mxu0 0.0
    %1264 = vmatpush1.msra.mxu0 0.0
    %1265 = vmatprep.subr.mxu0 0.0
    %1266 = vmatpush1.msra.mxu0 0.0
    %1267 = vmatprep.subr.mxu0 0.0
    %1268 = vmatpush1.msra.mxu0 0.0
    %1269 = vmatprep.subr.mxu0 0.0
    %1270 = vmatpush1.msra.mxu0 0.0
    %1271 = vmatprep.subr.mxu0 0.0
    %1272 = vmatpush1.msra.mxu0 0.0
    %1273 = vmatprep.subr.mxu0 0.0
    %1274 = vmatpush1.msra.mxu0 0.0
    %1275 = vmatprep.subr.mxu0 0.0
    %1276 = vmatpush1.msra.mxu0 0.0
    %1277 = vmatprep.subr.mxu0 0.0
    %1278 = vmatpush1.msra.mxu0 0.0
    %1279 = vmatprep.subr.mxu0 0.0
    %1280 = vmatpush1.msra.mxu0 0.0
    %1281 = vmatprep.subr.mxu0 0.0
    %1282 = vmatpush1.msra.mxu0 0.0
    %1283 = vmatprep.subr.mxu0 0.0
    %1284 = vmatpush1.msra.mxu0 0.0
    %1285 = vmatprep.subr.mxu0 0.0
    %1286 = vmatpush1.msra.mxu0 0.0
    %1287 = vmatprep.subr.mxu0 0.0
    %1288 = vmatpush1.msra.mxu0 0.0
    %1289 = vmatprep.mubr.f32.mxu0 0.0
    %1290 = vmatmul.mubr.f32.gmra.mrb[0].mxu0 %v1220
    %v1291 = vpop.f32.mrb[0].mxu0
    %v1292 = vadd.f32 0.0, %v1291
    %v1293 = vpop.f32.mrb[0].mxu0
    %1294 = vmatprep.mubr.f32.mxu0 0.0
    %1295 = vmatmul.mubr.f32.gmra.mrb[0].mxu0 %v1223
    %v1296 = vpop.f32.mrb[0].mxu0
    %v1297 = vadd.f32 0.0, %v1296
    %v1298 = vpop.f32.mrb[0].mxu0
    %1299 = vdwg.mxu0
    %v1300 = vadd.f32 %v885, %v1292
    %v1301 = vadd.f32 %v886, %v1297
    %1302 = vrot.lane.b32.xlu0 %v292, 112
    %v1303 = vpop.permute.xlu0 %1302
    %1304 = vrot.lane.b32.xlu0 %v372, 112
    %v1305 = vpop.permute.xlu0 %1304
    %v1306 = vsel %vm477, %v1303, 0
    %v1308 = vsel %vm477, %v1305, 0
    %1310 = vmatprep.subr.mxu0 0.0
    %1311 = vmatpush1.xpose.msra.mxu0 %v1308
    %1312 = vmatprep.subr.mxu0 0.0
    %1313 = vmatpush1.xpose.msra.mxu0 0.0
    %1314 = vmatprep.subr.mxu0 0.0
    %1315 = vmatpush1.xpose.msra.mxu0 0.0
    %1316 = vmatprep.subr.mxu0 0.0
    %1317 = vmatpush1.xpose.msra.mxu0 0.0
    %1318 = vmatprep.subr.mxu0 0.0
    %1319 = vmatpush1.xpose.msra.mxu0 0.0
    %1320 = vmatprep.subr.mxu0 0.0
    %1321 = vmatpush1.xpose.msra.mxu0 0.0
    %1322 = vmatprep.subr.mxu0 0.0
    %1323 = vmatpush1.xpose.msra.mxu0 0.0
    %1324 = vmatprep.subr.mxu0 0.0
    %1325 = vmatpush1.xpose.msra.mxu0 0.0
    %1326 = vmatprep.subr.mxu0 0.0
    %1327 = vmatpush1.xpose.msra.mxu0 0.0
    %1328 = vmatprep.subr.mxu0 0.0
    %1329 = vmatpush1.xpose.msra.mxu0 0.0
    %1330 = vmatprep.subr.mxu0 0.0
    %1331 = vmatpush1.xpose.msra.mxu0 0.0
    %1332 = vmatprep.subr.mxu0 0.0
    %1333 = vmatpush1.xpose.msra.mxu0 0.0
    %1334 = vmatprep.subr.mxu0 0.0
    %1335 = vmatpush1.xpose.msra.mxu0 0.0
    %1336 = vmatprep.subr.mxu0 0.0
    %1337 = vmatpush1.xpose.msra.mxu0 0.0
    %1338 = vmatprep.subr.mxu0 0.0
    %1339 = vmatpush1.xpose.msra.mxu0 0.0
    %1340 = vmatprep.subr.mxu0 0.0
    %1341 = vmatpush1.xpose.msra.mxu0 0.0
    %1342 = vmatprep.subr.mxu0 0.0
    %1343 = vmatpush1.xpose.msra.mxu0 0.0
    %1344 = vmatprep.subr.mxu0 0.0
    %1345 = vmatpush1.xpose.msra.mxu0 0.0
    %1346 = vmatprep.subr.mxu0 0.0
    %1347 = vmatpush1.xpose.msra.mxu0 0.0
    %1348 = vmatprep.subr.mxu0 0.0
    %1349 = vmatpush1.xpose.msra.mxu0 0.0
    %1350 = vmatprep.subr.mxu0 0.0
    %1351 = vmatpush1.xpose.msra.mxu0 0.0
    %1352 = vmatprep.subr.mxu0 0.0
    %1353 = vmatpush1.xpose.msra.mxu0 0.0
    %1354 = vmatprep.subr.mxu0 0.0
    %1355 = vmatpush1.xpose.msra.mxu0 0.0
    %1356 = vmatprep.subr.mxu0 0.0
    %1357 = vmatpush1.xpose.msra.mxu0 0.0
    %1358 = vmatprep.subr.mxu0 0.0
    %1359 = vmatpush1.xpose.msra.mxu0 0.0
    %1360 = vmatprep.subr.mxu0 0.0
    %1361 = vmatpush1.xpose.msra.mxu0 0.0
    %1362 = vmatprep.subr.mxu0 0.0
    %1363 = vmatpush1.xpose.msra.mxu0 0.0
    %1364 = vmatprep.subr.mxu0 0.0
    %1365 = vmatpush1.xpose.msra.mxu0 0.0
    %1366 = vmatprep.subr.mxu0 0.0
    %1367 = vmatpush1.xpose.msra.mxu0 0.0
    %1368 = vmatprep.subr.mxu0 0.0
    %1369 = vmatpush1.xpose.msra.mxu0 0.0
    %1370 = vmatprep.subr.mxu0 0.0
    %1371 = vmatpush1.xpose.msra.mxu0 0.0
    %1372 = vmatprep.subr.mxu0 0.0
    %1373 = vmatpush1.xpose.msra.mxu0 0.0
    %1374 = vmatprep.mubr.f32.mxu0 0.0
    %1375 = vmatmul.mubr.f32.gmra.mrb[0].mxu0 %v1306
    %v1376 = vpop.f32.mrb[0].mxu0
    %v1377 = vadd.f32 %v470, %v1376
    %v1378 = vpop.f32.mrb[0].mxu0
    %1379 = vdwg.mxu0
    %1380 = vrot.lane.b32.xlu0 %v293, 112
    %v1381 = vpop.permute.xlu0 %1380
    %1382 = vrot.lane.b32.xlu0 %v377, 112
    %v1383 = vpop.permute.xlu0 %1382
    %v1384 = vsel %vm477, %v1381, 0
    %v1386 = vsel %vm477, %v1383, 0
    %1388 = vmatprep.subr.mxu0 0.0
    %1389 = vmatpush1.xpose.msra.mxu0 %v1386
    %1390 = vmatprep.subr.mxu0 0.0
    %1391 = vmatpush1.xpose.msra.mxu0 0.0
    %1392 = vmatprep.subr.mxu0 0.0
    %1393 = vmatpush1.xpose.msra.mxu0 0.0
    %1394 = vmatprep.subr.mxu0 0.0
    %1395 = vmatpush1.xpose.msra.mxu0 0.0
    %1396 = vmatprep.subr.mxu0 0.0
    %1397 = vmatpush1.xpose.msra.mxu0 0.0
    %1398 = vmatprep.subr.mxu0 0.0
    %1399 = vmatpush1.xpose.msra.mxu0 0.0
    %1400 = vmatprep.subr.mxu0 0.0
    %1401 = vmatpush1.xpose.msra.mxu0 0.0
    %1402 = vmatprep.subr.mxu0 0.0
    %1403 = vmatpush1.xpose.msra.mxu0 0.0
    %1404 = vmatprep.subr.mxu0 0.0
    %1405 = vmatpush1.xpose.msra.mxu0 0.0
    %1406 = vmatprep.subr.mxu0 0.0
    %1407 = vmatpush1.xpose.msra.mxu0 0.0
    %1408 = vmatprep.subr.mxu0 0.0
    %1409 = vmatpush1.xpose.msra.mxu0 0.0
    %1410 = vmatprep.subr.mxu0 0.0
    %1411 = vmatpush1.xpose.msra.mxu0 0.0
    %1412 = vmatprep.subr.mxu0 0.0
    %1413 = vmatpush1.xpose.msra.mxu0 0.0
    %1414 = vmatprep.subr.mxu0 0.0
    %1415 = vmatpush1.xpose.msra.mxu0 0.0
    %1416 = vmatprep.subr.mxu0 0.0
    %1417 = vmatpush1.xpose.msra.mxu0 0.0
    %1418 = vmatprep.subr.mxu0 0.0
    %1419 = vmatpush1.xpose.msra.mxu0 0.0
    %1420 = vmatprep.subr.mxu0 0.0
    %1421 = vmatpush1.xpose.msra.mxu0 0.0
    %1422 = vmatprep.subr.mxu0 0.0
    %1423 = vmatpush1.xpose.msra.mxu0 0.0
    %1424 = vmatprep.subr.mxu0 0.0
    %1425 = vmatpush1.xpose.msra.mxu0 0.0
    %1426 = vmatprep.subr.mxu0 0.0
    %1427 = vmatpush1.xpose.msra.mxu0 0.0
    %1428 = vmatprep.subr.mxu0 0.0
    %1429 = vmatpush1.xpose.msra.mxu0 0.0
    %1430 = vmatprep.subr.mxu0 0.0
    %1431 = vmatpush1.xpose.msra.mxu0 0.0
    %1432 = vmatprep.subr.mxu0 0.0
    %1433 = vmatpush1.xpose.msra.mxu0 0.0
    %1434 = vmatprep.subr.mxu0 0.0
    %1435 = vmatpush1.xpose.msra.mxu0 0.0
    %1436 = vmatprep.subr.mxu0 0.0
    %1437 = vmatpush1.xpose.msra.mxu0 0.0
    %1438 = vmatprep.subr.mxu0 0.0
    %1439 = vmatpush1.xpose.msra.mxu0 0.0
    %1440 = vmatprep.subr.mxu0 0.0
    %1441 = vmatpush1.xpose.msra.mxu0 0.0
    %1442 = vmatprep.subr.mxu0 0.0
    %1443 = vmatpush1.xpose.msra.mxu0 0.0
    %1444 = vmatprep.subr.mxu0 0.0
    %1445 = vmatpush1.xpose.msra.mxu0 0.0
    %1446 = vmatprep.subr.mxu0 0.0
    %1447 = vmatpush1.xpose.msra.mxu0 0.0
    %1448 = vmatprep.subr.mxu0 0.0
    %1449 = vmatpush1.xpose.msra.mxu0 0.0
    %1450 = vmatprep.subr.mxu0 0.0
    %1451 = vmatpush1.xpose.msra.mxu0 0.0
    %1452 = vmatprep.mubr.f32.mxu0 0.0
    %1453 = vmatmul.mubr.f32.gmra.mrb[0].mxu0 %v1384
    %v1454 = vpop.f32.mrb[0].mxu0
    %v1455 = vadd.f32 %v474, %v1454
    %v1456 = vpop.f32.mrb[0].mxu0
    %1457 = vdwg.mxu0
    %v1458 = vsel %vm477, %v1377, -inf
    %1459 = vmax.xlane.f32.xlu0 %v1458
    %v1460 = vpop.xlane.xlu0 %1459
    %v1461 = vsel %vm477, %v1455, -inf
    %1462 = vmax.xlane.f32.xlu0 %v1461
    %v1463 = vpop.xlane.xlu0 %1462
    %v1464 = vsub.f32 %v1377, %v1460
    %v1465 = vsub.f32 %v1455, %v1463
    %v1466 = vmul.f32 %v1464, 1.442695
    %v1467 = vpow.pop %v1466
    %v1468 = vmul.f32 %v1465, 1.442695
    %v1469 = vpow.pop %v1468
    %v1470 = vsel %vm477, %v1467, 0.0
    %1471 = vadd.xlane.f32.xlu0 %v1470
    %v1472 = vpop.xlane.xlu0 %1471
    %v1473 = vsel %vm477, %v1469, 0.0
    %1474 = vadd.xlane.f32.xlu0 %v1473
    %v1475 = vpop.xlane.xlu0 %1474
    %v1476 = vrcp.pop %v1472
    %v1477 = vmul.f32 %v1467, %v1476
    %v1478 = vrcp.pop %v1475
    %v1479 = vmul.f32 %v1469, %v1478
    %1480 = vrot.lane.b32.xlu0 %v458, 112
    %v1481 = vpop.permute.xlu0 %1480
    %v1484 = vsel %vm477, %v1477, 0
    %1486 = vmatprep.subr.mxu0 0.0
    %1487 = vmatpush1.msra.mxu0 %v1481
    %1488 = vmatprep.subr.mxu0 0.0
    %1489 = vmatpush1.msra.mxu0 0.0
    %1490 = vmatprep.subr.mxu0 0.0
    %1491 = vmatpush1.msra.mxu0 0.0
    %1492 = vmatprep.subr.mxu0 0.0
    %1493 = vmatpush1.msra.mxu0 0.0
    %1494 = vmatprep.subr.mxu0 0.0
    %1495 = vmatpush1.msra.mxu0 0.0
    %1496 = vmatprep.subr.mxu0 0.0
    %1497 = vmatpush1.msra.mxu0 0.0
    %1498 = vmatprep.subr.mxu0 0.0
    %1499 = vmatpush1.msra.mxu0 0.0
    %1500 = vmatprep.subr.mxu0 0.0
    %1501 = vmatpush1.msra.mxu0 0.0
    %1502 = vmatprep.subr.mxu0 0.0
    %1503 = vmatpush1.msra.mxu0 0.0
    %1504 = vmatprep.subr.mxu0 0.0
    %1505 = vmatpush1.msra.mxu0 0.0
    %1506 = vmatprep.subr.mxu0 0.0
    %1507 = vmatpush1.msra.mxu0 0.0
    %1508 = vmatprep.subr.mxu0 0.0
    %1509 = vmatpush1.msra.mxu0 0.0
    %1510 = vmatprep.subr.mxu0 0.0
    %1511 = vmatpush1.msra.mxu0 0.0
    %1512 = vmatprep.subr.mxu0 0.0
    %1513 = vmatpush1.msra.mxu0 0.0
    %1514 = vmatprep.subr.mxu0 0.0
    %1515 = vmatpush1.msra.mxu0 0.0
    %1516 = vmatprep.subr.mxu0 0.0
    %1517 = vmatpush1.msra.mxu0 0.0
    %1518 = vmatprep.subr.mxu0 0.0
    %1519 = vmatpush1.msra.mxu0 0.0
    %1520 = vmatprep.subr.mxu0 0.0
    %1521 = vmatpush1.msra.mxu0 0.0
    %1522 = vmatprep.subr.mxu0 0.0
    %1523 = vmatpush1.msra.mxu0 0.0
    %1524 = vmatprep.subr.mxu0 0.0
    %1525 = vmatpush1.msra.mxu0 0.0
    %1526 = vmatprep.subr.mxu0 0.0
    %1527 = vmatpush1.msra.mxu0 0.0
    %1528 = vmatprep.subr.mxu0 0.0
    %1529 = vmatpush1.msra.mxu0 0.0
    %1530 = vmatprep.subr.mxu0 0.0
    %1531 = vmatpush1.msra.mxu0 0.0
    %1532 = vmatprep.subr.mxu0 0.0
    %1533 = vmatpush1.msra.mxu0 0.0
    %1534 = vmatprep.subr.mxu0 0.0
    %1535 = vmatpush1.msra.mxu0 0.0
    %1536 = vmatprep.subr.mxu0 0.0
    %1537 = vmatpush1.msra.mxu0 0.0
    %1538 = vmatprep.subr.mxu0 0.0
    %1539 = vmatpush1.msra.mxu0 0.0
    %1540 = vmatprep.subr.mxu0 0.0
    %1541 = vmatpush1.msra.mxu0 0.0
    %1542 = vmatprep.subr.mxu0 0.0
    %1543 = vmatpush1.msra.mxu0 0.0
    %1544 = vmatprep.subr.mxu0 0.0
    %1545 = vmatpush1.msra.mxu0 0.0
    %1546 = vmatprep.subr.mxu0 0.0
    %1547 = vmatpush1.msra.mxu0 0.0
    %1548 = vmatprep.subr.mxu0 0.0
    %1549 = vmatpush1.msra.mxu0 0.0
    %1550 = vmatprep.mubr.f32.mxu0 0.0
    %1551 = vmatmul.mubr.f32.gmra.mrb[0].mxu0 %v1484
    %v1552 = vpop.f32.mrb[0].mxu0
    %v1553 = vadd.f32 0.0, %v1552
    %v1554 = vpop.f32.mrb[0].mxu0
    %1555 = vdwg.mxu0
    %1556 = vrot.lane.b32.xlu0 %v463, 112
    %v1557 = vpop.permute.xlu0 %1556
    %v1560 = vsel %vm477, %v1479, 0
    %1562 = vmatprep.subr.mxu0 0.0
    %1563 = vmatpush1.msra.mxu0 %v1557
    %1564 = vmatprep.subr.mxu0 0.0
    %1565 = vmatpush1.msra.mxu0 0.0
    %1566 = vmatprep.subr.mxu0 0.0
    %1567 = vmatpush1.msra.mxu0 0.0
    %1568 = vmatprep.subr.mxu0 0.0
    %1569 = vmatpush1.msra.mxu0 0.0
    %1570 = vmatprep.subr.mxu0 0.0
    %1571 = vmatpush1.msra.mxu0 0.0
    %1572 = vmatprep.subr.mxu0 0.0
    %1573 = vmatpush1.msra.mxu0 0.0
    %1574 = vmatprep.subr.mxu0 0.0
    %1575 = vmatpush1.msra.mxu0 0.0
    %1576 = vmatprep.subr.mxu0 0.0
    %1577 = vmatpush1.msra.mxu0 0.0
    %1578 = vmatprep.subr.mxu0 0.0
    %1579 = vmatpush1.msra.mxu0 0.0
    %1580 = vmatprep.subr.mxu0 0.0
    %1581 = vmatpush1.msra.mxu0 0.0
    %1582 = vmatprep.subr.mxu0 0.0
    %1583 = vmatpush1.msra.mxu0 0.0
    %1584 = vmatprep.subr.mxu0 0.0
    %1585 = vmatpush1.msra.mxu0 0.0
    %1586 = vmatprep.subr.mxu0 0.0
    %1587 = vmatpush1.msra.mxu0 0.0
    %1588 = vmatprep.subr.mxu0 0.0
    %1589 = vmatpush1.msra.mxu0 0.0
    %1590 = vmatprep.subr.mxu0 0.0
    %1591 = vmatpush1.msra.mxu0 0.0
    %1592 = vmatprep.subr.mxu0 0.0
    %1593 = vmatpush1.msra.mxu0 0.0
    %1594 = vmatprep.subr.mxu0 0.0
    %1595 = vmatpush1.msra.mxu0 0.0
    %1596 = vmatprep.subr.mxu0 0.0
    %1597 = vmatpush1.msra.mxu0 0.0
    %1598 = vmatprep.subr.mxu0 0.0
    %1599 = vmatpush1.msra.mxu0 0.0
    %1600 = vmatprep.subr.mxu0 0.0
    %1601 = vmatpush1.msra.mxu0 0.0
    %1602 = vmatprep.subr.mxu0 0.0
    %1603 = vmatpush1.msra.mxu0 0.0
    %1604 = vmatprep.subr.mxu0 0.0
    %1605 = vmatpush1.msra.mxu0 0.0
    %1606 = vmatprep.subr.mxu0 0.0
    %1607 = vmatpush1.msra.mxu0 0.0
    %1608 = vmatprep.subr.mxu0 0.0
    %1609 = vmatpush1.msra.mxu0 0.0
    %1610 = vmatprep.subr.mxu0 0.0
    %1611 = vmatpush1.msra.mxu0 0.0
    %1612 = vmatprep.subr.mxu0 0.0
    %1613 = vmatpush1.msra.mxu0 0.0
    %1614 = vmatprep.subr.mxu0 0.0
    %1615 = vmatpush1.msra.mxu0 0.0
    %1616 = vmatprep.subr.mxu0 0.0
    %1617 = vmatpush1.msra.mxu0 0.0
    %1618 = vmatprep.subr.mxu0 0.0
    %1619 = vmatpush1.msra.mxu0 0.0
    %1620 = vmatprep.subr.mxu0 0.0
    %1621 = vmatpush1.msra.mxu0 0.0
    %1622 = vmatprep.subr.mxu0 0.0
    %1623 = vmatpush1.msra.mxu0 0.0
    %1624 = vmatprep.subr.mxu0 0.0
    %1625 = vmatpush1.msra.mxu0 0.0
    %1626 = vmatprep.mubr.f32.mxu0 0.0
    %1627 = vmatmul.mubr.f32.gmra.mrb[0].mxu0 %v1560
    %v1628 = vpop.f32.mrb[0].mxu0
    %v1629 = vadd.f32 0.0, %v1628
    %v1630 = vpop.f32.mrb[0].mxu0
    %1631 = vdwg.mxu0
    %v1633 = vsel %vm477, %v1553, 0
    %v1636 = vsel %vm477, %v1629, 0
    %1638 = vmatprep.subr.mxu0 0.0
    %1639 = vmatpush1.msra.mxu0 %v198
    %1640 = vmatprep.subr.mxu0 0.0
    %1641 = vmatpush1.msra.mxu0 0.0
    %1642 = vmatprep.subr.mxu0 0.0
    %1643 = vmatpush1.msra.mxu0 0.0
    %1644 = vmatprep.subr.mxu0 0.0
    %1645 = vmatpush1.msra.mxu0 0.0
    %1646 = vmatprep.subr.mxu0 0.0
    %1647 = vmatpush1.msra.mxu0 0.0
    %1648 = vmatprep.subr.mxu0 0.0
    %1649 = vmatpush1.msra.mxu0 0.0
    %1650 = vmatprep.subr.mxu0 0.0
    %1651 = vmatpush1.msra.mxu0 0.0
    %1652 = vmatprep.subr.mxu0 0.0
    %1653 = vmatpush1.msra.mxu0 0.0
    %1654 = vmatprep.subr.mxu0 0.0
    %1655 = vmatpush1.msra.mxu0 0.0
    %1656 = vmatprep.subr.mxu0 0.0
    %1657 = vmatpush1.msra.mxu0 0.0
    %1658 = vmatprep.subr.mxu0 0.0
    %1659 = vmatpush1.msra.mxu0 0.0
    %1660 = vmatprep.subr.mxu0 0.0
    %1661 = vmatpush1.msra.mxu0 0.0
    %1662 = vmatprep.subr.mxu0 0.0
    %1663 = vmatpush1.msra.mxu0 0.0
    %1664 = vmatprep.subr.mxu0 0.0
    %1665 = vmatpush1.msra.mxu0 0.0
    %1666 = vmatprep.subr.mxu0 0.0
    %1667 = vmatpush1.msra.mxu0 0.0
    %1668 = vmatprep.subr.mxu0 0.0
    %1669 = vmatpush1.msra.mxu0 0.0
    %1670 = vmatprep.subr.mxu0 0.0
    %1671 = vmatpush1.msra.mxu0 0.0
    %1672 = vmatprep.subr.mxu0 0.0
    %1673 = vmatpush1.msra.mxu0 0.0
    %1674 = vmatprep.subr.mxu0 0.0
    %1675 = vmatpush1.msra.mxu0 0.0
    %1676 = vmatprep.subr.mxu0 0.0
    %1677 = vmatpush1.msra.mxu0 0.0
    %1678 = vmatprep.subr.mxu0 0.0
    %1679 = vmatpush1.msra.mxu0 0.0
    %1680 = vmatprep.subr.mxu0 0.0
    %1681 = vmatpush1.msra.mxu0 0.0
    %1682 = vmatprep.subr.mxu0 0.0
    %1683 = vmatpush1.msra.mxu0 0.0
    %1684 = vmatprep.subr.mxu0 0.0
    %1685 = vmatpush1.msra.mxu0 0.0
    %1686 = vmatprep.subr.mxu0 0.0
    %1687 = vmatpush1.msra.mxu0 0.0
    %1688 = vmatprep.subr.mxu0 0.0
    %1689 = vmatpush1.msra.mxu0 0.0
    %1690 = vmatprep.subr.mxu0 0.0
    %1691 = vmatpush1.msra.mxu0 0.0
    %1692 = vmatprep.subr.mxu0 0.0
    %1693 = vmatpush1.msra.mxu0 0.0
    %1694 = vmatprep.subr.mxu0 0.0
    %1695 = vmatpush1.msra.mxu0 0.0
    %1696 = vmatprep.subr.mxu0 0.0
    %1697 = vmatpush1.msra.mxu0 0.0
    %1698 = vmatprep.subr.mxu0 0.0
    %1699 = vmatpush1.msra.mxu0 0.0
    %1700 = vmatprep.subr.mxu0 0.0
    %1701 = vmatpush1.msra.mxu0 0.0
    %1702 = vmatprep.mubr.f32.mxu0 0.0
    %1703 = vmatmul.mubr.f32.gmra.mrb[0].mxu0 %v1633
    %v1704 = vpop.f32.mrb[0].mxu0
    %v1705 = vadd.f32 0.0, %v1704
    %v1706 = vpop.f32.mrb[0].mxu0
    %1707 = vmatprep.mubr.f32.mxu0 0.0
    %1708 = vmatmul.mubr.f32.gmra.mrb[0].mxu0 %v1636
    %v1709 = vpop.f32.mrb[0].mxu0
    %v1710 = vadd.f32 0.0, %v1709
    %v1711 = vpop.f32.mrb[0].mxu0
    %1712 = vdwg.mxu0
    %v1713 = vadd.f32 %v1300, %v1705
    %v1714 = vadd.f32 %v1301, %v1710
    %1715 = vrot.lane.b32.xlu0 %v292, 104
    %v1716 = vpop.permute.xlu0 %1715
    %1717 = vrot.lane.b32.xlu0 %v372, 104
    %v1718 = vpop.permute.xlu0 %1717
    %v1719 = vsel %vm477, %v1716, 0
    %v1721 = vsel %vm477, %v1718, 0
    %1723 = vmatprep.subr.mxu0 0.0
    %1724 = vmatpush1.xpose.msra.mxu0 %v1721
    %1725 = vmatprep.subr.mxu0 0.0
    %1726 = vmatpush1.xpose.msra.mxu0 0.0
    %1727 = vmatprep.subr.mxu0 0.0
    %1728 = vmatpush1.xpose.msra.mxu0 0.0
    %1729 = vmatprep.subr.mxu0 0.0
    %1730 = vmatpush1.xpose.msra.mxu0 0.0
    %1731 = vmatprep.subr.mxu0 0.0
    %1732 = vmatpush1.xpose.msra.mxu0 0.0
    %1733 = vmatprep.subr.mxu0 0.0
    %1734 = vmatpush1.xpose.msra.mxu0 0.0
    %1735 = vmatprep.subr.mxu0 0.0
    %1736 = vmatpush1.xpose.msra.mxu0 0.0
    %1737 = vmatprep.subr.mxu0 0.0
    %1738 = vmatpush1.xpose.msra.mxu0 0.0
    %1739 = vmatprep.subr.mxu0 0.0
    %1740 = vmatpush1.xpose.msra.mxu0 0.0
    %1741 = vmatprep.subr.mxu0 0.0
    %1742 = vmatpush1.xpose.msra.mxu0 0.0
    %1743 = vmatprep.subr.mxu0 0.0
    %1744 = vmatpush1.xpose.msra.mxu0 0.0
    %1745 = vmatprep.subr.mxu0 0.0
    %1746 = vmatpush1.xpose.msra.mxu0 0.0
    %1747 = vmatprep.subr.mxu0 0.0
    %1748 = vmatpush1.xpose.msra.mxu0 0.0
    %1749 = vmatprep.subr.mxu0 0.0
    %1750 = vmatpush1.xpose.msra.mxu0 0.0
    %1751 = vmatprep.subr.mxu0 0.0
    %1752 = vmatpush1.xpose.msra.mxu0 0.0
    %1753 = vmatprep.subr.mxu0 0.0
    %1754 = vmatpush1.xpose.msra.mxu0 0.0
    %1755 = vmatprep.subr.mxu0 0.0
    %1756 = vmatpush1.xpose.msra.mxu0 0.0
    %1757 = vmatprep.subr.mxu0 0.0
    %1758 = vmatpush1.xpose.msra.mxu0 0.0
    %1759 = vmatprep.subr.mxu0 0.0
    %1760 = vmatpush1.xpose.msra.mxu0 0.0
    %1761 = vmatprep.subr.mxu0 0.0
    %1762 = vmatpush1.xpose.msra.mxu0 0.0
    %1763 = vmatprep.subr.mxu0 0.0
    %1764 = vmatpush1.xpose.msra.mxu0 0.0
    %1765 = vmatprep.subr.mxu0 0.0
    %1766 = vmatpush1.xpose.msra.mxu0 0.0
    %1767 = vmatprep.subr.mxu0 0.0
    %1768 = vmatpush1.xpose.msra.mxu0 0.0
    %1769 = vmatprep.subr.mxu0 0.0
    %1770 = vmatpush1.xpose.msra.mxu0 0.0
    %1771 = vmatprep.subr.mxu0 0.0
    %1772 = vmatpush1.xpose.msra.mxu0 0.0
    %1773 = vmatprep.subr.mxu0 0.0
    %1774 = vmatpush1.xpose.msra.mxu0 0.0
    %1775 = vmatprep.subr.mxu0 0.0
    %1776 = vmatpush1.xpose.msra.mxu0 0.0
    %1777 = vmatprep.subr.mxu0 0.0
    %1778 = vmatpush1.xpose.msra.mxu0 0.0
    %1779 = vmatprep.subr.mxu0 0.0
    %1780 = vmatpush1.xpose.msra.mxu0 0.0
    %1781 = vmatprep.subr.mxu0 0.0
    %1782 = vmatpush1.xpose.msra.mxu0 0.0
    %1783 = vmatprep.subr.mxu0 0.0
    %1784 = vmatpush1.xpose.msra.mxu0 0.0
    %1785 = vmatprep.subr.mxu0 0.0
    %1786 = vmatpush1.xpose.msra.mxu0 0.0
    %1787 = vmatprep.mubr.f32.mxu0 0.0
    %1788 = vmatmul.mubr.f32.gmra.mrb[0].mxu0 %v1719
    %v1789 = vpop.f32.mrb[0].mxu0
    %v1790 = vadd.f32 %v470, %v1789
    %v1791 = vpop.f32.mrb[0].mxu0
    %1792 = vdwg.mxu0
    %1793 = vrot.lane.b32.xlu0 %v293, 104
    %v1794 = vpop.permute.xlu0 %1793
    %1795 = vrot.lane.b32.xlu0 %v377, 104
    %v1796 = vpop.permute.xlu0 %1795
    %v1797 = vsel %vm477, %v1794, 0
    %v1799 = vsel %vm477, %v1796, 0
    %1801 = vmatprep.subr.mxu0 0.0
    %1802 = vmatpush1.xpose.msra.mxu0 %v1799
    %1803 = vmatprep.subr.mxu0 0.0
    %1804 = vmatpush1.xpose.msra.mxu0 0.0
    %1805 = vmatprep.subr.mxu0 0.0
    %1806 = vmatpush1.xpose.msra.mxu0 0.0
    %1807 = vmatprep.subr.mxu0 0.0
    %1808 = vmatpush1.xpose.msra.mxu0 0.0
    %1809 = vmatprep.subr.mxu0 0.0
    %1810 = vmatpush1.xpose.msra.mxu0 0.0
    %1811 = vmatprep.subr.mxu0 0.0
    %1812 = vmatpush1.xpose.msra.mxu0 0.0
    %1813 = vmatprep.subr.mxu0 0.0
    %1814 = vmatpush1.xpose.msra.mxu0 0.0
    %1815 = vmatprep.subr.mxu0 0.0
    %1816 = vmatpush1.xpose.msra.mxu0 0.0
    %1817 = vmatprep.subr.mxu0 0.0
    %1818 = vmatpush1.xpose.msra.mxu0 0.0
    %1819 = vmatprep.subr.mxu0 0.0
    %1820 = vmatpush1.xpose.msra.mxu0 0.0
    %1821 = vmatprep.subr.mxu0 0.0
    %1822 = vmatpush1.xpose.msra.mxu0 0.0
    %1823 = vmatprep.subr.mxu0 0.0
    %1824 = vmatpush1.xpose.msra.mxu0 0.0
    %1825 = vmatprep.subr.mxu0 0.0
    %1826 = vmatpush1.xpose.msra.mxu0 0.0
    %1827 = vmatprep.subr.mxu0 0.0
    %1828 = vmatpush1.xpose.msra.mxu0 0.0
    %1829 = vmatprep.subr.mxu0 0.0
    %1830 = vmatpush1.xpose.msra.mxu0 0.0
    %1831 = vmatprep.subr.mxu0 0.0
    %1832 = vmatpush1.xpose.msra.mxu0 0.0
    %1833 = vmatprep.subr.mxu0 0.0
    %1834 = vmatpush1.xpose.msra.mxu0 0.0
    %1835 = vmatprep.subr.mxu0 0.0
    %1836 = vmatpush1.xpose.msra.mxu0 0.0
    %1837 = vmatprep.subr.mxu0 0.0
    %1838 = vmatpush1.xpose.msra.mxu0 0.0
    %1839 = vmatprep.subr.mxu0 0.0
    %1840 = vmatpush1.xpose.msra.mxu0 0.0
    %1841 = vmatprep.subr.mxu0 0.0
    %1842 = vmatpush1.xpose.msra.mxu0 0.0
    %1843 = vmatprep.subr.mxu0 0.0
    %1844 = vmatpush1.xpose.msra.mxu0 0.0
    %1845 = vmatprep.subr.mxu0 0.0
    %1846 = vmatpush1.xpose.msra.mxu0 0.0
    %1847 = vmatprep.subr.mxu0 0.0
    %1848 = vmatpush1.xpose.msra.mxu0 0.0
    %1849 = vmatprep.subr.mxu0 0.0
    %1850 = vmatpush1.xpose.msra.mxu0 0.0
    %1851 = vmatprep.subr.mxu0 0.0
    %1852 = vmatpush1.xpose.msra.mxu0 0.0
    %1853 = vmatprep.subr.mxu0 0.0
    %1854 = vmatpush1.xpose.msra.mxu0 0.0
    %1855 = vmatprep.subr.mxu0 0.0
    %1856 = vmatpush1.xpose.msra.mxu0 0.0
    %1857 = vmatprep.subr.mxu0 0.0
    %1858 = vmatpush1.xpose.msra.mxu0 0.0
    %1859 = vmatprep.subr.mxu0 0.0
    %1860 = vmatpush1.xpose.msra.mxu0 0.0
    %1861 = vmatprep.subr.mxu0 0.0
    %1862 = vmatpush1.xpose.msra.mxu0 0.0
    %1863 = vmatprep.subr.mxu0 0.0
    %1864 = vmatpush1.xpose.msra.mxu0 0.0
    %1865 = vmatprep.mubr.f32.mxu0 0.0
    %1866 = vmatmul.mubr.f32.gmra.mrb[0].mxu0 %v1797
    %v1867 = vpop.f32.mrb[0].mxu0
    %v1868 = vadd.f32 %v474, %v1867
    %v1869 = vpop.f32.mrb[0].mxu0
    %1870 = vdwg.mxu0
    %v1871 = vsel %vm477, %v1790, -inf
    %1872 = vmax.xlane.f32.xlu0 %v1871
    %v1873 = vpop.xlane.xlu0 %1872
    %v1874 = vsel %vm477, %v1868, -inf
    %1875 = vmax.xlane.f32.xlu0 %v1874
    %v1876 = vpop.xlane.xlu0 %1875
    %v1877 = vsub.f32 %v1790, %v1873
    %v1878 = vsub.f32 %v1868, %v1876
    %v1879 = vmul.f32 %v1877, 1.442695
    %v1880 = vpow.pop %v1879
    %v1881 = vmul.f32 %v1878, 1.442695
    %v1882 = vpow.pop %v1881
    %v1883 = vsel %vm477, %v1880, 0.0
    %1884 = vadd.xlane.f32.xlu0 %v1883
    %v1885 = vpop.xlane.xlu0 %1884
    %v1886 = vsel %vm477, %v1882, 0.0
    %1887 = vadd.xlane.f32.xlu0 %v1886
    %v1888 = vpop.xlane.xlu0 %1887
    %v1889 = vrcp.pop %v1885
    %v1890 = vmul.f32 %v1880, %v1889
    %v1891 = vrcp.pop %v1888
    %v1892 = vmul.f32 %v1882, %v1891
    %1893 = vrot.lane.b32.xlu0 %v458, 104
    %v1894 = vpop.permute.xlu0 %1893
    %v1897 = vsel %vm477, %v1890, 0
    %1899 = vmatprep.subr.mxu0 0.0
    %1900 = vmatpush1.msra.mxu0 %v1894
    %1901 = vmatprep.subr.mxu0 0.0
    %1902 = vmatpush1.msra.mxu0 0.0
    %1903 = vmatprep.subr.mxu0 0.0
    %1904 = vmatpush1.msra.mxu0 0.0
    %1905 = vmatprep.subr.mxu0 0.0
    %1906 = vmatpush1.msra.mxu0 0.0
    %1907 = vmatprep.subr.mxu0 0.0
    %1908 = vmatpush1.msra.mxu0 0.0
    %1909 = vmatprep.subr.mxu0 0.0
    %1910 = vmatpush1.msra.mxu0 0.0
    %1911 = vmatprep.subr.mxu0 0.0
    %1912 = vmatpush1.msra.mxu0 0.0
    %1913 = vmatprep.subr.mxu0 0.0
    %1914 = vmatpush1.msra.mxu0 0.0
    %1915 = vmatprep.subr.mxu0 0.0
    %1916 = vmatpush1.msra.mxu0 0.0
    %1917 = vmatprep.subr.mxu0 0.0
    %1918 = vmatpush1.msra.mxu0 0.0
    %1919 = vmatprep.subr.mxu0 0.0
    %1920 = vmatpush1.msra.mxu0 0.0
    %1921 = vmatprep.subr.mxu0 0.0
    %1922 = vmatpush1.msra.mxu0 0.0
    %1923 = vmatprep.subr.mxu0 0.0
    %1924 = vmatpush1.msra.mxu0 0.0
    %1925 = vmatprep.subr.mxu0 0.0
    %1926 = vmatpush1.msra.mxu0 0.0
    %1927 = vmatprep.subr.mxu0 0.0
    %1928 = vmatpush1.msra.mxu0 0.0
    %1929 = vmatprep.subr.mxu0 0.0
    %1930 = vmatpush1.msra.mxu0 0.0
    %1931 = vmatprep.subr.mxu0 0.0
    %1932 = vmatpush1.msra.mxu0 0.0
    %1933 = vmatprep.subr.mxu0 0.0
    %1934 = vmatpush1.msra.mxu0 0.0
    %1935 = vmatprep.subr.mxu0 0.0
    %1936 = vmatpush1.msra.mxu0 0.0
    %1937 = vmatprep.subr.mxu0 0.0
    %1938 = vmatpush1.msra.mxu0 0.0
    %1939 = vmatprep.subr.mxu0 0.0
    %1940 = vmatpush1.msra.mxu0 0.0
    %1941 = vmatprep.subr.mxu0 0.0
    %1942 = vmatpush1.msra.mxu0 0.0
    %1943 = vmatprep.subr.mxu0 0.0
    %1944 = vmatpush1.msra.mxu0 0.0
    %1945 = vmatprep.subr.mxu0 0.0
    %1946 = vmatpush1.msra.mxu0 0.0
    %1947 = vmatprep.subr.mxu0 0.0
    %1948 = vmatpush1.msra.mxu0 0.0
    %1949 = vmatprep.subr.mxu0 0.0
    %1950 = vmatpush1.msra.mxu0 0.0
    %1951 = vmatprep.subr.mxu0 0.0
    %1952 = vmatpush1.msra.mxu0 0.0
    %1953 = vmatprep.subr.mxu0 0.0
    %1954 = vmatpush1.msra.mxu0 0.0
    %1955 = vmatprep.subr.mxu0 0.0
    %1956 = vmatpush1.msra.mxu0 0.0
    %1957 = vmatprep.subr.mxu0 0.0
    %1958 = vmatpush1.msra.mxu0 0.0
    %1959 = vmatprep.subr.mxu0 0.0
    %1960 = vmatpush1.msra.mxu0 0.0
    %1961 = vmatprep.subr.mxu0 0.0
    %1962 = vmatpush1.msra.mxu0 0.0
    %1963 = vmatprep.mubr.f32.mxu0 0.0
    %1964 = vmatmul.mubr.f32.gmra.mrb[0].mxu0 %v1897
    %v1965 = vpop.f32.mrb[0].mxu0
    %v1966 = vadd.f32 0.0, %v1965
    %v1967 = vpop.f32.mrb[0].mxu0
    %1968 = vdwg.mxu0
    %1969 = vrot.lane.b32.xlu0 %v463, 104
    %v1970 = vpop.permute.xlu0 %1969
    %v1973 = vsel %vm477, %v1892, 0
    %1975 = vmatprep.subr.mxu0 0.0
    %1976 = vmatpush1.msra.mxu0 %v1970
    %1977 = vmatprep.subr.mxu0 0.0
    %1978 = vmatpush1.msra.mxu0 0.0
    %1979 = vmatprep.subr.mxu0 0.0
    %1980 = vmatpush1.msra.mxu0 0.0
    %1981 = vmatprep.subr.mxu0 0.0
    %1982 = vmatpush1.msra.mxu0 0.0
    %1983 = vmatprep.subr.mxu0 0.0
    %1984 = vmatpush1.msra.mxu0 0.0
    %1985 = vmatprep.subr.mxu0 0.0
    %1986 = vmatpush1.msra.mxu0 0.0
    %1987 = vmatprep.subr.mxu0 0.0
    %1988 = vmatpush1.msra.mxu0 0.0
    %1989 = vmatprep.subr.mxu0 0.0
    %1990 = vmatpush1.msra.mxu0 0.0
    %1991 = vmatprep.subr.mxu0 0.0
    %1992 = vmatpush1.msra.mxu0 0.0
    %1993 = vmatprep.subr.mxu0 0.0
    %1994 = vmatpush1.msra.mxu0 0.0
    %1995 = vmatprep.subr.mxu0 0.0
    %1996 = vmatpush1.msra.mxu0 0.0
    %1997 = vmatprep.subr.mxu0 0.0
    %1998 = vmatpush1.msra.mxu0 0.0
    %1999 = vmatprep.subr.mxu0 0.0
    %2000 = vmatpush1.msra.mxu0 0.0
    %2001 = vmatprep.subr.mxu0 0.0
    %2002 = vmatpush1.msra.mxu0 0.0
    %2003 = vmatprep.subr.mxu0 0.0
    %2004 = vmatpush1.msra.mxu0 0.0
    %2005 = vmatprep.subr.mxu0 0.0
    %2006 = vmatpush1.msra.mxu0 0.0
    %2007 = vmatprep.subr.mxu0 0.0
    %2008 = vmatpush1.msra.mxu0 0.0
    %2009 = vmatprep.subr.mxu0 0.0
    %2010 = vmatpush1.msra.mxu0 0.0
    %2011 = vmatprep.subr.mxu0 0.0
    %2012 = vmatpush1.msra.mxu0 0.0
    %2013 = vmatprep.subr.mxu0 0.0
    %2014 = vmatpush1.msra.mxu0 0.0
    %2015 = vmatprep.subr.mxu0 0.0
    %2016 = vmatpush1.msra.mxu0 0.0
    %2017 = vmatprep.subr.mxu0 0.0
    %2018 = vmatpush1.msra.mxu0 0.0
    %2019 = vmatprep.subr.mxu0 0.0
    %2020 = vmatpush1.msra.mxu0 0.0
    %2021 = vmatprep.subr.mxu0 0.0
    %2022 = vmatpush1.msra.mxu0 0.0
    %2023 = vmatprep.subr.mxu0 0.0
    %2024 = vmatpush1.msra.mxu0 0.0
    %2025 = vmatprep.subr.mxu0 0.0
    %2026 = vmatpush1.msra.mxu0 0.0
    %2027 = vmatprep.subr.mxu0 0.0
    %2028 = vmatpush1.msra.mxu0 0.0
    %2029 = vmatprep.subr.mxu0 0.0
    %2030 = vmatpush1.msra.mxu0 0.0
    %2031 = vmatprep.subr.mxu0 0.0
    %2032 = vmatpush1.msra.mxu0 0.0
    %2033 = vmatprep.subr.mxu0 0.0
    %2034 = vmatpush1.msra.mxu0 0.0
    %2035 = vmatprep.subr.mxu0 0.0
    %2036 = vmatpush1.msra.mxu0 0.0
    %2037 = vmatprep.subr.mxu0 0.0
    %2038 = vmatpush1.msra.mxu0 0.0
    %2039 = vmatprep.mubr.f32.mxu0 0.0
    %2040 = vmatmul.mubr.f32.gmra.mrb[0].mxu0 %v1973
    %v2041 = vpop.f32.mrb[0].mxu0
    %v2042 = vadd.f32 0.0, %v2041
    %v2043 = vpop.f32.mrb[0].mxu0
    %2044 = vdwg.mxu0
    %v2046 = vsel %vm477, %v1966, 0
    %v2049 = vsel %vm477, %v2042, 0
    %2051 = vmatprep.subr.mxu0 0.0
    %2052 = vmatpush1.msra.mxu0 %v199
    %2053 = vmatprep.subr.mxu0 0.0
    %2054 = vmatpush1.msra.mxu0 0.0
    %2055 = vmatprep.subr.mxu0 0.0
    %2056 = vmatpush1.msra.mxu0 0.0
    %2057 = vmatprep.subr.mxu0 0.0
    %2058 = vmatpush1.msra.mxu0 0.0
    %2059 = vmatprep.subr.mxu0 0.0
    %2060 = vmatpush1.msra.mxu0 0.0
    %2061 = vmatprep.subr.mxu0 0.0
    %2062 = vmatpush1.msra.mxu0 0.0
    %2063 = vmatprep.subr.mxu0 0.0
    %2064 = vmatpush1.msra.mxu0 0.0
    %2065 = vmatprep.subr.mxu0 0.0
    %2066 = vmatpush1.msra.mxu0 0.0
    %2067 = vmatprep.subr.mxu0 0.0
    %2068 = vmatpush1.msra.mxu0 0.0
    %2069 = vmatprep.subr.mxu0 0.0
    %2070 = vmatpush1.msra.mxu0 0.0
    %2071 = vmatprep.subr.mxu0 0.0
    %2072 = vmatpush1.msra.mxu0 0.0
    %2073 = vmatprep.subr.mxu0 0.0
    %2074 = vmatpush1.msra.mxu0 0.0
    %2075 = vmatprep.subr.mxu0 0.0
    %2076 = vmatpush1.msra.mxu0 0.0
    %2077 = vmatprep.subr.mxu0 0.0
    %2078 = vmatpush1.msra.mxu0 0.0
    %2079 = vmatprep.subr.mxu0 0.0
    %2080 = vmatpush1.msra.mxu0 0.0
    %2081 = vmatprep.subr.mxu0 0.0
    %2082 = vmatpush1.msra.mxu0 0.0
    %2083 = vmatprep.subr.mxu0 0.0
    %2084 = vmatpush1.msra.mxu0 0.0
    %2085 = vmatprep.subr.mxu0 0.0
    %2086 = vmatpush1.msra.mxu0 0.0
    %2087 = vmatprep.subr.mxu0 0.0
    %2088 = vmatpush1.msra.mxu0 0.0
    %2089 = vmatprep.subr.mxu0 0.0
    %2090 = vmatpush1.msra.mxu0 0.0
    %2091 = vmatprep.subr.mxu0 0.0
    %2092 = vmatpush1.msra.mxu0 0.0
    %2093 = vmatprep.subr.mxu0 0.0
    %2094 = vmatpush1.msra.mxu0 0.0
    %2095 = vmatprep.subr.mxu0 0.0
    %2096 = vmatpush1.msra.mxu0 0.0
    %2097 = vmatprep.subr.mxu0 0.0
    %2098 = vmatpush1.msra.mxu0 0.0
    %2099 = vmatprep.subr.mxu0 0.0
    %2100 = vmatpush1.msra.mxu0 0.0
    %2101 = vmatprep.subr.mxu0 0.0
    %2102 = vmatpush1.msra.mxu0 0.0
    %2103 = vmatprep.subr.mxu0 0.0
    %2104 = vmatpush1.msra.mxu0 0.0
    %2105 = vmatprep.subr.mxu0 0.0
    %2106 = vmatpush1.msra.mxu0 0.0
    %2107 = vmatprep.subr.mxu0 0.0
    %2108 = vmatpush1.msra.mxu0 0.0
    %2109 = vmatprep.subr.mxu0 0.0
    %2110 = vmatpush1.msra.mxu0 0.0
    %2111 = vmatprep.subr.mxu0 0.0
    %2112 = vmatpush1.msra.mxu0 0.0
    %2113 = vmatprep.subr.mxu0 0.0
    %2114 = vmatpush1.msra.mxu0 0.0
    %2115 = vmatprep.mubr.f32.mxu0 0.0
    %2116 = vmatmul.mubr.f32.gmra.mrb[0].mxu0 %v2046
    %v2117 = vpop.f32.mrb[0].mxu0
    %v2118 = vadd.f32 0.0, %v2117
    %v2119 = vpop.f32.mrb[0].mxu0
    %2120 = vmatprep.mubr.f32.mxu0 0.0
    %2121 = vmatmul.mubr.f32.gmra.mrb[0].mxu0 %v2049
    %v2122 = vpop.f32.mrb[0].mxu0
    %v2123 = vadd.f32 0.0, %v2122
    %v2124 = vpop.f32.mrb[0].mxu0
    %2125 = vdwg.mxu0
    %v2126 = vadd.f32 %v1713, %v2118
    %v2127 = vadd.f32 %v1714, %v2123
    %v2128 = vadd.f32 %v168, %v2126
    %v2129 = vadd.f32 %v169, %v2127
    %v2130 = vld [vmem:[%s14] sm:$0x1]
    %v2131 = vld [vmem:[%s15] sm:$0x1]
    %v2132 = vsel %vm126, %v2128, 0.0
    %2133 = vadd.xlane.f32.xlu0 %v2132
    %v2134 = vpop.xlane.xlu0 %2133
    %v2135 = vsel %vm126, %v2129, 0.0
    %2136 = vadd.xlane.f32.xlu0 %v2135
    %v2137 = vpop.xlane.xlu0 %2136
    %v2138 = vmul.f32 %v2134, %v133
    %v2139 = vmul.f32 %v2137, %v133
    %v2140 = vsub.f32 %v2128, %v2138
    %v2141 = vsub.f32 %v2129, %v2139
    %v2142 = vmul.f32 %v2140, %v2140
    %v2143 = vmul.f32 %v2141, %v2141
    %v2144 = vsel %vm126, %v2142, 0.0
    %2145 = vadd.xlane.f32.xlu0 %v2144
    %v2146 = vpop.xlane.xlu0 %2145
    %v2147 = vsel %vm126, %v2143, 0.0
    %2148 = vadd.xlane.f32.xlu0 %v2147
    %v2149 = vpop.xlane.xlu0 %2148
    %v2150 = vmul.f32 %v2146, %v133
    %v2151 = vmul.f32 %v2149, %v133
    %v2152 = vadd.f32 %v2150, 1e-12
    %v2153 = vadd.f32 %v2151, 1e-12
    %v2154 = vrsqrt.pop %v2152
    %v2155 = vrsqrt.pop %v2153
    %v2156 = vmul.f32 %v2140, %v2154
    %v2157 = vmul.f32 %v2141, %v2155
    %v2159 = vlaneseq
    %v2160 = vshrl.u32 %v2159, 7
    %v2161 = vsub.s32 0, %v2160
    %v2162 = vrot.slane %v2130, %v2161
    %v2164 = vmul.f32 %v2156, %v2162
    %v2165 = vmul.f32 %v2157, %v2162
    %v2167 = vlaneseq
    %v2168 = vshrl.u32 %v2167, 7
    %v2169 = vsub.s32 0, %v2168
    %v2170 = vrot.slane %v2131, %v2169
    %v2172 = vadd.f32 %v2164, %v2170
    %v2173 = vadd.f32 %v2165, %v2170
    %v2174 = vld [vmem:[%s16] sm:$0xff]
    %v2175 = vld [vmem:[%s16 + $0x8] sm:$0xff]
    %v2176 = vld [vmem:[%s16 + $0x10] sm:$0xff]
    %v2177 = vld [vmem:[%s16 + $0x18] sm:$0xff]
    %v2178 = vld [vmem:[%s17] sm:$0x1]
    %v2180 = vlaneseq
    %v2181 = vshrl.u32 %v2180, 7
    %v2182 = vsub.s32 0, %v2181
    %v2183 = vrot.slane %v2178, %v2182
    %v2186 = vsel %vm126, %v2172, 0
    %v2189 = vsel %vm126, %v2173, 0
    %2191 = vmatprep.subr.mxu0 0.0
    %2192 = vmatpush1.msra.mxu0 %v2174
    %2193 = vmatprep.subr.mxu0 0.0
    %2194 = vmatpush1.msra.mxu0 %v2175
    %2195 = vmatprep.subr.mxu0 0.0
    %2196 = vmatpush1.msra.mxu0 %v2176
    %2197 = vmatprep.subr.mxu0 0.0
    %2198 = vmatpush1.msra.mxu0 %v2177
    %2199 = vmatprep.subr.mxu0 0.0
    %2200 = vmatpush1.msra.mxu0 0.0
    %2201 = vmatprep.subr.mxu0 0.0
    %2202 = vmatpush1.msra.mxu0 0.0
    %2203 = vmatprep.subr.mxu0 0.0
    %2204 = vmatpush1.msra.mxu0 0.0
    %2205 = vmatprep.subr.mxu0 0.0
    %2206 = vmatpush1.msra.mxu0 0.0
    %2207 = vmatprep.subr.mxu0 0.0
    %2208 = vmatpush1.msra.mxu0 0.0
    %2209 = vmatprep.subr.mxu0 0.0
    %2210 = vmatpush1.msra.mxu0 0.0
    %2211 = vmatprep.subr.mxu0 0.0
    %2212 = vmatpush1.msra.mxu0 0.0
    %2213 = vmatprep.subr.mxu0 0.0
    %2214 = vmatpush1.msra.mxu0 0.0
    %2215 = vmatprep.subr.mxu0 0.0
    %2216 = vmatpush1.msra.mxu0 0.0
    %2217 = vmatprep.subr.mxu0 0.0
    %2218 = vmatpush1.msra.mxu0 0.0
    %2219 = vmatprep.subr.mxu0 0.0
    %2220 = vmatpush1.msra.mxu0 0.0
    %2221 = vmatprep.subr.mxu0 0.0
    %2222 = vmatpush1.msra.mxu0 0.0
    %2223 = vmatprep.subr.mxu0 0.0
    %2224 = vmatpush1.msra.mxu0 0.0
    %2225 = vmatprep.subr.mxu0 0.0
    %2226 = vmatpush1.msra.mxu0 0.0
    %2227 = vmatprep.subr.mxu0 0.0
    %2228 = vmatpush1.msra.mxu0 0.0
    %2229 = vmatprep.subr.mxu0 0.0
    %2230 = vmatpush1.msra.mxu0 0.0
    %2231 = vmatprep.subr.mxu0 0.0
    %2232 = vmatpush1.msra.mxu0 0.0
    %2233 = vmatprep.subr.mxu0 0.0
    %2234 = vmatpush1.msra.mxu0 0.0
    %2235 = vmatprep.subr.mxu0 0.0
    %2236 = vmatpush1.msra.mxu0 0.0
    %2237 = vmatprep.subr.mxu0 0.0
    %2238 = vmatpush1.msra.mxu0 0.0
    %2239 = vmatprep.subr.mxu0 0.0
    %2240 = vmatpush1.msra.mxu0 0.0
    %2241 = vmatprep.subr.mxu0 0.0
    %2242 = vmatpush1.msra.mxu0 0.0
    %2243 = vmatprep.subr.mxu0 0.0
    %2244 = vmatpush1.msra.mxu0 0.0
    %2245 = vmatprep.subr.mxu0 0.0
    %2246 = vmatpush1.msra.mxu0 0.0
    %2247 = vmatprep.subr.mxu0 0.0
    %2248 = vmatpush1.msra.mxu0 0.0
    %2249 = vmatprep.subr.mxu0 0.0
    %2250 = vmatpush1.msra.mxu0 0.0
    %2251 = vmatprep.subr.mxu0 0.0
    %2252 = vmatpush1.msra.mxu0 0.0
    %2253 = vmatprep.subr.mxu0 0.0
    %2254 = vmatpush1.msra.mxu0 0.0
    %2255 = vmatprep.mubr.f32.mxu0 0.0
    %2256 = vmatmul.mubr.f32.gmra.mrb[0].mxu0 %v2186
    %v2257 = vpop.f32.mrb[0].mxu0
    %v2258 = vadd.f32 %v2183, %v2257
    %v2259 = vpop.f32.mrb[0].mxu0
    %2260 = vmatprep.mubr.f32.mxu0 0.0
    %2261 = vmatmul.mubr.f32.gmra.mrb[0].mxu0 %v2189
    %v2262 = vpop.f32.mrb[0].mxu0
    %v2263 = vadd.f32 %v2183, %v2262
    %v2264 = vpop.f32.mrb[0].mxu0
    %2265 = vdwg.mxu0
    %v2266 = vmul.f32 %v2258, 0.5
    %v2267 = vmul.f32 %v2263, 0.5
    %v2268 = vmul.f32 %v2258, 0.044715
    %v2269 = vmul.f32 %v2263, 0.044715
    %v2270 = vmul.f32 %v2268, %v2258
    %v2271 = vmul.f32 %v2269, %v2263
    %v2272 = vmul.f32 %v2270, %v2258
    %v2273 = vmul.f32 %v2271, %v2263
    %v2274 = vadd.f32 %v2258, %v2272
    %v2275 = vadd.f32 %v2263, %v2273
    %v2276 = vmul.f32 %v2274, 0.7978846
    %v2277 = vmul.f32 %v2275, 0.7978846
    %v2278 = vtanh.pop %v2276
    %v2279 = vtanh.pop %v2277
    %v2280 = vadd.f32 %v2278, 1.0
    %v2281 = vadd.f32 %v2279, 1.0
    %v2282 = vmul.f32 %v2266, %v2280
    %v2283 = vmul.f32 %v2267, %v2281
    %v2284 = vld [vmem:[%s18] sm:$0xff]
    %v2285 = vld [vmem:[%s18 + $0x8] sm:$0xff]
    %v2286 = vld [vmem:[%s18 + $0x10] sm:$0xff]
    %v2287 = vld [vmem:[%s18 + $0x18] sm:$0xff]
    %v2288 = vld [vmem:[%s18 + $0x20] sm:$0xff]
    %v2289 = vld [vmem:[%s18 + $0x28] sm:$0xff]
    %v2290 = vld [vmem:[%s18 + $0x30] sm:$0xff]
    %v2291 = vld [vmem:[%s18 + $0x38] sm:$0xff]
    %v2292 = vld [vmem:[%s18 + $0x40] sm:$0xff]
    %v2293 = vld [vmem:[%s18 + $0x48] sm:$0xff]
    %v2294 = vld [vmem:[%s18 + $0x50] sm:$0xff]
    %v2295 = vld [vmem:[%s18 + $0x58] sm:$0xff]
    %v2296 = vld [vmem:[%s18 + $0x60] sm:$0xff]
    %v2297 = vld [vmem:[%s18 + $0x68] sm:$0xff]
    %v2298 = vld [vmem:[%s18 + $0x70] sm:$0xff]
    %v2299 = vld [vmem:[%s18 + $0x78] sm:$0xff]
    %v2300 = vld [vmem:[%s19] sm:$0x1]
    %v2302 = vlaneseq
    %v2303 = vshrl.u32 %v2302, 7
    %v2304 = vsub.s32 0, %v2303
    %v2305 = vrot.slane %v2300, %v2304
    %2307 = vmatprep.subr.mxu0 0.0
    %2308 = vmatpush1.msra.mxu0 %v2284
    %2309 = vmatprep.subr.mxu0 0.0
    %2310 = vmatpush1.msra.mxu0 %v2285
    %2311 = vmatprep.subr.mxu0 0.0
    %2312 = vmatpush1.msra.mxu0 %v2286
    %2313 = vmatprep.subr.mxu0 0.0
    %2314 = vmatpush1.msra.mxu0 %v2287
    %2315 = vmatprep.subr.mxu0 0.0
    %2316 = vmatpush1.msra.mxu0 %v2288
    %2317 = vmatprep.subr.mxu0 0.0
    %2318 = vmatpush1.msra.mxu0 %v2289
    %2319 = vmatprep.subr.mxu0 0.0
    %2320 = vmatpush1.msra.mxu0 %v2290
    %2321 = vmatprep.subr.mxu0 0.0
    %2322 = vmatpush1.msra.mxu0 %v2291
    %2323 = vmatprep.subr.mxu0 0.0
    %2324 = vmatpush1.msra.mxu0 %v2292
    %2325 = vmatprep.subr.mxu0 0.0
    %2326 = vmatpush1.msra.mxu0 %v2293
    %2327 = vmatprep.subr.mxu0 0.0
    %2328 = vmatpush1.msra.mxu0 %v2294
    %2329 = vmatprep.subr.mxu0 0.0
    %2330 = vmatpush1.msra.mxu0 %v2295
    %2331 = vmatprep.subr.mxu0 0.0
    %2332 = vmatpush1.msra.mxu0 %v2296
    %2333 = vmatprep.subr.mxu0 0.0
    %2334 = vmatpush1.msra.mxu0 %v2297
    %2335 = vmatprep.subr.mxu0 0.0
    %2336 = vmatpush1.msra.mxu0 %v2298
    %2337 = vmatprep.subr.mxu0 0.0
    %2338 = vmatpush1.msra.mxu0 %v2299
    %2339 = vmatprep.subr.mxu0 0.0
    %2340 = vmatpush1.msra.mxu0 0.0
    %2341 = vmatprep.subr.mxu0 0.0
    %2342 = vmatpush1.msra.mxu0 0.0
    %2343 = vmatprep.subr.mxu0 0.0
    %2344 = vmatpush1.msra.mxu0 0.0
    %2345 = vmatprep.subr.mxu0 0.0
    %2346 = vmatpush1.msra.mxu0 0.0
    %2347 = vmatprep.subr.mxu0 0.0
    %2348 = vmatpush1.msra.mxu0 0.0
    %2349 = vmatprep.subr.mxu0 0.0
    %2350 = vmatpush1.msra.mxu0 0.0
    %2351 = vmatprep.subr.mxu0 0.0
    %2352 = vmatpush1.msra.mxu0 0.0
    %2353 = vmatprep.subr.mxu0 0.0
    %2354 = vmatpush1.msra.mxu0 0.0
    %2355 = vmatprep.subr.mxu0 0.0
    %2356 = vmatpush1.msra.mxu0 0.0
    %2357 = vmatprep.subr.mxu0 0.0
    %2358 = vmatpush1.msra.mxu0 0.0
    %2359 = vmatprep.subr.mxu0 0.0
    %2360 = vmatpush1.msra.mxu0 0.0
    %2361 = vmatprep.subr.mxu0 0.0
    %2362 = vmatpush1.msra.mxu0 0.0
    %2363 = vmatprep.subr.mxu0 0.0
    %2364 = vmatpush1.msra.mxu0 0.0
    %2365 = vmatprep.subr.mxu0 0.0
    %2366 = vmatpush1.msra.mxu0 0.0
    %2367 = vmatprep.subr.mxu0 0.0
    %2368 = vmatpush1.msra.mxu0 0.0
    %2369 = vmatprep.subr.mxu0 0.0
    %2370 = vmatpush1.msra.mxu0 0.0
    %2371 = vmatprep.mubr.f32.mxu0 0.0
    %2372 = vmatmul.mubr.f32.gmra.mrb[0].mxu0 %v2282
    %v2373 = vpop.f32.mrb[0].mxu0
    %v2374 = vadd.f32 %v2305, %v2373
    %v2375 = vpop.f32.mrb[0].mxu0
    %2376 = vmatprep.mubr.f32.mxu0 0.0
    %2377 = vmatmul.mubr.f32.gmra.mrb[0].mxu0 %v2283
    %v2378 = vpop.f32.mrb[0].mxu0
    %v2379 = vadd.f32 %v2305, %v2378
    %v2380 = vpop.f32.mrb[0].mxu0
    %2381 = vdwg.mxu0
    %v2382 = vadd.f32 %v2172, %v2374
    %v2383 = vadd.f32 %v2173, %v2379
    %v2384 = vld [vmem:[%s20] sm:$0x1]
    %v2385 = vld [vmem:[%s21] sm:$0x1]
    %v2386 = vsel %vm126, %v2382, 0.0
    %2387 = vadd.xlane.f32.xlu0 %v2386
    %v2388 = vpop.xlane.xlu0 %2387
    %v2389 = vsel %vm126, %v2383, 0.0
    %2390 = vadd.xlane.f32.xlu0 %v2389
    %v2391 = vpop.xlane.xlu0 %2390
    %v2392 = vmul.f32 %v2388, %v133
    %v2393 = vmul.f32 %v2391, %v133
    %v2394 = vsub.f32 %v2382, %v2392
    %v2395 = vsub.f32 %v2383, %v2393
    %v2396 = vmul.f32 %v2394, %v2394
    %v2397 = vmul.f32 %v2395, %v2395
    %v2398 = vsel %vm126, %v2396, 0.0
    %2399 = vadd.xlane.f32.xlu0 %v2398
    %v2400 = vpop.xlane.xlu0 %2399
    %v2401 = vsel %vm126, %v2397, 0.0
    %2402 = vadd.xlane.f32.xlu0 %v2401
    %v2403 = vpop.xlane.xlu0 %2402
    %v2404 = vmul.f32 %v2400, %v133
    %v2405 = vmul.f32 %v2403, %v133
    %v2406 = vadd.f32 %v2404, 1e-12
    %v2407 = vadd.f32 %v2405, 1e-12
    %v2408 = vrsqrt.pop %v2406
    %v2409 = vrsqrt.pop %v2407
    %v2410 = vmul.f32 %v2394, %v2408
    %v2411 = vmul.f32 %v2395, %v2409
    %v2413 = vlaneseq
    %v2414 = vshrl.u32 %v2413, 7
    %v2415 = vsub.s32 0, %v2414
    %v2416 = vrot.slane %v2384, %v2415
    %v2418 = vmul.f32 %v2410, %v2416
    %v2419 = vmul.f32 %v2411, %v2416
    %v2421 = vlaneseq
    %v2422 = vshrl.u32 %v2421, 7
    %v2423 = vsub.s32 0, %v2422
    %v2424 = vrot.slane %v2385, %v2423
    %v2426 = vadd.f32 %v2418, %v2424
    %v2427 = vadd.f32 %v2419, %v2424
    %v2428 = vld [vmem:[#allocation2] sm:$0xff]
    %v2429 = vld [vmem:[#allocation2 + $0x8] sm:$0xff]
    %v2430 = vld [vmem:[#allocation2 + $0x10] sm:$0xff]
    %v2431 = vld [vmem:[#allocation2 + $0x18] sm:$0xff]
    %v2432 = vld [vmem:[%s7] sm:$0x1]
    %v2434 = vlaneseq
    %v2435 = vshrl.u32 %v2434, 7
    %v2436 = vsub.s32 0, %v2435
    %v2437 = vrot.slane %v2432, %v2436
    %v2440 = vsel %vm126, %v2426, 0
    %v2443 = vsel %vm126, %v2427, 0
    %2445 = vmatprep.subr.mxu0 0.0
    %2446 = vmatpush1.msra.mxu0 %v2428
    %2447 = vmatprep.subr.mxu0 0.0
    %2448 = vmatpush1.msra.mxu0 %v2429
    %2449 = vmatprep.subr.mxu0 0.0
    %2450 = vmatpush1.msra.mxu0 %v2430
    %2451 = vmatprep.subr.mxu0 0.0
    %2452 = vmatpush1.msra.mxu0 %v2431
    %2453 = vmatprep.subr.mxu0 0.0
    %2454 = vmatpush1.msra.mxu0 0.0
    %2455 = vmatprep.subr.mxu0 0.0
    %2456 = vmatpush1.msra.mxu0 0.0
    %2457 = vmatprep.subr.mxu0 0.0
    %2458 = vmatpush1.msra.mxu0 0.0
    %2459 = vmatprep.subr.mxu0 0.0
    %2460 = vmatpush1.msra.mxu0 0.0
    %2461 = vmatprep.subr.mxu0 0.0
    %2462 = vmatpush1.msra.mxu0 0.0
    %2463 = vmatprep.subr.mxu0 0.0
    %2464 = vmatpush1.msra.mxu0 0.0
    %2465 = vmatprep.subr.mxu0 0.0
    %2466 = vmatpush1.msra.mxu0 0.0
    %2467 = vmatprep.subr.mxu0 0.0
    %2468 = vmatpush1.msra.mxu0 0.0
    %2469 = vmatprep.subr.mxu0 0.0
    %2470 = vmatpush1.msra.mxu0 0.0
    %2471 = vmatprep.subr.mxu0 0.0
    %2472 = vmatpush1.msra.mxu0 0.0
    %2473 = vmatprep.subr.mxu0 0.0
    %2474 = vmatpush1.msra.mxu0 0.0
    %2475 = vmatprep.subr.mxu0 0.0
    %2476 = vmatpush1.msra.mxu0 0.0
    %2477 = vmatprep.subr.mxu0 0.0
    %2478 = vmatpush1.msra.mxu0 0.0
    %2479 = vmatprep.subr.mxu0 0.0
    %2480 = vmatpush1.msra.mxu0 0.0
    %2481 = vmatprep.subr.mxu0 0.0
    %2482 = vmatpush1.msra.mxu0 0.0
    %2483 = vmatprep.subr.mxu0 0.0
    %2484 = vmatpush1.msra.mxu0 0.0
    %2485 = vmatprep.subr.mxu0 0.0
    %2486 = vmatpush1.msra.mxu0 0.0
    %2487 = vmatprep.subr.mxu0 0.0
    %2488 = vmatpush1.msra.mxu0 0.0
    %2489 = vmatprep.subr.mxu0 0.0
    %2490 = vmatpush1.msra.mxu0 0.0
    %2491 = vmatprep.subr.mxu0 0.0
    %2492 = vmatpush1.msra.mxu0 0.0
    %2493 = vmatprep.subr.mxu0 0.0
    %2494 = vmatpush1.msra.mxu0 0.0
    %2495 = vmatprep.subr.mxu0 0.0
    %2496 = vmatpush1.msra.mxu0 0.0
    %2497 = vmatprep.subr.mxu0 0.0
    %2498 = vmatpush1.msra.mxu0 0.0
    %2499 = vmatprep.subr.mxu0 0.0
    %2500 = vmatpush1.msra.mxu0 0.0
    %2501 = vmatprep.subr.mxu0 0.0
    %2502 = vmatpush1.msra.mxu0 0.0
    %2503 = vmatprep.subr.mxu0 0.0
    %2504 = vmatpush1.msra.mxu0 0.0
    %2505 = vmatprep.subr.mxu0 0.0
    %2506 = vmatpush1.msra.mxu0 0.0
    %2507 = vmatprep.subr.mxu0 0.0
    %2508 = vmatpush1.msra.mxu0 0.0
    %2509 = vmatprep.mubr.f32.mxu0 0.0
    %2510 = vmatmul.mubr.f32.gmra.mrb[0].mxu0 %v2440
    %v2511 = vpop.f32.mrb[0].mxu0
    %v2512 = vadd.f32 %v2437, %v2511
    %v2513 = vpop.f32.mrb[0].mxu0
    %2514 = vmatprep.mubr.f32.mxu0 0.0
    %2515 = vmatmul.mubr.f32.gmra.mrb[0].mxu0 %v2443
    %v2516 = vpop.f32.mrb[0].mxu0
    %v2517 = vadd.f32 %v2437, %v2516
    %v2518 = vpop.f32.mrb[0].mxu0
    %2519 = vdwg.mxu0
    %v2520 = vmul.f32 %v2512, 0.35355338
    %v2521 = vmul.f32 %v2517, 0.35355338
    %v2522 = vld [vmem:[#allocation6] sm:$0xff]
    %v2523 = vld [vmem:[#allocation6 + $0x8] sm:$0xff]
    %v2524 = vld [vmem:[#allocation6 + $0x10] sm:$0xff]
    %v2525 = vld [vmem:[#allocation6 + $0x18] sm:$0xff]
    %v2526 = vld [vmem:[%s9] sm:$0x1]
    %v2528 = vlaneseq
    %v2529 = vshrl.u32 %v2528, 7
    %v2530 = vsub.s32 0, %v2529
    %v2531 = vrot.slane %v2526, %v2530
    %2533 = vmatprep.subr.mxu0 0.0
    %2534 = vmatpush1.msra.mxu0 %v2522
    %2535 = vmatprep.subr.mxu0 0.0
    %2536 = vmatpush1.msra.mxu0 %v2523
    %2537 = vmatprep.subr.mxu0 0.0
    %2538 = vmatpush1.msra.mxu0 %v2524
    %2539 = vmatprep.subr.mxu0 0.0
    %2540 = vmatpush1.msra.mxu0 %v2525
    %2541 = vmatprep.subr.mxu0 0.0
    %2542 = vmatpush1.msra.mxu0 0.0
    %2543 = vmatprep.subr.mxu0 0.0
    %2544 = vmatpush1.msra.mxu0 0.0
    %2545 = vmatprep.subr.mxu0 0.0
    %2546 = vmatpush1.msra.mxu0 0.0
    %2547 = vmatprep.subr.mxu0 0.0
    %2548 = vmatpush1.msra.mxu0 0.0
    %2549 = vmatprep.subr.mxu0 0.0
    %2550 = vmatpush1.msra.mxu0 0.0
    %2551 = vmatprep.subr.mxu0 0.0
    %2552 = vmatpush1.msra.mxu0 0.0
    %2553 = vmatprep.subr.mxu0 0.0
    %2554 = vmatpush1.msra.mxu0 0.0
    %2555 = vmatprep.subr.mxu0 0.0
    %2556 = vmatpush1.msra.mxu0 0.0
    %2557 = vmatprep.subr.mxu0 0.0
    %2558 = vmatpush1.msra.mxu0 0.0
    %2559 = vmatprep.subr.mxu0 0.0
    %2560 = vmatpush1.msra.mxu0 0.0
    %2561 = vmatprep.subr.mxu0 0.0
    %2562 = vmatpush1.msra.mxu0 0.0
    %2563 = vmatprep.subr.mxu0 0.0
    %2564 = vmatpush1.msra.mxu0 0.0
    %2565 = vmatprep.subr.mxu0 0.0
    %2566 = vmatpush1.msra.mxu0 0.0
    %2567 = vmatprep.subr.mxu0 0.0
    %2568 = vmatpush1.msra.mxu0 0.0
    %2569 = vmatprep.subr.mxu0 0.0
    %2570 = vmatpush1.msra.mxu0 0.0
    %2571 = vmatprep.subr.mxu0 0.0
    %2572 = vmatpush1.msra.mxu0 0.0
    %2573 = vmatprep.subr.mxu0 0.0
    %2574 = vmatpush1.msra.mxu0 0.0
    %2575 = vmatprep.subr.mxu0 0.0
    %2576 = vmatpush1.msra.mxu0 0.0
    %2577 = vmatprep.subr.mxu0 0.0
    %2578 = vmatpush1.msra.mxu0 0.0
    %2579 = vmatprep.subr.mxu0 0.0
    %2580 = vmatpush1.msra.mxu0 0.0
    %2581 = vmatprep.subr.mxu0 0.0
    %2582 = vmatpush1.msra.mxu0 0.0
    %2583 = vmatprep.subr.mxu0 0.0
    %2584 = vmatpush1.msra.mxu0 0.0
    %2585 = vmatprep.subr.mxu0 0.0
    %2586 = vmatpush1.msra.mxu0 0.0
    %2587 = vmatprep.subr.mxu0 0.0
    %2588 = vmatpush1.msra.mxu0 0.0
    %2589 = vmatprep.subr.mxu0 0.0
    %2590 = vmatpush1.msra.mxu0 0.0
    %2591 = vmatprep.subr.mxu0 0.0
    %2592 = vmatpush1.msra.mxu0 0.0
    %2593 = vmatprep.subr.mxu0 0.0
    %2594 = vmatpush1.msra.mxu0 0.0
    %2595 = vmatprep.subr.mxu0 0.0
    %2596 = vmatpush1.msra.mxu0 0.0
    %2597 = vmatprep.mubr.f32.mxu0 0.0
    %2598 = vmatmul.mubr.f32.gmra.mrb[0].mxu0 %v2440
    %v2599 = vpop.f32.mrb[0].mxu0
    %v2600 = vadd.f32 %v2531, %v2599
    %v2601 = vpop.f32.mrb[0].mxu0
    %2602 = vmatprep.mubr.f32.mxu0 0.0
    %2603 = vmatmul.mubr.f32.gmra.mrb[0].mxu0 %v2443
    %v2604 = vpop.f32.mrb[0].mxu0
    %v2605 = vadd.f32 %v2531, %v2604
    %v2606 = vpop.f32.mrb[0].mxu0
    %2607 = vdwg.mxu0
    %v2608 = vld [vmem:[#allocation8] sm:$0xff]
    %v2609 = vld [vmem:[#allocation8 + $0x8] sm:$0xff]
    %v2610 = vld [vmem:[#allocation8 + $0x10] sm:$0xff]
    %v2611 = vld [vmem:[#allocation8 + $0x18] sm:$0xff]
    %v2612 = vld [vmem:[%s11] sm:$0x1]
    %v2614 = vlaneseq
    %v2615 = vshrl.u32 %v2614, 7
    %v2616 = vsub.s32 0, %v2615
    %v2617 = vrot.slane %v2612, %v2616
    %2619 = vmatprep.subr.mxu0 0.0
    %2620 = vmatpush1.msra.mxu0 %v2608
    %2621 = vmatprep.subr.mxu0 0.0
    %2622 = vmatpush1.msra.mxu0 %v2609
    %2623 = vmatprep.subr.mxu0 0.0
    %2624 = vmatpush1.msra.mxu0 %v2610
    %2625 = vmatprep.subr.mxu0 0.0
    %2626 = vmatpush1.msra.mxu0 %v2611
    %2627 = vmatprep.subr.mxu0 0.0
    %2628 = vmatpush1.msra.mxu0 0.0
    %2629 = vmatprep.subr.mxu0 0.0
    %2630 = vmatpush1.msra.mxu0 0.0
    %2631 = vmatprep.subr.mxu0 0.0
    %2632 = vmatpush1.msra.mxu0 0.0
    %2633 = vmatprep.subr.mxu0 0.0
    %2634 = vmatpush1.msra.mxu0 0.0
    %2635 = vmatprep.subr.mxu0 0.0
    %2636 = vmatpush1.msra.mxu0 0.0
    %2637 = vmatprep.subr.mxu0 0.0
    %2638 = vmatpush1.msra.mxu0 0.0
    %2639 = vmatprep.subr.mxu0 0.0
    %2640 = vmatpush1.msra.mxu0 0.0
    %2641 = vmatprep.subr.mxu0 0.0
    %2642 = vmatpush1.msra.mxu0 0.0
    %2643 = vmatprep.subr.mxu0 0.0
    %2644 = vmatpush1.msra.mxu0 0.0
    %2645 = vmatprep.subr.mxu0 0.0
    %2646 = vmatpush1.msra.mxu0 0.0
    %2647 = vmatprep.subr.mxu0 0.0
    %2648 = vmatpush1.msra.mxu0 0.0
    %2649 = vmatprep.subr.mxu0 0.0
    %2650 = vmatpush1.msra.mxu0 0.0
    %2651 = vmatprep.subr.mxu0 0.0
    %2652 = vmatpush1.msra.mxu0 0.0
    %2653 = vmatprep.subr.mxu0 0.0
    %2654 = vmatpush1.msra.mxu0 0.0
    %2655 = vmatprep.subr.mxu0 0.0
    %2656 = vmatpush1.msra.mxu0 0.0
    %2657 = vmatprep.subr.mxu0 0.0
    %2658 = vmatpush1.msra.mxu0 0.0
    %2659 = vmatprep.subr.mxu0 0.0
    %2660 = vmatpush1.msra.mxu0 0.0
    %2661 = vmatprep.subr.mxu0 0.0
    %2662 = vmatpush1.msra.mxu0 0.0
    %2663 = vmatprep.subr.mxu0 0.0
    %2664 = vmatpush1.msra.mxu0 0.0
    %2665 = vmatprep.subr.mxu0 0.0
    %2666 = vmatpush1.msra.mxu0 0.0
    %2667 = vmatprep.subr.mxu0 0.0
    %2668 = vmatpush1.msra.mxu0 0.0
    %2669 = vmatprep.subr.mxu0 0.0
    %2670 = vmatpush1.msra.mxu0 0.0
    %2671 = vmatprep.subr.mxu0 0.0
    %2672 = vmatpush1.msra.mxu0 0.0
    %2673 = vmatprep.subr.mxu0 0.0
    %2674 = vmatpush1.msra.mxu0 0.0
    %2675 = vmatprep.subr.mxu0 0.0
    %2676 = vmatpush1.msra.mxu0 0.0
    %2677 = vmatprep.subr.mxu0 0.0
    %2678 = vmatpush1.msra.mxu0 0.0
    %2679 = vmatprep.subr.mxu0 0.0
    %2680 = vmatpush1.msra.mxu0 0.0
    %2681 = vmatprep.subr.mxu0 0.0
    %2682 = vmatpush1.msra.mxu0 0.0
    %2683 = vmatprep.mubr.f32.mxu0 0.0
    %2684 = vmatmul.mubr.f32.gmra.mrb[0].mxu0 %v2440
    %v2685 = vpop.f32.mrb[0].mxu0
    %v2686 = vadd.f32 %v2617, %v2685
    %v2687 = vpop.f32.mrb[0].mxu0
    %2688 = vmatprep.mubr.f32.mxu0 0.0
    %2689 = vmatmul.mubr.f32.gmra.mrb[0].mxu0 %v2443
    %v2690 = vpop.f32.mrb[0].mxu0
    %v2691 = vadd.f32 %v2617, %v2690
    %v2692 = vpop.f32.mrb[0].mxu0
    %2693 = vdwg.mxu0
    %v2694 = vld [vmem:[%s13] sm:$0x1]
    %v2696 = vsel %vm477, %v2520, 0
    %v2699 = vsel %vm477, %v2600, 0
    %2701 = vmatprep.subr.mxu0 0.0
    %2702 = vmatpush1.xpose.msra.mxu0 %v2699
    %2703 = vmatprep.subr.mxu0 0.0
    %2704 = vmatpush1.xpose.msra.mxu0 0.0
    %2705 = vmatprep.subr.mxu0 0.0
    %2706 = vmatpush1.xpose.msra.mxu0 0.0
    %2707 = vmatprep.subr.mxu0 0.0
    %2708 = vmatpush1.xpose.msra.mxu0 0.0
    %2709 = vmatprep.subr.mxu0 0.0
    %2710 = vmatpush1.xpose.msra.mxu0 0.0
    %2711 = vmatprep.subr.mxu0 0.0
    %2712 = vmatpush1.xpose.msra.mxu0 0.0
    %2713 = vmatprep.subr.mxu0 0.0
    %2714 = vmatpush1.xpose.msra.mxu0 0.0
    %2715 = vmatprep.subr.mxu0 0.0
    %2716 = vmatpush1.xpose.msra.mxu0 0.0
    %2717 = vmatprep.subr.mxu0 0.0
    %2718 = vmatpush1.xpose.msra.mxu0 0.0
    %2719 = vmatprep.subr.mxu0 0.0
    %2720 = vmatpush1.xpose.msra.mxu0 0.0
    %2721 = vmatprep.subr.mxu0 0.0
    %2722 = vmatpush1.xpose.msra.mxu0 0.0
    %2723 = vmatprep.subr.mxu0 0.0
    %2724 = vmatpush1.xpose.msra.mxu0 0.0
    %2725 = vmatprep.subr.mxu0 0.0
    %2726 = vmatpush1.xpose.msra.mxu0 0.0
    %2727 = vmatprep.subr.mxu0 0.0
    %2728 = vmatpush1.xpose.msra.mxu0 0.0
    %2729 = vmatprep.subr.mxu0 0.0
    %2730 = vmatpush1.xpose.msra.mxu0 0.0
    %2731 = vmatprep.subr.mxu0 0.0
    %2732 = vmatpush1.xpose.msra.mxu0 0.0
    %2733 = vmatprep.subr.mxu0 0.0
    %2734 = vmatpush1.xpose.msra.mxu0 0.0
    %2735 = vmatprep.subr.mxu0 0.0
    %2736 = vmatpush1.xpose.msra.mxu0 0.0
    %2737 = vmatprep.subr.mxu0 0.0
    %2738 = vmatpush1.xpose.msra.mxu0 0.0
    %2739 = vmatprep.subr.mxu0 0.0
    %2740 = vmatpush1.xpose.msra.mxu0 0.0
    %2741 = vmatprep.subr.mxu0 0.0
    %2742 = vmatpush1.xpose.msra.mxu0 0.0
    %2743 = vmatprep.subr.mxu0 0.0
    %2744 = vmatpush1.xpose.msra.mxu0 0.0
    %2745 = vmatprep.subr.mxu0 0.0
    %2746 = vmatpush1.xpose.msra.mxu0 0.0
    %2747 = vmatprep.subr.mxu0 0.0
    %2748 = vmatpush1.xpose.msra.mxu0 0.0
    %2749 = vmatprep.subr.mxu0 0.0
    %2750 = vmatpush1.xpose.msra.mxu0 0.0
    %2751 = vmatprep.subr.mxu0 0.0
    %2752 = vmatpush1.xpose.msra.mxu0 0.0
    %2753 = vmatprep.subr.mxu0 0.0
    %2754 = vmatpush1.xpose.msra.mxu0 0.0
    %2755 = vmatprep.subr.mxu0 0.0
    %2756 = vmatpush1.xpose.msra.mxu0 0.0
    %2757 = vmatprep.subr.mxu0 0.0
    %2758 = vmatpush1.xpose.msra.mxu0 0.0
    %2759 = vmatprep.subr.mxu0 0.0
    %2760 = vmatpush1.xpose.msra.mxu0 0.0
    %2761 = vmatprep.subr.mxu0 0.0
    %2762 = vmatpush1.xpose.msra.mxu0 0.0
    %2763 = vmatprep.subr.mxu0 0.0
    %2764 = vmatpush1.xpose.msra.mxu0 0.0
    %2765 = vmatprep.mubr.f32.mxu0 0.0
    %2766 = vmatmul.mubr.f32.gmra.mrb[0].mxu0 %v2696
    %v2767 = vpop.f32.mrb[0].mxu0
    %v2768 = vadd.f32 %v470, %v2767
    %v2769 = vpop.f32.mrb[0].mxu0
    %2770 = vdwg.mxu0
    %v2772 = vsel %vm477, %v2521, 0
    %v2775 = vsel %vm477, %v2605, 0
    %2777 = vmatprep.subr.mxu0 0.0
    %2778 = vmatpush1.xpose.msra.mxu0 %v2775
    %2779 = vmatprep.subr.mxu0 0.0
    %2780 = vmatpush1.xpose.msra.mxu0 0.0
    %2781 = vmatprep.subr.mxu0 0.0
    %2782 = vmatpush1.xpose.msra.mxu0 0.0
    %2783 = vmatprep.subr.mxu0 0.0
    %2784 = vmatpush1.xpose.msra.mxu0 0.0
    %2785 = vmatprep.subr.mxu0 0.0
    %2786 = vmatpush1.xpose.msra.mxu0 0.0
    %2787 = vmatprep.subr.mxu0 0.0
    %2788 = vmatpush1.xpose.msra.mxu0 0.0
    %2789 = vmatprep.subr.mxu0 0.0
    %2790 = vmatpush1.xpose.msra.mxu0 0.0
    %2791 = vmatprep.subr.mxu0 0.0
    %2792 = vmatpush1.xpose.msra.mxu0 0.0
    %2793 = vmatprep.subr.mxu0 0.0
    %2794 = vmatpush1.xpose.msra.mxu0 0.0
    %2795 = vmatprep.subr.mxu0 0.0
    %2796 = vmatpush1.xpose.msra.mxu0 0.0
    %2797 = vmatprep.subr.mxu0 0.0
    %2798 = vmatpush1.xpose.msra.mxu0 0.0
    %2799 = vmatprep.subr.mxu0 0.0
    %2800 = vmatpush1.xpose.msra.mxu0 0.0
    %2801 = vmatprep.subr.mxu0 0.0
    %2802 = vmatpush1.xpose.msra.mxu0 0.0
    %2803 = vmatprep.subr.mxu0 0.0
    %2804 = vmatpush1.xpose.msra.mxu0 0.0
    %2805 = vmatprep.subr.mxu0 0.0
    %2806 = vmatpush1.xpose.msra.mxu0 0.0
    %2807 = vmatprep.subr.mxu0 0.0
    %2808 = vmatpush1.xpose.msra.mxu0 0.0
    %2809 = vmatprep.subr.mxu0 0.0
    %2810 = vmatpush1.xpose.msra.mxu0 0.0
    %2811 = vmatprep.subr.mxu0 0.0
    %2812 = vmatpush1.xpose.msra.mxu0 0.0
    %2813 = vmatprep.subr.mxu0 0.0
    %2814 = vmatpush1.xpose.msra.mxu0 0.0
    %2815 = vmatprep.subr.mxu0 0.0
    %2816 = vmatpush1.xpose.msra.mxu0 0.0
    %2817 = vmatprep.subr.mxu0 0.0
    %2818 = vmatpush1.xpose.msra.mxu0 0.0
    %2819 = vmatprep.subr.mxu0 0.0
    %2820 = vmatpush1.xpose.msra.mxu0 0.0
    %2821 = vmatprep.subr.mxu0 0.0
    %2822 = vmatpush1.xpose.msra.mxu0 0.0
    %2823 = vmatprep.subr.mxu0 0.0
    %2824 = vmatpush1.xpose.msra.mxu0 0.0
    %2825 = vmatprep.subr.mxu0 0.0
    %2826 = vmatpush1.xpose.msra.mxu0 0.0
    %2827 = vmatprep.subr.mxu0 0.0
    %2828 = vmatpush1.xpose.msra.mxu0 0.0
    %2829 = vmatprep.subr.mxu0 0.0
    %2830 = vmatpush1.xpose.msra.mxu0 0.0
    %2831 = vmatprep.subr.mxu0 0.0
    %2832 = vmatpush1.xpose.msra.mxu0 0.0
    %2833 = vmatprep.subr.mxu0 0.0
    %2834 = vmatpush1.xpose.msra.mxu0 0.0
    %2835 = vmatprep.subr.mxu0 0.0
    %2836 = vmatpush1.xpose.msra.mxu0 0.0
    %2837 = vmatprep.subr.mxu0 0.0
    %2838 = vmatpush1.xpose.msra.mxu0 0.0
    %2839 = vmatprep.subr.mxu0 0.0
    %2840 = vmatpush1.xpose.msra.mxu0 0.0
    %2841 = vmatprep.mubr.f32.mxu0 0.0
    %2842 = vmatmul.mubr.f32.gmra.mrb[0].mxu0 %v2772
    %v2843 = vpop.f32.mrb[0].mxu0
    %v2844 = vadd.f32 %v474, %v2843
    %v2845 = vpop.f32.mrb[0].mxu0
    %2846 = vdwg.mxu0
    %v2847 = vsel %vm477, %v2768, -inf
    %2848 = vmax.xlane.f32.xlu0 %v2847
    %v2849 = vpop.xlane.xlu0 %2848
    %v2850 = vsel %vm477, %v2844, -inf
    %2851 = vmax.xlane.f32.xlu0 %v2850
    %v2852 = vpop.xlane.xlu0 %2851
    %v2853 = vsub.f32 %v2768, %v2849
    %v2854 = vsub.f32 %v2844, %v2852
    %v2855 = vmul.f32 %v2853, 1.442695
    %v2856 = vpow.pop %v2855
    %v2857 = vmul.f32 %v2854, 1.442695
    %v2858 = vpow.pop %v2857
    %v2859 = vsel %vm477, %v2856, 0.0
    %2860 = vadd.xlane.f32.xlu0 %v2859
    %v2861 = vpop.xlane.xlu0 %2860
    %v2862 = vsel %vm477, %v2858, 0.0
    %2863 = vadd.xlane.f32.xlu0 %v2862
    %v2864 = vpop.xlane.xlu0 %2863
    %v2865 = vrcp.pop %v2861
    %v2866 = vmul.f32 %v2856, %v2865
    %v2867 = vrcp.pop %v2864
    %v2868 = vmul.f32 %v2858, %v2867
    %v2870 = vsel %vm477, %v2866, 0
    %2872 = vmatprep.subr.mxu0 0.0
    %2873 = vmatpush1.msra.mxu0 %v2686
    %2874 = vmatprep.subr.mxu0 0.0
    %2875 = vmatpush1.msra.mxu0 0.0
    %2876 = vmatprep.subr.mxu0 0.0
    %2877 = vmatpush1.msra.mxu0 0.0
    %2878 = vmatprep.subr.mxu0 0.0
    %2879 = vmatpush1.msra.mxu0 0.0
    %2880 = vmatprep.subr.mxu0 0.0
    %2881 = vmatpush1.msra.mxu0 0.0
    %2882 = vmatprep.subr.mxu0 0.0
    %2883 = vmatpush1.msra.mxu0 0.0
    %2884 = vmatprep.subr.mxu0 0.0
    %2885 = vmatpush1.msra.mxu0 0.0
    %2886 = vmatprep.subr.mxu0 0.0
    %2887 = vmatpush1.msra.mxu0 0.0
    %2888 = vmatprep.subr.mxu0 0.0
    %2889 = vmatpush1.msra.mxu0 0.0
    %2890 = vmatprep.subr.mxu0 0.0
    %2891 = vmatpush1.msra.mxu0 0.0
    %2892 = vmatprep.subr.mxu0 0.0
    %2893 = vmatpush1.msra.mxu0 0.0
    %2894 = vmatprep.subr.mxu0 0.0
    %2895 = vmatpush1.msra.mxu0 0.0
    %2896 = vmatprep.subr.mxu0 0.0
    %2897 = vmatpush1.msra.mxu0 0.0
    %2898 = vmatprep.subr.mxu0 0.0
    %2899 = vmatpush1.msra.mxu0 0.0
    %2900 = vmatprep.subr.mxu0 0.0
    %2901 = vmatpush1.msra.mxu0 0.0
    %2902 = vmatprep.subr.mxu0 0.0
    %2903 = vmatpush1.msra.mxu0 0.0
    %2904 = vmatprep.subr.mxu0 0.0
    %2905 = vmatpush1.msra.mxu0 0.0
    %2906 = vmatprep.subr.mxu0 0.0
    %2907 = vmatpush1.msra.mxu0 0.0
    %2908 = vmatprep.subr.mxu0 0.0
    %2909 = vmatpush1.msra.mxu0 0.0
    %2910 = vmatprep.subr.mxu0 0.0
    %2911 = vmatpush1.msra.mxu0 0.0
    %2912 = vmatprep.subr.mxu0 0.0
    %2913 = vmatpush1.msra.mxu0 0.0
    %2914 = vmatprep.subr.mxu0 0.0
    %2915 = vmatpush1.msra.mxu0 0.0
    %2916 = vmatprep.subr.mxu0 0.0
    %2917 = vmatpush1.msra.mxu0 0.0
    %2918 = vmatprep.subr.mxu0 0.0
    %2919 = vmatpush1.msra.mxu0 0.0
    %2920 = vmatprep.subr.mxu0 0.0
    %2921 = vmatpush1.msra.mxu0 0.0
    %2922 = vmatprep.subr.mxu0 0.0
    %2923 = vmatpush1.msra.mxu0 0.0
    %2924 = vmatprep.subr.mxu0 0.0
    %2925 = vmatpush1.msra.mxu0 0.0
    %2926 = vmatprep.subr.mxu0 0.0
    %2927 = vmatpush1.msra.mxu0 0.0
    %2928 = vmatprep.subr.mxu0 0.0
    %2929 = vmatpush1.msra.mxu0 0.0
    %2930 = vmatprep.subr.mxu0 0.0
    %2931 = vmatpush1.msra.mxu0 0.0
    %2932 = vmatprep.subr.mxu0 0.0
    %2933 = vmatpush1.msra.mxu0 0.0
    %2934 = vmatprep.subr.mxu0 0.0
    %2935 = vmatpush1.msra.mxu0 0.0
    %2936 = vmatprep.mubr.f32.mxu0 0.0
    %2937 = vmatmul.mubr.f32.gmra.mrb[0].mxu0 %v2870
    %v2938 = vpop.f32.mrb[0].mxu0
    %v2939 = vadd.f32 0.0, %v2938
    %v2940 = vpop.f32.mrb[0].mxu0
    %2941 = vdwg.mxu0
    %v2943 = vsel %vm477, %v2868, 0
    %2945 = vmatprep.subr.mxu0 0.0
    %2946 = vmatpush1.msra.mxu0 %v2691
    %2947 = vmatprep.subr.mxu0 0.0
    %2948 = vmatpush1.msra.mxu0 0.0
    %2949 = vmatprep.subr.mxu0 0.0
    %2950 = vmatpush1.msra.mxu0 0.0
    %2951 = vmatprep.subr.mxu0 0.0
    %2952 = vmatpush1.msra.mxu0 0.0
    %2953 = vmatprep.subr.mxu0 0.0
    %2954 = vmatpush1.msra.mxu0 0.0
    %2955 = vmatprep.subr.mxu0 0.0
    %2956 = vmatpush1.msra.mxu0 0.0
    %2957 = vmatprep.subr.mxu0 0.0
    %2958 = vmatpush1.msra.mxu0 0.0
    %2959 = vmatprep.subr.mxu0 0.0
    %2960 = vmatpush1.msra.mxu0 0.0
    %2961 = vmatprep.subr.mxu0 0.0
    %2962 = vmatpush1.msra.mxu0 0.0
    %2963 = vmatprep.subr.mxu0 0.0
    %2964 = vmatpush1.msra.mxu0 0.0
    %2965 = vmatprep.subr.mxu0 0.0
    %2966 = vmatpush1.msra.mxu0 0.0
    %2967 = vmatprep.subr.mxu0 0.0
    %2968 = vmatpush1.msra.mxu0 0.0
    %2969 = vmatprep.subr.mxu0 0.0
    %2970 = vmatpush1.msra.mxu0 0.0
    %2971 = vmatprep.subr.mxu0 0.0
    %2972 = vmatpush1.msra.mxu0 0.0
    %2973 = vmatprep.subr.mxu0 0.0
    %2974 = vmatpush1.msra.mxu0 0.0
    %2975 = vmatprep.subr.mxu0 0.0
    %2976 = vmatpush1.msra.mxu0 0.0
    %2977 = vmatprep.subr.mxu0 0.0
    %2978 = vmatpush1.msra.mxu0 0.0
    %2979 = vmatprep.subr.mxu0 0.0
    %2980 = vmatpush1.msra.mxu0 0.0
    %2981 = vmatprep.subr.mxu0 0.0
    %2982 = vmatpush1.msra.mxu0 0.0
    %2983 = vmatprep.subr.mxu0 0.0
    %2984 = vmatpush1.msra.mxu0 0.0
    %2985 = vmatprep.subr.mxu0 0.0
    %2986 = vmatpush1.msra.mxu0 0.0
    %2987 = vmatprep.subr.mxu0 0.0
    %2988 = vmatpush1.msra.mxu0 0.0
    %2989 = vmatprep.subr.mxu0 0.0
    %2990 = vmatpush1.msra.mxu0 0.0
    %2991 = vmatprep.subr.mxu0 0.0
    %2992 = vmatpush1.msra.mxu0 0.0
    %2993 = vmatprep.subr.mxu0 0.0
    %2994 = vmatpush1.msra.mxu0 0.0
    %2995 = vmatprep.subr.mxu0 0.0
    %2996 = vmatpush1.msra.mxu0 0.0
    %2997 = vmatprep.subr.mxu0 0.0
    %2998 = vmatpush1.msra.mxu0 0.0
    %2999 = vmatprep.subr.mxu0 0.0
    %3000 = vmatpush1.msra.mxu0 0.0
    %3001 = vmatprep.subr.mxu0 0.0
    %3002 = vmatpush1.msra.mxu0 0.0
    %3003 = vmatprep.subr.mxu0 0.0
    %3004 = vmatpush1.msra.mxu0 0.0
    %3005 = vmatprep.subr.mxu0 0.0
    %3006 = vmatpush1.msra.mxu0 0.0
    %3007 = vmatprep.subr.mxu0 0.0
    %3008 = vmatpush1.msra.mxu0 0.0
    %3009 = vmatprep.mubr.f32.mxu0 0.0
    %3010 = vmatmul.mubr.f32.gmra.mrb[0].mxu0 %v2943
    %v3011 = vpop.f32.mrb[0].mxu0
    %v3012 = vadd.f32 0.0, %v3011
    %v3013 = vpop.f32.mrb[0].mxu0
    %3014 = vdwg.mxu0
    %v3016 = vsel %vm477, %v2939, 0
    %v3019 = vsel %vm477, %v3012, 0
    %3021 = vmatprep.subr.mxu0 0.0
    %3022 = vmatpush1.msra.mxu0 %v196
    %3023 = vmatprep.subr.mxu0 0.0
    %3024 = vmatpush1.msra.mxu0 0.0
    %3025 = vmatprep.subr.mxu0 0.0
    %3026 = vmatpush1.msra.mxu0 0.0
    %3027 = vmatprep.subr.mxu0 0.0
    %3028 = vmatpush1.msra.mxu0 0.0
    %3029 = vmatprep.subr.mxu0 0.0
    %3030 = vmatpush1.msra.mxu0 0.0
    %3031 = vmatprep.subr.mxu0 0.0
    %3032 = vmatpush1.msra.mxu0 0.0
    %3033 = vmatprep.subr.mxu0 0.0
    %3034 = vmatpush1.msra.mxu0 0.0
    %3035 = vmatprep.subr.mxu0 0.0
    %3036 = vmatpush1.msra.mxu0 0.0
    %3037 = vmatprep.subr.mxu0 0.0
    %3038 = vmatpush1.msra.mxu0 0.0
    %3039 = vmatprep.subr.mxu0 0.0
    %3040 = vmatpush1.msra.mxu0 0.0
    %3041 = vmatprep.subr.mxu0 0.0
    %3042 = vmatpush1.msra.mxu0 0.0
    %3043 = vmatprep.subr.mxu0 0.0
    %3044 = vmatpush1.msra.mxu0 0.0
    %3045 = vmatprep.subr.mxu0 0.0
    %3046 = vmatpush1.msra.mxu0 0.0
    %3047 = vmatprep.subr.mxu0 0.0
    %3048 = vmatpush1.msra.mxu0 0.0
    %3049 = vmatprep.subr.mxu0 0.0
    %3050 = vmatpush1.msra.mxu0 0.0
    %3051 = vmatprep.subr.mxu0 0.0
    %3052 = vmatpush1.msra.mxu0 0.0
    %3053 = vmatprep.subr.mxu0 0.0
    %3054 = vmatpush1.msra.mxu0 0.0
    %3055 = vmatprep.subr.mxu0 0.0
    %3056 = vmatpush1.msra.mxu0 0.0
    %3057 = vmatprep.subr.mxu0 0.0
    %3058 = vmatpush1.msra.mxu0 0.0
    %3059 = vmatprep.subr.mxu0 0.0
    %3060 = vmatpush1.msra.mxu0 0.0
    %3061 = vmatprep.subr.mxu0 0.0
    %3062 = vmatpush1.msra.mxu0 0.0
    %3063 = vmatprep.subr.mxu0 0.0
    %3064 = vmatpush1.msra.mxu0 0.0
    %3065 = vmatprep.subr.mxu0 0.0
    %3066 = vmatpush1.msra.mxu0 0.0
    %3067 = vmatprep.subr.mxu0 0.0
    %3068 = vmatpush1.msra.mxu0 0.0
    %3069 = vmatprep.subr.mxu0 0.0
    %3070 = vmatpush1.msra.mxu0 0.0
    %3071 = vmatprep.subr.mxu0 0.0
    %3072 = vmatpush1.msra.mxu0 0.0
    %3073 = vmatprep.subr.mxu0 0.0
    %3074 = vmatpush1.msra.mxu0 0.0
    %3075 = vmatprep.subr.mxu0 0.0
    %3076 = vmatpush1.msra.mxu0 0.0
    %3077 = vmatprep.subr.mxu0 0.0
    %3078 = vmatpush1.msra.mxu0 0.0
    %3079 = vmatprep.subr.mxu0 0.0
    %3080 = vmatpush1.msra.mxu0 0.0
    %3081 = vmatprep.subr.mxu0 0.0
    %3082 = vmatpush1.msra.mxu0 0.0
    %3083 = vmatprep.subr.mxu0 0.0
    %3084 = vmatpush1.msra.mxu0 0.0
    %3085 = vmatprep.mubr.f32.mxu0 0.0
    %3086 = vmatmul.mubr.f32.gmra.mrb[0].mxu0 %v3016
    %v3087 = vpop.f32.mrb[0].mxu0
    %v3088 = vadd.f32 0.0, %v3087
    %v3089 = vpop.f32.mrb[0].mxu0
    %3090 = vmatprep.mubr.f32.mxu0 0.0
    %3091 = vmatmul.mubr.f32.gmra.mrb[0].mxu0 %v3019
    %v3092 = vpop.f32.mrb[0].mxu0
    %v3093 = vadd.f32 0.0, %v3092
    %v3094 = vpop.f32.mrb[0].mxu0
    %3095 = vdwg.mxu0
    %v3097 = vlaneseq
    %v3098 = vshrl.u32 %v3097, 7
    %v3099 = vsub.s32 0, %v3098
    %v3100 = vrot.slane %v2694, %v3099
    %v3102 = vadd.f32 %v3100, %v3088
    %v3103 = vadd.f32 %v3100, %v3093
    %3104 = vrot.lane.b32.xlu0 %v2520, 120
    %v3105 = vpop.permute.xlu0 %3104
    %3106 = vrot.lane.b32.xlu0 %v2600, 120
    %v3107 = vpop.permute.xlu0 %3106
    %v3108 = vsel %vm477, %v3105, 0
    %v3110 = vsel %vm477, %v3107, 0
    %3112 = vmatprep.subr.mxu0 0.0
    %3113 = vmatpush1.xpose.msra.mxu0 %v3110
    %3114 = vmatprep.subr.mxu0 0.0
    %3115 = vmatpush1.xpose.msra.mxu0 0.0
    %3116 = vmatprep.subr.mxu0 0.0
    %3117 = vmatpush1.xpose.msra.mxu0 0.0
    %3118 = vmatprep.subr.mxu0 0.0
    %3119 = vmatpush1.xpose.msra.mxu0 0.0
    %3120 = vmatprep.subr.mxu0 0.0
    %3121 = vmatpush1.xpose.msra.mxu0 0.0
    %3122 = vmatprep.subr.mxu0 0.0
    %3123 = vmatpush1.xpose.msra.mxu0 0.0
    %3124 = vmatprep.subr.mxu0 0.0
    %3125 = vmatpush1.xpose.msra.mxu0 0.0
    %3126 = vmatprep.subr.mxu0 0.0
    %3127 = vmatpush1.xpose.msra.mxu0 0.0
    %3128 = vmatprep.subr.mxu0 0.0
    %3129 = vmatpush1.xpose.msra.mxu0 0.0
    %3130 = vmatprep.subr.mxu0 0.0
    %3131 = vmatpush1.xpose.msra.mxu0 0.0
    %3132 = vmatprep.subr.mxu0 0.0
    %3133 = vmatpush1.xpose.msra.mxu0 0.0
    %3134 = vmatprep.subr.mxu0 0.0
    %3135 = vmatpush1.xpose.msra.mxu0 0.0
    %3136 = vmatprep.subr.mxu0 0.0
    %3137 = vmatpush1.xpose.msra.mxu0 0.0
    %3138 = vmatprep.subr.mxu0 0.0
    %3139 = vmatpush1.xpose.msra.mxu0 0.0
    %3140 = vmatprep.subr.mxu0 0.0
    %3141 = vmatpush1.xpose.msra.mxu0 0.0
    %3142 = vmatprep.subr.mxu0 0.0
    %3143 = vmatpush1.xpose.msra.mxu0 0.0
    %3144 = vmatprep.subr.mxu0 0.0
    %3145 = vmatpush1.xpose.msra.mxu0 0.0
    %3146 = vmatprep.subr.mxu0 0.0
    %3147 = vmatpush1.xpose.msra.mxu0 0.0
    %3148 = vmatprep.subr.mxu0 0.0
    %3149 = vmatpush1.xpose.msra.mxu0 0.0
    %3150 = vmatprep.subr.mxu0 0.0
    %3151 = vmatpush1.xpose.msra.mxu0 0.0
    %3152 = vmatprep.subr.mxu0 0.0
    %3153 = vmatpush1.xpose.msra.mxu0 0.0
    %3154 = vmatprep.subr.mxu0 0.0
    %3155 = vmatpush1.xpose.msra.mxu0 0.0
    %3156 = vmatprep.subr.mxu0 0.0
    %3157 = vmatpush1.xpose.msra.mxu0 0.0
    %3158 = vmatprep.subr.mxu0 0.0
    %3159 = vmatpush1.xpose.msra.mxu0 0.0
    %3160 = vmatprep.subr.mxu0 0.0
    %3161 = vmatpush1.xpose.msra.mxu0 0.0
    %3162 = vmatprep.subr.mxu0 0.0
    %3163 = vmatpush1.xpose.msra.mxu0 0.0
    %3164 = vmatprep.subr.mxu0 0.0
    %3165 = vmatpush1.xpose.msra.mxu0 0.0
    %3166 = vmatprep.subr.mxu0 0.0
    %3167 = vmatpush1.xpose.msra.mxu0 0.0
    %3168 = vmatprep.subr.mxu0 0.0
    %3169 = vmatpush1.xpose.msra.mxu0 0.0
    %3170 = vmatprep.subr.mxu0 0.0
    %3171 = vmatpush1.xpose.msra.mxu0 0.0
    %3172 = vmatprep.subr.mxu0 0.0
    %3173 = vmatpush1.xpose.msra.mxu0 0.0
    %3174 = vmatprep.subr.mxu0 0.0
    %3175 = vmatpush1.xpose.msra.mxu0 0.0
    %3176 = vmatprep.mubr.f32.mxu0 0.0
    %3177 = vmatmul.mubr.f32.gmra.mrb[0].mxu0 %v3108
    %v3178 = vpop.f32.mrb[0].mxu0
    %v3179 = vadd.f32 %v470, %v3178
    %v3180 = vpop.f32.mrb[0].mxu0
    %3181 = vdwg.mxu0
    %3182 = vrot.lane.b32.xlu0 %v2521, 120
    %v3183 = vpop.permute.xlu0 %3182
    %3184 = vrot.lane.b32.xlu0 %v2605, 120
    %v3185 = vpop.permute.xlu0 %3184
    %v3186 = vsel %vm477, %v3183, 0
    %v3188 = vsel %vm477, %v3185, 0
    %3190 = vmatprep.subr.mxu0 0.0
    %3191 = vmatpush1.xpose.msra.mxu0 %v3188
    %3192 = vmatprep.subr.mxu0 0.0
    %3193 = vmatpush1.xpose.msra.mxu0 0.0
    %3194 = vmatprep.subr.mxu0 0.0
    %3195 = vmatpush1.xpose.msra.mxu0 0.0
    %3196 = vmatprep.subr.mxu0 0.0
    %3197 = vmatpush1.xpose.msra.mxu0 0.0
    %3198 = vmatprep.subr.mxu0 0.0
    %3199 = vmatpush1.xpose.msra.mxu0 0.0
    %3200 = vmatprep.subr.mxu0 0.0
    %3201 = vmatpush1.xpose.msra.mxu0 0.0
    %3202 = vmatprep.subr.mxu0 0.0
    %3203 = vmatpush1.xpose.msra.mxu0 0.0
    %3204 = vmatprep.subr.mxu0 0.0
    %3205 = vmatpush1.xpose.msra.mxu0 0.0
    %3206 = vmatprep.subr.mxu0 0.0
    %3207 = vmatpush1.xpose.msra.mxu0 0.0
    %3208 = vmatprep.subr.mxu0 0.0
    %3209 = vmatpush1.xpose.msra.mxu0 0.0
    %3210 = vmatprep.subr.mxu0 0.0
    %3211 = vmatpush1.xpose.msra.mxu0 0.0
    %3212 = vmatprep.subr.mxu0 0.0
    %3213 = vmatpush1.xpose.msra.mxu0 0.0
    %3214 = vmatprep.subr.mxu0 0.0
    %3215 = vmatpush1.xpose.msra.mxu0 0.0
    %3216 = vmatprep.subr.mxu0 0.0
    %3217 = vmatpush1.xpose.msra.mxu0 0.0
    %3218 = vmatprep.subr.mxu0 0.0
    %3219 = vmatpush1.xpose.msra.mxu0 0.0
    %3220 = vmatprep.subr.mxu0 0.0
    %3221 = vmatpush1.xpose.msra.mxu0 0.0
    %3222 = vmatprep.subr.mxu0 0.0
    %3223 = vmatpush1.xpose.msra.mxu0 0.0
    %3224 = vmatprep.subr.mxu0 0.0
    %3225 = vmatpush1.xpose.msra.mxu0 0.0
    %3226 = vmatprep.subr.mxu0 0.0
    %3227 = vmatpush1.xpose.msra.mxu0 0.0
    %3228 = vmatprep.subr.mxu0 0.0
    %3229 = vmatpush1.xpose.msra.mxu0 0.0
    %3230 = vmatprep.subr.mxu0 0.0
    %3231 = vmatpush1.xpose.msra.mxu0 0.0
    %3232 = vmatprep.subr.mxu0 0.0
    %3233 = vmatpush1.xpose.msra.mxu0 0.0
    %3234 = vmatprep.subr.mxu0 0.0
    %3235 = vmatpush1.xpose.msra.mxu0 0.0
    %3236 = vmatprep.subr.mxu0 0.0
    %3237 = vmatpush1.xpose.msra.mxu0 0.0
    %3238 = vmatprep.subr.mxu0 0.0
    %3239 = vmatpush1.xpose.msra.mxu0 0.0
    %3240 = vmatprep.subr.mxu0 0.0
    %3241 = vmatpush1.xpose.msra.mxu0 0.0
    %3242 = vmatprep.subr.mxu0 0.0
    %3243 = vmatpush1.xpose.msra.mxu0 0.0
    %3244 = vmatprep.subr.mxu0 0.0
    %3245 = vmatpush1.xpose.msra.mxu0 0.0
    %3246 = vmatprep.subr.mxu0 0.0
    %3247 = vmatpush1.xpose.msra.mxu0 0.0
    %3248 = vmatprep.subr.mxu0 0.0
    %3249 = vmatpush1.xpose.msra.mxu0 0.0
    %3250 = vmatprep.subr.mxu0 0.0
    %3251 = vmatpush1.xpose.msra.mxu0 0.0
    %3252 = vmatprep.subr.mxu0 0.0
    %3253 = vmatpush1.xpose.msra.mxu0 0.0
    %3254 = vmatprep.mubr.f32.mxu0 0.0
    %3255 = vmatmul.mubr.f32.gmra.mrb[0].mxu0 %v3186
    %v3256 = vpop.f32.mrb[0].mxu0
    %v3257 = vadd.f32 %v474, %v3256
    %v3258 = vpop.f32.mrb[0].mxu0
    %3259 = vdwg.mxu0
    %v3260 = vsel %vm477, %v3179, -inf
    %3261 = vmax.xlane.f32.xlu0 %v3260
    %v3262 = vpop.xlane.xlu0 %3261
    %v3263 = vsel %vm477, %v3257, -inf
    %3264 = vmax.xlane.f32.xlu0 %v3263
    %v3265 = vpop.xlane.xlu0 %3264
    %v3266 = vsub.f32 %v3179, %v3262
    %v3267 = vsub.f32 %v3257, %v3265
    %v3268 = vmul.f32 %v3266, 1.442695
    %v3269 = vpow.pop %v3268
    %v3270 = vmul.f32 %v3267, 1.442695
    %v3271 = vpow.pop %v3270
    %v3272 = vsel %vm477, %v3269, 0.0
    %3273 = vadd.xlane.f32.xlu0 %v3272
    %v3274 = vpop.xlane.xlu0 %3273
    %v3275 = vsel %vm477, %v3271, 0.0
    %3276 = vadd.xlane.f32.xlu0 %v3275
    %v3277 = vpop.xlane.xlu0 %3276
    %v3278 = vrcp.pop %v3274
    %v3279 = vmul.f32 %v3269, %v3278
    %v3280 = vrcp.pop %v3277
    %v3281 = vmul.f32 %v3271, %v3280
    %3283 = vrot.lane.b32.xlu0 %v2686, 120
    %v3284 = vpop.permute.xlu0 %3283
    %v3287 = vsel %vm477, %v3279, 0
    %3289 = vmatprep.subr.mxu0 0.0
    %3290 = vmatpush1.msra.mxu0 %v3284
    %3291 = vmatprep.subr.mxu0 0.0
    %3292 = vmatpush1.msra.mxu0 0.0
    %3293 = vmatprep.subr.mxu0 0.0
    %3294 = vmatpush1.msra.mxu0 0.0
    %3295 = vmatprep.subr.mxu0 0.0
    %3296 = vmatpush1.msra.mxu0 0.0
    %3297 = vmatprep.subr.mxu0 0.0
    %3298 = vmatpush1.msra.mxu0 0.0
    %3299 = vmatprep.subr.mxu0 0.0
    %3300 = vmatpush1.msra.mxu0 0.0
    %3301 = vmatprep.subr.mxu0 0.0
    %3302 = vmatpush1.msra.mxu0 0.0
    %3303 = vmatprep.subr.mxu0 0.0
    %3304 = vmatpush1.msra.mxu0 0.0
    %3305 = vmatprep.subr.mxu0 0.0
    %3306 = vmatpush1.msra.mxu0 0.0
    %3307 = vmatprep.subr.mxu0 0.0
    %3308 = vmatpush1.msra.mxu0 0.0
    %3309 = vmatprep.subr.mxu0 0.0
    %3310 = vmatpush1.msra.mxu0 0.0
    %3311 = vmatprep.subr.mxu0 0.0
    %3312 = vmatpush1.msra.mxu0 0.0
    %3313 = vmatprep.subr.mxu0 0.0
    %3314 = vmatpush1.msra.mxu0 0.0
    %3315 = vmatprep.subr.mxu0 0.0
    %3316 = vmatpush1.msra.mxu0 0.0
    %3317 = vmatprep.subr.mxu0 0.0
    %3318 = vmatpush1.msra.mxu0 0.0
    %3319 = vmatprep.subr.mxu0 0.0
    %3320 = vmatpush1.msra.mxu0 0.0
    %3321 = vmatprep.subr.mxu0 0.0
    %3322 = vmatpush1.msra.mxu0 0.0
    %3323 = vmatprep.subr.mxu0 0.0
    %3324 = vmatpush1.msra.mxu0 0.0
    %3325 = vmatprep.subr.mxu0 0.0
    %3326 = vmatpush1.msra.mxu0 0.0
    %3327 = vmatprep.subr.mxu0 0.0
    %3328 = vmatpush1.msra.mxu0 0.0
    %3329 = vmatprep.subr.mxu0 0.0
    %3330 = vmatpush1.msra.mxu0 0.0
    %3331 = vmatprep.subr.mxu0 0.0
    %3332 = vmatpush1.msra.mxu0 0.0
    %3333 = vmatprep.subr.mxu0 0.0
    %3334 = vmatpush1.msra.mxu0 0.0
    %3335 = vmatprep.subr.mxu0 0.0
    %3336 = vmatpush1.msra.mxu0 0.0
    %3337 = vmatprep.subr.mxu0 0.0
    %3338 = vmatpush1.msra.mxu0 0.0
    %3339 = vmatprep.subr.mxu0 0.0
    %3340 = vmatpush1.msra.mxu0 0.0
    %3341 = vmatprep.subr.mxu0 0.0
    %3342 = vmatpush1.msra.mxu0 0.0
    %3343 = vmatprep.subr.mxu0 0.0
    %3344 = vmatpush1.msra.mxu0 0.0
    %3345 = vmatprep.subr.mxu0 0.0
    %3346 = vmatpush1.msra.mxu0 0.0
    %3347 = vmatprep.subr.mxu0 0.0
    %3348 = vmatpush1.msra.mxu0 0.0
    %3349 = vmatprep.subr.mxu0 0.0
    %3350 = vmatpush1.msra.mxu0 0.0
    %3351 = vmatprep.subr.mxu0 0.0
    %3352 = vmatpush1.msra.mxu0 0.0
    %3353 = vmatprep.mubr.f32.mxu0 0.0
    %3354 = vmatmul.mubr.f32.gmra.mrb[0].mxu0 %v3287
    %v3355 = vpop.f32.mrb[0].mxu0
    %v3356 = vadd.f32 0.0, %v3355
    %v3357 = vpop.f32.mrb[0].mxu0
    %3358 = vdwg.mxu0
    %3360 = vrot.lane.b32.xlu0 %v2691, 120
    %v3361 = vpop.permute.xlu0 %3360
    %v3364 = vsel %vm477, %v3281, 0
    %3366 = vmatprep.subr.mxu0 0.0
    %3367 = vmatpush1.msra.mxu0 %v3361
    %3368 = vmatprep.subr.mxu0 0.0
    %3369 = vmatpush1.msra.mxu0 0.0
    %3370 = vmatprep.subr.mxu0 0.0
    %3371 = vmatpush1.msra.mxu0 0.0
    %3372 = vmatprep.subr.mxu0 0.0
    %3373 = vmatpush1.msra.mxu0 0.0
    %3374 = vmatprep.subr.mxu0 0.0
    %3375 = vmatpush1.msra.mxu0 0.0
    %3376 = vmatprep.subr.mxu0 0.0
    %3377 = vmatpush1.msra.mxu0 0.0
    %3378 = vmatprep.subr.mxu0 0.0
    %3379 = vmatpush1.msra.mxu0 0.0
    %3380 = vmatprep.subr.mxu0 0.0
    %3381 = vmatpush1.msra.mxu0 0.0
    %3382 = vmatprep.subr.mxu0 0.0
    %3383 = vmatpush1.msra.mxu0 0.0
    %3384 = vmatprep.subr.mxu0 0.0
    %3385 = vmatpush1.msra.mxu0 0.0
    %3386 = vmatprep.subr.mxu0 0.0
    %3387 = vmatpush1.msra.mxu0 0.0
    %3388 = vmatprep.subr.mxu0 0.0
    %3389 = vmatpush1.msra.mxu0 0.0
    %3390 = vmatprep.subr.mxu0 0.0
    %3391 = vmatpush1.msra.mxu0 0.0
    %3392 = vmatprep.subr.mxu0 0.0
    %3393 = vmatpush1.msra.mxu0 0.0
    %3394 = vmatprep.subr.mxu0 0.0
    %3395 = vmatpush1.msra.mxu0 0.0
    %3396 = vmatprep.subr.mxu0 0.0
    %3397 = vmatpush1.msra.mxu0 0.0
    %3398 = vmatprep.subr.mxu0 0.0
    %3399 = vmatpush1.msra.mxu0 0.0
    %3400 = vmatprep.subr.mxu0 0.0
    %3401 = vmatpush1.msra.mxu0 0.0
    %3402 = vmatprep.subr.mxu0 0.0
    %3403 = vmatpush1.msra.mxu0 0.0
    %3404 = vmatprep.subr.mxu0 0.0
    %3405 = vmatpush1.msra.mxu0 0.0
    %3406 = vmatprep.subr.mxu0 0.0
    %3407 = vmatpush1.msra.mxu0 0.0
    %3408 = vmatprep.subr.mxu0 0.0
    %3409 = vmatpush1.msra.mxu0 0.0
    %3410 = vmatprep.subr.mxu0 0.0
    %3411 = vmatpush1.msra.mxu0 0.0
    %3412 = vmatprep.subr.mxu0 0.0
    %3413 = vmatpush1.msra.mxu0 0.0
    %3414 = vmatprep.subr.mxu0 0.0
    %3415 = vmatpush1.msra.mxu0 0.0
    %3416 = vmatprep.subr.mxu0 0.0
    %3417 = vmatpush1.msra.mxu0 0.0
    %3418 = vmatprep.subr.mxu0 0.0
    %3419 = vmatpush1.msra.mxu0 0.0
    %3420 = vmatprep.subr.mxu0 0.0
    %3421 = vmatpush1.msra.mxu0 0.0
    %3422 = vmatprep.subr.mxu0 0.0
    %3423 = vmatpush1.msra.mxu0 0.0
    %3424 = vmatprep.subr.mxu0 0.0
    %3425 = vmatpush1.msra.mxu0 0.0
    %3426 = vmatprep.subr.mxu0 0.0
    %3427 = vmatpush1.msra.mxu0 0.0
    %3428 = vmatprep.subr.mxu0 0.0
    %3429 = vmatpush1.msra.mxu0 0.0
    %3430 = vmatprep.mubr.f32.mxu0 0.0
    %3431 = vmatmul.mubr.f32.gmra.mrb[0].mxu0 %v3364
    %v3432 = vpop.f32.mrb[0].mxu0
    %v3433 = vadd.f32 0.0, %v3432
    %v3434 = vpop.f32.mrb[0].mxu0
    %3435 = vdwg.mxu0
    %v3437 = vsel %vm477, %v3356, 0
    %v3440 = vsel %vm477, %v3433, 0
    %3442 = vmatprep.subr.mxu0 0.0
    %3443 = vmatpush1.msra.mxu0 %v197
    %3444 = vmatprep.subr.mxu0 0.0
    %3445 = vmatpush1.msra.mxu0 0.0
    %3446 = vmatprep.subr.mxu0 0.0
    %3447 = vmatpush1.msra.mxu0 0.0
    %3448 = vmatprep.subr.mxu0 0.0
    %3449 = vmatpush1.msra.mxu0 0.0
    %3450 = vmatprep.subr.mxu0 0.0
    %3451 = vmatpush1.msra.mxu0 0.0
    %3452 = vmatprep.subr.mxu0 0.0
    %3453 = vmatpush1.msra.mxu0 0.0
    %3454 = vmatprep.subr.mxu0 0.0
    %3455 = vmatpush1.msra.mxu0 0.0
    %3456 = vmatprep.subr.mxu0 0.0
    %3457 = vmatpush1.msra.mxu0 0.0
    %3458 = vmatprep.subr.mxu0 0.0
    %3459 = vmatpush1.msra.mxu0 0.0
    %3460 = vmatprep.subr.mxu0 0.0
    %3461 = vmatpush1.msra.mxu0 0.0
    %3462 = vmatprep.subr.mxu0 0.0
    %3463 = vmatpush1.msra.mxu0 0.0
    %3464 = vmatprep.subr.mxu0 0.0
    %3465 = vmatpush1.msra.mxu0 0.0
    %3466 = vmatprep.subr.mxu0 0.0
    %3467 = vmatpush1.msra.mxu0 0.0
    %3468 = vmatprep.subr.mxu0 0.0
    %3469 = vmatpush1.msra.mxu0 0.0
    %3470 = vmatprep.subr.mxu0 0.0
    %3471 = vmatpush1.msra.mxu0 0.0
    %3472 = vmatprep.subr.mxu0 0.0
    %3473 = vmatpush1.msra.mxu0 0.0
    %3474 = vmatprep.subr.mxu0 0.0
    %3475 = vmatpush1.msra.mxu0 0.0
    %3476 = vmatprep.subr.mxu0 0.0
    %3477 = vmatpush1.msra.mxu0 0.0
    %3478 = vmatprep.subr.mxu0 0.0
    %3479 = vmatpush1.msra.mxu0 0.0
    %3480 = vmatprep.subr.mxu0 0.0
    %3481 = vmatpush1.msra.mxu0 0.0
    %3482 = vmatprep.subr.mxu0 0.0
    %3483 = vmatpush1.msra.mxu0 0.0
    %3484 = vmatprep.subr.mxu0 0.0
    %3485 = vmatpush1.msra.mxu0 0.0
    %3486 = vmatprep.subr.mxu0 0.0
    %3487 = vmatpush1.msra.mxu0 0.0
    %3488 = vmatprep.subr.mxu0 0.0
    %3489 = vmatpush1.msra.mxu0 0.0
    %3490 = vmatprep.subr.mxu0 0.0
    %3491 = vmatpush1.msra.mxu0 0.0
    %3492 = vmatprep.subr.mxu0 0.0
    %3493 = vmatpush1.msra.mxu0 0.0
    %3494 = vmatprep.subr.mxu0 0.0
    %3495 = vmatpush1.msra.mxu0 0.0
    %3496 = vmatprep.subr.mxu0 0.0
    %3497 = vmatpush1.msra.mxu0 0.0
    %3498 = vmatprep.subr.mxu0 0.0
    %3499 = vmatpush1.msra.mxu0 0.0
    %3500 = vmatprep.subr.mxu0 0.0
    %3501 = vmatpush1.msra.mxu0 0.0
    %3502 = vmatprep.subr.mxu0 0.0
    %3503 = vmatpush1.msra.mxu0 0.0
    %3504 = vmatprep.subr.mxu0 0.0
    %3505 = vmatpush1.msra.mxu0 0.0
    %3506 = vmatprep.mubr.f32.mxu0 0.0
    %3507 = vmatmul.mubr.f32.gmra.mrb[0].mxu0 %v3437
    %v3508 = vpop.f32.mrb[0].mxu0
    %v3509 = vadd.f32 0.0, %v3508
    %v3510 = vpop.f32.mrb[0].mxu0
    %3511 = vmatprep.mubr.f32.mxu0 0.0
    %3512 = vmatmul.mubr.f32.gmra.mrb[0].mxu0 %v3440
    %v3513 = vpop.f32.mrb[0].mxu0
    %v3514 = vadd.f32 0.0, %v3513
    %v3515 = vpop.f32.mrb[0].mxu0
    %3516 = vdwg.mxu0
    %v3517 = vadd.f32 %v3102, %v3509
    %v3518 = vadd.f32 %v3103, %v3514
    %3519 = vrot.lane.b32.xlu0 %v2520, 112
    %v3520 = vpop.permute.xlu0 %3519
    %3521 = vrot.lane.b32.xlu0 %v2600, 112
    %v3522 = vpop.permute.xlu0 %3521
    %v3523 = vsel %vm477, %v3520, 0
    %v3525 = vsel %vm477, %v3522, 0
    %3527 = vmatprep.subr.mxu0 0.0
    %3528 = vmatpush1.xpose.msra.mxu0 %v3525
    %3529 = vmatprep.subr.mxu0 0.0
    %3530 = vmatpush1.xpose.msra.mxu0 0.0
    %3531 = vmatprep.subr.mxu0 0.0
    %3532 = vmatpush1.xpose.msra.mxu0 0.0
    %3533 = vmatprep.subr.mxu0 0.0
    %3534 = vmatpush1.xpose.msra.mxu0 0.0
    %3535 = vmatprep.subr.mxu0 0.0
    %3536 = vmatpush1.xpose.msra.mxu0 0.0
    %3537 = vmatprep.subr.mxu0 0.0
    %3538 = vmatpush1.xpose.msra.mxu0 0.0
    %3539 = vmatprep.subr.mxu0 0.0
    %3540 = vmatpush1.xpose.msra.mxu0 0.0
    %3541 = vmatprep.subr.mxu0 0.0
    %3542 = vmatpush1.xpose.msra.mxu0 0.0
    %3543 = vmatprep.subr.mxu0 0.0
    %3544 = vmatpush1.xpose.msra.mxu0 0.0
    %3545 = vmatprep.subr.mxu0 0.0
    %3546 = vmatpush1.xpose.msra.mxu0 0.0
    %3547 = vmatprep.subr.mxu0 0.0
    %3548 = vmatpush1.xpose.msra.mxu0 0.0
    %3549 = vmatprep.subr.mxu0 0.0
    %3550 = vmatpush1.xpose.msra.mxu0 0.0
    %3551 = vmatprep.subr.mxu0 0.0
    %3552 = vmatpush1.xpose.msra.mxu0 0.0
    %3553 = vmatprep.subr.mxu0 0.0
    %3554 = vmatpush1.xpose.msra.mxu0 0.0
    %3555 = vmatprep.subr.mxu0 0.0
    %3556 = vmatpush1.xpose.msra.mxu0 0.0
    %3557 = vmatprep.subr.mxu0 0.0
    %3558 = vmatpush1.xpose.msra.mxu0 0.0
    %3559 = vmatprep.subr.mxu0 0.0
    %3560 = vmatpush1.xpose.msra.mxu0 0.0
    %3561 = vmatprep.subr.mxu0 0.0
    %3562 = vmatpush1.xpose.msra.mxu0 0.0
    %3563 = vmatprep.subr.mxu0 0.0
    %3564 = vmatpush1.xpose.msra.mxu0 0.0
    %3565 = vmatprep.subr.mxu0 0.0
    %3566 = vmatpush1.xpose.msra.mxu0 0.0
    %3567 = vmatprep.subr.mxu0 0.0
    %3568 = vmatpush1.xpose.msra.mxu0 0.0
    %3569 = vmatprep.subr.mxu0 0.0
    %3570 = vmatpush1.xpose.msra.mxu0 0.0
    %3571 = vmatprep.subr.mxu0 0.0
    %3572 = vmatpush1.xpose.msra.mxu0 0.0
    %3573 = vmatprep.subr.mxu0 0.0
    %3574 = vmatpush1.xpose.msra.mxu0 0.0
    %3575 = vmatprep.subr.mxu0 0.0
    %3576 = vmatpush1.xpose.msra.mxu0 0.0
    %3577 = vmatprep.subr.mxu0 0.0
    %3578 = vmatpush1.xpose.msra.mxu0 0.0
    %3579 = vmatprep.subr.mxu0 0.0
    %3580 = vmatpush1.xpose.msra.mxu0 0.0
    %3581 = vmatprep.subr.mxu0 0.0
    %3582 = vmatpush1.xpose.msra.mxu0 0.0
    %3583 = vmatprep.subr.mxu0 0.0
    %3584 = vmatpush1.xpose.msra.mxu0 0.0
    %3585 = vmatprep.subr.mxu0 0.0
    %3586 = vmatpush1.xpose.msra.mxu0 0.0
    %3587 = vmatprep.subr.mxu0 0.0
    %3588 = vmatpush1.xpose.msra.mxu0 0.0
    %3589 = vmatprep.subr.mxu0 0.0
    %3590 = vmatpush1.xpose.msra.mxu0 0.0
    %3591 = vmatprep.mubr.f32.mxu0 0.0
    %3592 = vmatmul.mubr.f32.gmra.mrb[0].mxu0 %v3523
    %v3593 = vpop.f32.mrb[0].mxu0
    %v3594 = vadd.f32 %v470, %v3593
    %v3595 = vpop.f32.mrb[0].mxu0
    %3596 = vdwg.mxu0
    %3597 = vrot.lane.b32.xlu0 %v2521, 112
    %v3598 = vpop.permute.xlu0 %3597
    %3599 = vrot.lane.b32.xlu0 %v2605, 112
    %v3600 = vpop.permute.xlu0 %3599
    %v3601 = vsel %vm477, %v3598, 0
    %v3603 = vsel %vm477, %v3600, 0
    %3605 = vmatprep.subr.mxu0 0.0
    %3606 = vmatpush1.xpose.msra.mxu0 %v3603
    %3607 = vmatprep.subr.mxu0 0.0
    %3608 = vmatpush1.xpose.msra.mxu0 0.0
    %3609 = vmatprep.subr.mxu0 0.0
    %3610 = vmatpush1.xpose.msra.mxu0 0.0
    %3611 = vmatprep.subr.mxu0 0.0
    %3612 = vmatpush1.xpose.msra.mxu0 0.0
    %3613 = vmatprep.subr.mxu0 0.0
    %3614 = vmatpush1.xpose.msra.mxu0 0.0
    %3615 = vmatprep.subr.mxu0 0.0
    %3616 = vmatpush1.xpose.msra.mxu0 0.0
    %3617 = vmatprep.subr.mxu0 0.0
    %3618 = vmatpush1.xpose.msra.mxu0 0.0
    %3619 = vmatprep.subr.mxu0 0.0
    %3620 = vmatpush1.xpose.msra.mxu0 0.0
    %3621 = vmatprep.subr.mxu0 0.0
    %3622 = vmatpush1.xpose.msra.mxu0 0.0
    %3623 = vmatprep.subr.mxu0 0.0
    %3624 = vmatpush1.xpose.msra.mxu0 0.0
    %3625 = vmatprep.subr.mxu0 0.0
    %3626 = vmatpush1.xpose.msra.mxu0 0.0
    %3627 = vmatprep.subr.mxu0 0.0
    %3628 = vmatpush1.xpose.msra.mxu0 0.0
    %3629 = vmatprep.subr.mxu0 0.0
    %3630 = vmatpush1.xpose.msra.mxu0 0.0
    %3631 = vmatprep.subr.mxu0 0.0
    %3632 = vmatpush1.xpose.msra.mxu0 0.0
    %3633 = vmatprep.subr.mxu0 0.0
    %3634 = vmatpush1.xpose.msra.mxu0 0.0
    %3635 = vmatprep.subr.mxu0 0.0
    %3636 = vmatpush1.xpose.msra.mxu0 0.0
    %3637 = vmatprep.subr.mxu0 0.0
    %3638 = vmatpush1.xpose.msra.mxu0 0.0
    %3639 = vmatprep.subr.mxu0 0.0
    %3640 = vmatpush1.xpose.msra.mxu0 0.0
    %3641 = vmatprep.subr.mxu0 0.0
    %3642 = vmatpush1.xpose.msra.mxu0 0.0
    %3643 = vmatprep.subr.mxu0 0.0
    %3644 = vmatpush1.xpose.msra.mxu0 0.0
    %3645 = vmatprep.subr.mxu0 0.0
    %3646 = vmatpush1.xpose.msra.mxu0 0.0
    %3647 = vmatprep.subr.mxu0 0.0
    %3648 = vmatpush1.xpose.msra.mxu0 0.0
    %3649 = vmatprep.subr.mxu0 0.0
    %3650 = vmatpush1.xpose.msra.mxu0 0.0
    %3651 = vmatprep.subr.mxu0 0.0
    %3652 = vmatpush1.xpose.msra.mxu0 0.0
    %3653 = vmatprep.subr.mxu0 0.0
    %3654 = vmatpush1.xpose.msra.mxu0 0.0
    %3655 = vmatprep.subr.mxu0 0.0
    %3656 = vmatpush1.xpose.msra.mxu0 0.0
    %3657 = vmatprep.subr.mxu0 0.0
    %3658 = vmatpush1.xpose.msra.mxu0 0.0
    %3659 = vmatprep.subr.mxu0 0.0
    %3660 = vmatpush1.xpose.msra.mxu0 0.0
    %3661 = vmatprep.subr.mxu0 0.0
    %3662 = vmatpush1.xpose.msra.mxu0 0.0
    %3663 = vmatprep.subr.mxu0 0.0
    %3664 = vmatpush1.xpose.msra.mxu0 0.0
    %3665 = vmatprep.subr.mxu0 0.0
    %3666 = vmatpush1.xpose.msra.mxu0 0.0
    %3667 = vmatprep.subr.mxu0 0.0
    %3668 = vmatpush1.xpose.msra.mxu0 0.0
    %3669 = vmatprep.mubr.f32.mxu0 0.0
    %3670 = vmatmul.mubr.f32.gmra.mrb[0].mxu0 %v3601
    %v3671 = vpop.f32.mrb[0].mxu0
    %v3672 = vadd.f32 %v474, %v3671
    %v3673 = vpop.f32.mrb[0].mxu0
    %3674 = vdwg.mxu0
    %v3675 = vsel %vm477, %v3594, -inf
    %3676 = vmax.xlane.f32.xlu0 %v3675
    %v3677 = vpop.xlane.xlu0 %3676
    %v3678 = vsel %vm477, %v3672, -inf
    %3679 = vmax.xlane.f32.xlu0 %v3678
    %v3680 = vpop.xlane.xlu0 %3679
    %v3681 = vsub.f32 %v3594, %v3677
    %v3682 = vsub.f32 %v3672, %v3680
    %v3683 = vmul.f32 %v3681, 1.442695
    %v3684 = vpow.pop %v3683
    %v3685 = vmul.f32 %v3682, 1.442695
    %v3686 = vpow.pop %v3685
    %v3687 = vsel %vm477, %v3684, 0.0
    %3688 = vadd.xlane.f32.xlu0 %v3687
    %v3689 = vpop.xlane.xlu0 %3688
    %v3690 = vsel %vm477, %v3686, 0.0
    %3691 = vadd.xlane.f32.xlu0 %v3690
    %v3692 = vpop.xlane.xlu0 %3691
    %v3693 = vrcp.pop %v3689
    %v3694 = vmul.f32 %v3684, %v3693
    %v3695 = vrcp.pop %v3692
    %v3696 = vmul.f32 %v3686, %v3695
    %3697 = vrot.lane.b32.xlu0 %v2686, 112
    %v3698 = vpop.permute.xlu0 %3697
    %v3701 = vsel %vm477, %v3694, 0
    %3703 = vmatprep.subr.mxu0 0.0
    %3704 = vmatpush1.msra.mxu0 %v3698
    %3705 = vmatprep.subr.mxu0 0.0
    %3706 = vmatpush1.msra.mxu0 0.0
    %3707 = vmatprep.subr.mxu0 0.0
    %3708 = vmatpush1.msra.mxu0 0.0
    %3709 = vmatprep.subr.mxu0 0.0
    %3710 = vmatpush1.msra.mxu0 0.0
    %3711 = vmatprep.subr.mxu0 0.0
    %3712 = vmatpush1.msra.mxu0 0.0
    %3713 = vmatprep.subr.mxu0 0.0
    %3714 = vmatpush1.msra.mxu0 0.0
    %3715 = vmatprep.subr.mxu0 0.0
    %3716 = vmatpush1.msra.mxu0 0.0
    %3717 = vmatprep.subr.mxu0 0.0
    %3718 = vmatpush1.msra.mxu0 0.0
    %3719 = vmatprep.subr.mxu0 0.0
    %3720 = vmatpush1.msra.mxu0 0.0
    %3721 = vmatprep.subr.mxu0 0.0
    %3722 = vmatpush1.msra.mxu0 0.0
    %3723 = vmatprep.subr.mxu0 0.0
    %3724 = vmatpush1.msra.mxu0 0.0
    %3725 = vmatprep.subr.mxu0 0.0
    %3726 = vmatpush1.msra.mxu0 0.0
    %3727 = vmatprep.subr.mxu0 0.0
    %3728 = vmatpush1.msra.mxu0 0.0
    %3729 = vmatprep.subr.mxu0 0.0
    %3730 = vmatpush1.msra.mxu0 0.0
    %3731 = vmatprep.subr.mxu0 0.0
    %3732 = vmatpush1.msra.mxu0 0.0
    %3733 = vmatprep.subr.mxu0 0.0
    %3734 = vmatpush1.msra.mxu0 0.0
    %3735 = vmatprep.subr.mxu0 0.0
    %3736 = vmatpush1.msra.mxu0 0.0
    %3737 = vmatprep.subr.mxu0 0.0
    %3738 = vmatpush1.msra.mxu0 0.0
    %3739 = vmatprep.subr.mxu0 0.0
    %3740 = vmatpush1.msra.mxu0 0.0
    %3741 = vmatprep.subr.mxu0 0.0
    %3742 = vmatpush1.msra.mxu0 0.0
    %3743 = vmatprep.subr.mxu0 0.0
    %3744 = vmatpush1.msra.mxu0 0.0
    %3745 = vmatprep.subr.mxu0 0.0
    %3746 = vmatpush1.msra.mxu0 0.0
    %3747 = vmatprep.subr.mxu0 0.0
    %3748 = vmatpush1.msra.mxu0 0.0
    %3749 = vmatprep.subr.mxu0 0.0
    %3750 = vmatpush1.msra.mxu0 0.0
    %3751 = vmatprep.subr.mxu0 0.0
    %3752 = vmatpush1.msra.mxu0 0.0
    %3753 = vmatprep.subr.mxu0 0.0
    %3754 = vmatpush1.msra.mxu0 0.0
    %3755 = vmatprep.subr.mxu0 0.0
    %3756 = vmatpush1.msra.mxu0 0.0
    %3757 = vmatprep.subr.mxu0 0.0
    %3758 = vmatpush1.msra.mxu0 0.0
    %3759 = vmatprep.subr.mxu0 0.0
    %3760 = vmatpush1.msra.mxu0 0.0
    %3761 = vmatprep.subr.mxu0 0.0
    %3762 = vmatpush1.msra.mxu0 0.0
    %3763 = vmatprep.subr.mxu0 0.0
    %3764 = vmatpush1.msra.mxu0 0.0
    %3765 = vmatprep.subr.mxu0 0.0
    %3766 = vmatpush1.msra.mxu0 0.0
    %3767 = vmatprep.mubr.f32.mxu0 0.0
    %3768 = vmatmul.mubr.f32.gmra.mrb[0].mxu0 %v3701
    %v3769 = vpop.f32.mrb[0].mxu0
    %v3770 = vadd.f32 0.0, %v3769
    %v3771 = vpop.f32.mrb[0].mxu0
    %3772 = vdwg.mxu0
    %3773 = vrot.lane.b32.xlu0 %v2691, 112
    %v3774 = vpop.permute.xlu0 %3773
    %v3777 = vsel %vm477, %v3696, 0
    %3779 = vmatprep.subr.mxu0 0.0
    %3780 = vmatpush1.msra.mxu0 %v3774
    %3781 = vmatprep.subr.mxu0 0.0
    %3782 = vmatpush1.msra.mxu0 0.0
    %3783 = vmatprep.subr.mxu0 0.0
    %3784 = vmatpush1.msra.mxu0 0.0
    %3785 = vmatprep.subr.mxu0 0.0
    %3786 = vmatpush1.msra.mxu0 0.0
    %3787 = vmatprep.subr.mxu0 0.0
    %3788 = vmatpush1.msra.mxu0 0.0
    %3789 = vmatprep.subr.mxu0 0.0
    %3790 = vmatpush1.msra.mxu0 0.0
    %3791 = vmatprep.subr.mxu0 0.0
    %3792 = vmatpush1.msra.mxu0 0.0
    %3793 = vmatprep.subr.mxu0 0.0
    %3794 = vmatpush1.msra.mxu0 0.0
    %3795 = vmatprep.subr.mxu0 0.0
    %3796 = vmatpush1.msra.mxu0 0.0
    %3797 = vmatprep.subr.mxu0 0.0
    %3798 = vmatpush1.msra.mxu0 0.0
    %3799 = vmatprep.subr.mxu0 0.0
    %3800 = vmatpush1.msra.mxu0 0.0
    %3801 = vmatprep.subr.mxu0 0.0
    %3802 = vmatpush1.msra.mxu0 0.0
    %3803 = vmatprep.subr.mxu0 0.0
    %3804 = vmatpush1.msra.mxu0 0.0
    %3805 = vmatprep.subr.mxu0 0.0
    %3806 = vmatpush1.msra.mxu0 0.0
    %3807 = vmatprep.subr.mxu0 0.0
    %3808 = vmatpush1.msra.mxu0 0.0
    %3809 = vmatprep.subr.mxu0 0.0
    %3810 = vmatpush1.msra.mxu0 0.0
    %3811 = vmatprep.subr.mxu0 0.0
    %3812 = vmatpush1.msra.mxu0 0.0
    %3813 = vmatprep.subr.mxu0 0.0
    %3814 = vmatpush1.msra.mxu0 0.0
    %3815 = vmatprep.subr.mxu0 0.0
    %3816 = vmatpush1.msra.mxu0 0.0
    %3817 = vmatprep.subr.mxu0 0.0
    %3818 = vmatpush1.msra.mxu0 0.0
    %3819 = vmatprep.subr.mxu0 0.0
    %3820 = vmatpush1.msra.mxu0 0.0
    %3821 = vmatprep.subr.mxu0 0.0
    %3822 = vmatpush1.msra.mxu0 0.0
    %3823 = vmatprep.subr.mxu0 0.0
    %3824 = vmatpush1.msra.mxu0 0.0
    %3825 = vmatprep.subr.mxu0 0.0
    %3826 = vmatpush1.msra.mxu0 0.0
    %3827 = vmatprep.subr.mxu0 0.0
    %3828 = vmatpush1.msra.mxu0 0.0
    %3829 = vmatprep.subr.mxu0 0.0
    %3830 = vmatpush1.msra.mxu0 0.0
    %3831 = vmatprep.subr.mxu0 0.0
    %3832 = vmatpush1.msra.mxu0 0.0
    %3833 = vmatprep.subr.mxu0 0.0
    %3834 = vmatpush1.msra.mxu0 0.0
    %3835 = vmatprep.subr.mxu0 0.0
    %3836 = vmatpush1.msra.mxu0 0.0
    %3837 = vmatprep.subr.mxu0 0.0
    %3838 = vmatpush1.msra.mxu0 0.0
    %3839 = vmatprep.subr.mxu0 0.0
    %3840 = vmatpush1.msra.mxu0 0.0
    %3841 = vmatprep.subr.mxu0 0.0
    %3842 = vmatpush1.msra.mxu0 0.0
    %3843 = vmatprep.mubr.f32.mxu0 0.0
    %3844 = vmatmul.mubr.f32.gmra.mrb[0].mxu0 %v3777
    %v3845 = vpop.f32.mrb[0].mxu0
    %v3846 = vadd.f32 0.0, %v3845
    %v3847 = vpop.f32.mrb[0].mxu0
    %3848 = vdwg.mxu0
    %v3850 = vsel %vm477, %v3770, 0
    %v3853 = vsel %vm477, %v3846, 0
    %3855 = vmatprep.subr.mxu0 0.0
    %3856 = vmatpush1.msra.mxu0 %v198
    %3857 = vmatprep.subr.mxu0 0.0
    %3858 = vmatpush1.msra.mxu0 0.0
    %3859 = vmatprep.subr.mxu0 0.0
    %3860 = vmatpush1.msra.mxu0 0.0
    %3861 = vmatprep.subr.mxu0 0.0
    %3862 = vmatpush1.msra.mxu0 0.0
    %3863 = vmatprep.subr.mxu0 0.0
    %3864 = vmatpush1.msra.mxu0 0.0
    %3865 = vmatprep.subr.mxu0 0.0
    %3866 = vmatpush1.msra.mxu0 0.0
    %3867 = vmatprep.subr.mxu0 0.0
    %3868 = vmatpush1.msra.mxu0 0.0
    %3869 = vmatprep.subr.mxu0 0.0
    %3870 = vmatpush1.msra.mxu0 0.0
    %3871 = vmatprep.subr.mxu0 0.0
    %3872 = vmatpush1.msra.mxu0 0.0
    %3873 = vmatprep.subr.mxu0 0.0
    %3874 = vmatpush1.msra.mxu0 0.0
    %3875 = vmatprep.subr.mxu0 0.0
    %3876 = vmatpush1.msra.mxu0 0.0
    %3877 = vmatprep.subr.mxu0 0.0
    %3878 = vmatpush1.msra.mxu0 0.0
    %3879 = vmatprep.subr.mxu0 0.0
    %3880 = vmatpush1.msra.mxu0 0.0
    %3881 = vmatprep.subr.mxu0 0.0
    %3882 = vmatpush1.msra.mxu0 0.0
    %3883 = vmatprep.subr.mxu0 0.0
    %3884 = vmatpush1.msra.mxu0 0.0
    %3885 = vmatprep.subr.mxu0 0.0
    %3886 = vmatpush1.msra.mxu0 0.0
    %3887 = vmatprep.subr.mxu0 0.0
    %3888 = vmatpush1.msra.mxu0 0.0
    %3889 = vmatprep.subr.mxu0 0.0
    %3890 = vmatpush1.msra.mxu0 0.0
    %3891 = vmatprep.subr.mxu0 0.0
    %3892 = vmatpush1.msra.mxu0 0.0
    %3893 = vmatprep.subr.mxu0 0.0
    %3894 = vmatpush1.msra.mxu0 0.0
    %3895 = vmatprep.subr.mxu0 0.0
    %3896 = vmatpush1.msra.mxu0 0.0
    %3897 = vmatprep.subr.mxu0 0.0
    %3898 = vmatpush1.msra.mxu0 0.0
    %3899 = vmatprep.subr.mxu0 0.0
    %3900 = vmatpush1.msra.mxu0 0.0
    %3901 = vmatprep.subr.mxu0 0.0
    %3902 = vmatpush1.msra.mxu0 0.0
    %3903 = vmatprep.subr.mxu0 0.0
    %3904 = vmatpush1.msra.mxu0 0.0
    %3905 = vmatprep.subr.mxu0 0.0
    %3906 = vmatpush1.msra.mxu0 0.0
    %3907 = vmatprep.subr.mxu0 0.0
    %3908 = vmatpush1.msra.mxu0 0.0
    %3909 = vmatprep.subr.mxu0 0.0
    %3910 = vmatpush1.msra.mxu0 0.0
    %3911 = vmatprep.subr.mxu0 0.0
    %3912 = vmatpush1.msra.mxu0 0.0
    %3913 = vmatprep.subr.mxu0 0.0
    %3914 = vmatpush1.msra.mxu0 0.0
    %3915 = vmatprep.subr.mxu0 0.0
    %3916 = vmatpush1.msra.mxu0 0.0
    %3917 = vmatprep.subr.mxu0 0.0
    %3918 = vmatpush1.msra.mxu0 0.0
    %3919 = vmatprep.mubr.f32.mxu0 0.0
    %3920 = vmatmul.mubr.f32.gmra.mrb[0].mxu0 %v3850
    %v3921 = vpop.f32.mrb[0].mxu0
    %v3922 = vadd.f32 0.0, %v3921
    %v3923 = vpop.f32.mrb[0].mxu0
    %3924 = vmatprep.mubr.f32.mxu0 0.0
    %3925 = vmatmul.mubr.f32.gmra.mrb[0].mxu0 %v3853
    %v3926 = vpop.f32.mrb[0].mxu0
    %v3927 = vadd.f32 0.0, %v3926
    %v3928 = vpop.f32.mrb[0].mxu0
    %3929 = vdwg.mxu0
    %v3930 = vadd.f32 %v3517, %v3922
    %v3931 = vadd.f32 %v3518, %v3927
    %3932 = vrot.lane.b32.xlu0 %v2520, 104
    %v3933 = vpop.permute.xlu0 %3932
    %3934 = vrot.lane.b32.xlu0 %v2600, 104
    %v3935 = vpop.permute.xlu0 %3934
    %v3936 = vsel %vm477, %v3933, 0
    %v3938 = vsel %vm477, %v3935, 0
    %3940 = vmatprep.subr.mxu0 0.0
    %3941 = vmatpush1.xpose.msra.mxu0 %v3938
    %3942 = vmatprep.subr.mxu0 0.0
    %3943 = vmatpush1.xpose.msra.mxu0 0.0
    %3944 = vmatprep.subr.mxu0 0.0
    %3945 = vmatpush1.xpose.msra.mxu0 0.0
    %3946 = vmatprep.subr.mxu0 0.0
    %3947 = vmatpush1.xpose.msra.mxu0 0.0
    %3948 = vmatprep.subr.mxu0 0.0
    %3949 = vmatpush1.xpose.msra.mxu0 0.0
    %3950 = vmatprep.subr.mxu0 0.0
    %3951 = vmatpush1.xpose.msra.mxu0 0.0
    %3952 = vmatprep.subr.mxu0 0.0
    %3953 = vmatpush1.xpose.msra.mxu0 0.0
    %3954 = vmatprep.subr.mxu0 0.0
    %3955 = vmatpush1.xpose.msra.mxu0 0.0
    %3956 = vmatprep.subr.mxu0 0.0
    %3957 = vmatpush1.xpose.msra.mxu0 0.0
    %3958 = vmatprep.subr.mxu0 0.0
    %3959 = vmatpush1.xpose.msra.mxu0 0.0
    %3960 = vmatprep.subr.mxu0 0.0
    %3961 = vmatpush1.xpose.msra.mxu0 0.0
    %3962 = vmatprep.subr.mxu0 0.0
    %3963 = vmatpush1.xpose.msra.mxu0 0.0
    %3964 = vmatprep.subr.mxu0 0.0
    %3965 = vmatpush1.xpose.msra.mxu0 0.0
    %3966 = vmatprep.subr.mxu0 0.0
    %3967 = vmatpush1.xpose.msra.mxu0 0.0
    %3968 = vmatprep.subr.mxu0 0.0
    %3969 = vmatpush1.xpose.msra.mxu0 0.0
    %3970 = vmatprep.subr.mxu0 0.0
    %3971 = vmatpush1.xpose.msra.mxu0 0.0
    %3972 = vmatprep.subr.mxu0 0.0
    %3973 = vmatpush1.xpose.msra.mxu0 0.0
    %3974 = vmatprep.subr.mxu0 0.0
    %3975 = vmatpush1.xpose.msra.mxu0 0.0
    %3976 = vmatprep.subr.mxu0 0.0
    %3977 = vmatpush1.xpose.msra.mxu0 0.0
    %3978 = vmatprep.subr.mxu0 0.0
    %3979 = vmatpush1.xpose.msra.mxu0 0.0
    %3980 = vmatprep.subr.mxu0 0.0
    %3981 = vmatpush1.xpose.msra.mxu0 0.0
    %3982 = vmatprep.subr.mxu0 0.0
    %3983 = vmatpush1.xpose.msra.mxu0 0.0
    %3984 = vmatprep.subr.mxu0 0.0
    %3985 = vmatpush1.xpose.msra.mxu0 0.0
    %3986 = vmatprep.subr.mxu0 0.0
    %3987 = vmatpush1.xpose.msra.mxu0 0.0
    %3988 = vmatprep.subr.mxu0 0.0
    %3989 = vmatpush1.xpose.msra.mxu0 0.0
    %3990 = vmatprep.subr.mxu0 0.0
    %3991 = vmatpush1.xpose.msra.mxu0 0.0
    %3992 = vmatprep.subr.mxu0 0.0
    %3993 = vmatpush1.xpose.msra.mxu0 0.0
    %3994 = vmatprep.subr.mxu0 0.0
    %3995 = vmatpush1.xpose.msra.mxu0 0.0
    %3996 = vmatprep.subr.mxu0 0.0
    %3997 = vmatpush1.xpose.msra.mxu0 0.0
    %3998 = vmatprep.subr.mxu0 0.0
    %3999 = vmatpush1.xpose.msra.mxu0 0.0
    %4000 = vmatprep.subr.mxu0 0.0
    %4001 = vmatpush1.xpose.msra.mxu0 0.0
    %4002 = vmatprep.subr.mxu0 0.0
    %4003 = vmatpush1.xpose.msra.mxu0 0.0
    %4004 = vmatprep.mubr.f32.mxu0 0.0
    %4005 = vmatmul.mubr.f32.gmra.mrb[0].mxu0 %v3936
    %v4006 = vpop.f32.mrb[0].mxu0
    %v4007 = vadd.f32 %v470, %v4006
    %v4008 = vpop.f32.mrb[0].mxu0
    %4009 = vdwg.mxu0
    %4010 = vrot.lane.b32.xlu0 %v2521, 104
    %v4011 = vpop.permute.xlu0 %4010
    %4012 = vrot.lane.b32.xlu0 %v2605, 104
    %v4013 = vpop.permute.xlu0 %4012
    %v4014 = vsel %vm477, %v4011, 0
    %v4016 = vsel %vm477, %v4013, 0
    %4018 = vmatprep.subr.mxu0 0.0
    %4019 = vmatpush1.xpose.msra.mxu0 %v4016
    %4020 = vmatprep.subr.mxu0 0.0
    %4021 = vmatpush1.xpose.msra.mxu0 0.0
    %4022 = vmatprep.subr.mxu0 0.0
    %4023 = vmatpush1.xpose.msra.mxu0 0.0
    %4024 = vmatprep.subr.mxu0 0.0
    %4025 = vmatpush1.xpose.msra.mxu0 0.0
    %4026 = vmatprep.subr.mxu0 0.0
    %4027 = vmatpush1.xpose.msra.mxu0 0.0
    %4028 = vmatprep.subr.mxu0 0.0
    %4029 = vmatpush1.xpose.msra.mxu0 0.0
    %4030 = vmatprep.subr.mxu0 0.0
    %4031 = vmatpush1.xpose.msra.mxu0 0.0
    %4032 = vmatprep.subr.mxu0 0.0
    %4033 = vmatpush1.xpose.msra.mxu0 0.0
    %4034 = vmatprep.subr.mxu0 0.0
    %4035 = vmatpush1.xpose.msra.mxu0 0.0
    %4036 = vmatprep.subr.mxu0 0.0
    %4037 = vmatpush1.xpose.msra.mxu0 0.0
    %4038 = vmatprep.subr.mxu0 0.0
    %4039 = vmatpush1.xpose.msra.mxu0 0.0
    %4040 = vmatprep.subr.mxu0 0.0
    %4041 = vmatpush1.xpose.msra.mxu0 0.0
    %4042 = vmatprep.subr.mxu0 0.0
    %4043 = vmatpush1.xpose.msra.mxu0 0.0
    %4044 = vmatprep.subr.mxu0 0.0
    %4045 = vmatpush1.xpose.msra.mxu0 0.0
    %4046 = vmatprep.subr.mxu0 0.0
    %4047 = vmatpush1.xpose.msra.mxu0 0.0
    %4048 = vmatprep.subr.mxu0 0.0
    %4049 = vmatpush1.xpose.msra.mxu0 0.0
    %4050 = vmatprep.subr.mxu0 0.0
    %4051 = vmatpush1.xpose.msra.mxu0 0.0
    %4052 = vmatprep.subr.mxu0 0.0
    %4053 = vmatpush1.xpose.msra.mxu0 0.0
    %4054 = vmatprep.subr.mxu0 0.0
    %4055 = vmatpush1.xpose.msra.mxu0 0.0
    %4056 = vmatprep.subr.mxu0 0.0
    %4057 = vmatpush1.xpose.msra.mxu0 0.0
    %4058 = vmatprep.subr.mxu0 0.0
    %4059 = vmatpush1.xpose.msra.mxu0 0.0
    %4060 = vmatprep.subr.mxu0 0.0
    %4061 = vmatpush1.xpose.msra.mxu0 0.0
    %4062 = vmatprep.subr.mxu0 0.0
    %4063 = vmatpush1.xpose.msra.mxu0 0.0
    %4064 = vmatprep.subr.mxu0 0.0
    %4065 = vmatpush1.xpose.msra.mxu0 0.0
    %4066 = vmatprep.subr.mxu0 0.0
    %4067 = vmatpush1.xpose.msra.mxu0 0.0
    %4068 = vmatprep.subr.mxu0 0.0
    %4069 = vmatpush1.xpose.msra.mxu0 0.0
    %4070 = vmatprep.subr.mxu0 0.0
    %4071 = vmatpush1.xpose.msra.mxu0 0.0
    %4072 = vmatprep.subr.mxu0 0.0
    %4073 = vmatpush1.xpose.msra.mxu0 0.0
    %4074 = vmatprep.subr.mxu0 0.0
    %4075 = vmatpush1.xpose.msra.mxu0 0.0
    %4076 = vmatprep.subr.mxu0 0.0
    %4077 = vmatpush1.xpose.msra.mxu0 0.0
    %4078 = vmatprep.subr.mxu0 0.0
    %4079 = vmatpush1.xpose.msra.mxu0 0.0
    %4080 = vmatprep.subr.mxu0 0.0
    %4081 = vmatpush1.xpose.msra.mxu0 0.0
    %4082 = vmatprep.mubr.f32.mxu0 0.0
    %4083 = vmatmul.mubr.f32.gmra.mrb[0].mxu0 %v4014
    %v4084 = vpop.f32.mrb[0].mxu0
    %v4085 = vadd.f32 %v474, %v4084
    %v4086 = vpop.f32.mrb[0].mxu0
    %4087 = vdwg.mxu0
    %v4088 = vsel %vm477, %v4007, -inf
    %4089 = vmax.xlane.f32.xlu0 %v4088
    %v4090 = vpop.xlane.xlu0 %4089
    %v4091 = vsel %vm477, %v4085, -inf
    %4092 = vmax.xlane.f32.xlu0 %v4091
    %v4093 = vpop.xlane.xlu0 %4092
    %v4094 = vsub.f32 %v4007, %v4090
    %v4095 = vsub.f32 %v4085, %v4093
    %v4096 = vmul.f32 %v4094, 1.442695
    %v4097 = vpow.pop %v4096
    %v4098 = vmul.f32 %v4095, 1.442695
    %v4099 = vpow.pop %v4098
    %v4100 = vsel %vm477, %v4097, 0.0
    %4101 = vadd.xlane.f32.xlu0 %v4100
    %v4102 = vpop.xlane.xlu0 %4101
    %v4103 = vsel %vm477, %v4099, 0.0
    %4104 = vadd.xlane.f32.xlu0 %v4103
    %v4105 = vpop.xlane.xlu0 %4104
    %v4106 = vrcp.pop %v4102
    %v4107 = vmul.f32 %v4097, %v4106
    %v4108 = vrcp.pop %v4105
    %v4109 = vmul.f32 %v4099, %v4108
    %4110 = vrot.lane.b32.xlu0 %v2686, 104
    %v4111 = vpop.permute.xlu0 %4110
    %v4114 = vsel %vm477, %v4107, 0
    %4116 = vmatprep.subr.mxu0 0.0
    %4117 = vmatpush1.msra.mxu0 %v4111
    %4118 = vmatprep.subr.mxu0 0.0
    %4119 = vmatpush1.msra.mxu0 0.0
    %4120 = vmatprep.subr.mxu0 0.0
    %4121 = vmatpush1.msra.mxu0 0.0
    %4122 = vmatprep.subr.mxu0 0.0
    %4123 = vmatpush1.msra.mxu0 0.0
    %4124 = vmatprep.subr.mxu0 0.0
    %4125 = vmatpush1.msra.mxu0 0.0
    %4126 = vmatprep.subr.mxu0 0.0
    %4127 = vmatpush1.msra.mxu0 0.0
    %4128 = vmatprep.subr.mxu0 0.0
    %4129 = vmatpush1.msra.mxu0 0.0
    %4130 = vmatprep.subr.mxu0 0.0
    %4131 = vmatpush1.msra.mxu0 0.0
    %4132 = vmatprep.subr.mxu0 0.0
    %4133 = vmatpush1.msra.mxu0 0.0
    %4134 = vmatprep.subr.mxu0 0.0
    %4135 = vmatpush1.msra.mxu0 0.0
    %4136 = vmatprep.subr.mxu0 0.0
    %4137 = vmatpush1.msra.mxu0 0.0
    %4138 = vmatprep.subr.mxu0 0.0
    %4139 = vmatpush1.msra.mxu0 0.0
    %4140 = vmatprep.subr.mxu0 0.0
    %4141 = vmatpush1.msra.mxu0 0.0
    %4142 = vmatprep.subr.mxu0 0.0
    %4143 = vmatpush1.msra.mxu0 0.0
    %4144 = vmatprep.subr.mxu0 0.0
    %4145 = vmatpush1.msra.mxu0 0.0
    %4146 = vmatprep.subr.mxu0 0.0
    %4147 = vmatpush1.msra.mxu0 0.0
    %4148 = vmatprep.subr.mxu0 0.0
    %4149 = vmatpush1.msra.mxu0 0.0
    %4150 = vmatprep.subr.mxu0 0.0
    %4151 = vmatpush1.msra.mxu0 0.0
    %4152 = vmatprep.subr.mxu0 0.0
    %4153 = vmatpush1.msra.mxu0 0.0
    %4154 = vmatprep.subr.mxu0 0.0
    %4155 = vmatpush1.msra.mxu0 0.0
    %4156 = vmatprep.subr.mxu0 0.0
    %4157 = vmatpush1.msra.mxu0 0.0
    %4158 = vmatprep.subr.mxu0 0.0
    %4159 = vmatpush1.msra.mxu0 0.0
    %4160 = vmatprep.subr.mxu0 0.0
    %4161 = vmatpush1.msra.mxu0 0.0
    %4162 = vmatprep.subr.mxu0 0.0
    %4163 = vmatpush1.msra.mxu0 0.0
    %4164 = vmatprep.subr.mxu0 0.0
    %4165 = vmatpush1.msra.mxu0 0.0
    %4166 = vmatprep.subr.mxu0 0.0
    %4167 = vmatpush1.msra.mxu0 0.0
    %4168 = vmatprep.subr.mxu0 0.0
    %4169 = vmatpush1.msra.mxu0 0.0
    %4170 = vmatprep.subr.mxu0 0.0
    %4171 = vmatpush1.msra.mxu0 0.0
    %4172 = vmatprep.subr.mxu0 0.0
    %4173 = vmatpush1.msra.mxu0 0.0
    %4174 = vmatprep.subr.mxu0 0.0
    %4175 = vmatpush1.msra.mxu0 0.0
    %4176 = vmatprep.subr.mxu0 0.0
    %4177 = vmatpush1.msra.mxu0 0.0
    %4178 = vmatprep.subr.mxu0 0.0
    %4179 = vmatpush1.msra.mxu0 0.0
    %4180 = vmatprep.mubr.f32.mxu0 0.0
    %4181 = vmatmul.mubr.f32.gmra.mrb[0].mxu0 %v4114
    %v4182 = vpop.f32.mrb[0].mxu0
    %v4183 = vadd.f32 0.0, %v4182
    %v4184 = vpop.f32.mrb[0].mxu0
    %4185 = vdwg.mxu0
    %4186 = vrot.lane.b32.xlu0 %v2691, 104
    %v4187 = vpop.permute.xlu0 %4186
    %v4190 = vsel %vm477, %v4109, 0
    %4192 = vmatprep.subr.mxu0 0.0
    %4193 = vmatpush1.msra.mxu0 %v4187
    %4194 = vmatprep.subr.mxu0 0.0
    %4195 = vmatpush1.msra.mxu0 0.0
    %4196 = vmatprep.subr.mxu0 0.0
    %4197 = vmatpush1.msra.mxu0 0.0
    %4198 = vmatprep.subr.mxu0 0.0
    %4199 = vmatpush1.msra.mxu0 0.0
    %4200 = vmatprep.subr.mxu0 0.0
    %4201 = vmatpush1.msra.mxu0 0.0
    %4202 = vmatprep.subr.mxu0 0.0
    %4203 = vmatpush1.msra.mxu0 0.0
    %4204 = vmatprep.subr.mxu0 0.0
    %4205 = vmatpush1.msra.mxu0 0.0
    %4206 = vmatprep.subr.mxu0 0.0
    %4207 = vmatpush1.msra.mxu0 0.0
    %4208 = vmatprep.subr.mxu0 0.0
    %4209 = vmatpush1.msra.mxu0 0.0
    %4210 = vmatprep.subr.mxu0 0.0
    %4211 = vmatpush1.msra.mxu0 0.0
    %4212 = vmatprep.subr.mxu0 0.0
    %4213 = vmatpush1.msra.mxu0 0.0
    %4214 = vmatprep.subr.mxu0 0.0
    %4215 = vmatpush1.msra.mxu0 0.0
    %4216 = vmatprep.subr.mxu0 0.0
    %4217 = vmatpush1.msra.mxu0 0.0
    %4218 = vmatprep.subr.mxu0 0.0
    %4219 = vmatpush1.msra.mxu0 0.0
    %4220 = vmatprep.subr.mxu0 0.0
    %4221 = vmatpush1.msra.mxu0 0.0
    %4222 = vmatprep.subr.mxu0 0.0
    %4223 = vmatpush1.msra.mxu0 0.0
    %4224 = vmatprep.subr.mxu0 0.0
    %4225 = vmatpush1.msra.mxu0 0.0
    %4226 = vmatprep.subr.mxu0 0.0
    %4227 = vmatpush1.msra.mxu0 0.0
    %4228 = vmatprep.subr.mxu0 0.0
    %4229 = vmatpush1.msra.mxu0 0.0
    %4230 = vmatprep.subr.mxu0 0.0
    %4231 = vmatpush1.msra.mxu0 0.0
    %4232 = vmatprep.subr.mxu0 0.0
    %4233 = vmatpush1.msra.mxu0 0.0
    %4234 = vmatprep.subr.mxu0 0.0
    %4235 = vmatpush1.msra.mxu0 0.0
    %4236 = vmatprep.subr.mxu0 0.0
    %4237 = vmatpush1.msra.mxu0 0.0
    %4238 = vmatprep.subr.mxu0 0.0
    %4239 = vmatpush1.msra.mxu0 0.0
    %4240 = vmatprep.subr.mxu0 0.0
    %4241 = vmatpush1.msra.mxu0 0.0
    %4242 = vmatprep.subr.mxu0 0.0
    %4243 = vmatpush1.msra.mxu0 0.0
    %4244 = vmatprep.subr.mxu0 0.0
    %4245 = vmatpush1.msra.mxu0 0.0
    %4246 = vmatprep.subr.mxu0 0.0
    %4247 = vmatpush1.msra.mxu0 0.0
    %4248 = vmatprep.subr.mxu0 0.0
    %4249 = vmatpush1.msra.mxu0 0.0
    %4250 = vmatprep.subr.mxu0 0.0
    %4251 = vmatpush1.msra.mxu0 0.0
    %4252 = vmatprep.subr.mxu0 0.0
    %4253 = vmatpush1.msra.mxu0 0.0
    %4254 = vmatprep.subr.mxu0 0.0
    %4255 = vmatpush1.msra.mxu0 0.0
    %4256 = vmatprep.mubr.f32.mxu0 0.0
    %4257 = vmatmul.mubr.f32.gmra.mrb[0].mxu0 %v4190
    %v4258 = vpop.f32.mrb[0].mxu0
    %v4259 = vadd.f32 0.0, %v4258
    %v4260 = vpop.f32.mrb[0].mxu0
    %4261 = vdwg.mxu0
    %v4263 = vsel %vm477, %v4183, 0
    %v4266 = vsel %vm477, %v4259, 0
    %4268 = vmatprep.subr.mxu0 0.0
    %4269 = vmatpush1.msra.mxu0 %v199
    %4270 = vmatprep.subr.mxu0 0.0
    %4271 = vmatpush1.msra.mxu0 0.0
    %4272 = vmatprep.subr.mxu0 0.0
    %4273 = vmatpush1.msra.mxu0 0.0
    %4274 = vmatprep.subr.mxu0 0.0
    %4275 = vmatpush1.msra.mxu0 0.0
    %4276 = vmatprep.subr.mxu0 0.0
    %4277 = vmatpush1.msra.mxu0 0.0
    %4278 = vmatprep.subr.mxu0 0.0
    %4279 = vmatpush1.msra.mxu0 0.0
    %4280 = vmatprep.subr.mxu0 0.0
    %4281 = vmatpush1.msra.mxu0 0.0
    %4282 = vmatprep.subr.mxu0 0.0
    %4283 = vmatpush1.msra.mxu0 0.0
    %4284 = vmatprep.subr.mxu0 0.0
    %4285 = vmatpush1.msra.mxu0 0.0
    %4286 = vmatprep.subr.mxu0 0.0
    %4287 = vmatpush1.msra.mxu0 0.0
    %4288 = vmatprep.subr.mxu0 0.0
    %4289 = vmatpush1.msra.mxu0 0.0
    %4290 = vmatprep.subr.mxu0 0.0
    %4291 = vmatpush1.msra.mxu0 0.0
    %4292 = vmatprep.subr.mxu0 0.0
    %4293 = vmatpush1.msra.mxu0 0.0
    %4294 = vmatprep.subr.mxu0 0.0
    %4295 = vmatpush1.msra.mxu0 0.0
    %4296 = vmatprep.subr.mxu0 0.0
    %4297 = vmatpush1.msra.mxu0 0.0
    %4298 = vmatprep.subr.mxu0 0.0
    %4299 = vmatpush1.msra.mxu0 0.0
    %4300 = vmatprep.subr.mxu0 0.0
    %4301 = vmatpush1.msra.mxu0 0.0
    %4302 = vmatprep.subr.mxu0 0.0
    %4303 = vmatpush1.msra.mxu0 0.0
    %4304 = vmatprep.subr.mxu0 0.0
    %4305 = vmatpush1.msra.mxu0 0.0
    %4306 = vmatprep.subr.mxu0 0.0
    %4307 = vmatpush1.msra.mxu0 0.0
    %4308 = vmatprep.subr.mxu0 0.0
    %4309 = vmatpush1.msra.mxu0 0.0
    %4310 = vmatprep.subr.mxu0 0.0
    %4311 = vmatpush1.msra.mxu0 0.0
    %4312 = vmatprep.subr.mxu0 0.0
    %4313 = vmatpush1.msra.mxu0 0.0
    %4314 = vmatprep.subr.mxu0 0.0
    %4315 = vmatpush1.msra.mxu0 0.0
    %4316 = vmatprep.subr.mxu0 0.0
    %4317 = vmatpush1.msra.mxu0 0.0
    %4318 = vmatprep.subr.mxu0 0.0
    %4319 = vmatpush1.msra.mxu0 0.0
    %4320 = vmatprep.subr.mxu0 0.0
    %4321 = vmatpush1.msra.mxu0 0.0
    %4322 = vmatprep.subr.mxu0 0.0
    %4323 = vmatpush1.msra.mxu0 0.0
    %4324 = vmatprep.subr.mxu0 0.0
    %4325 = vmatpush1.msra.mxu0 0.0
    %4326 = vmatprep.subr.mxu0 0.0
    %4327 = vmatpush1.msra.mxu0 0.0
    %4328 = vmatprep.subr.mxu0 0.0
    %4329 = vmatpush1.msra.mxu0 0.0
    %4330 = vmatprep.subr.mxu0 0.0
    %4331 = vmatpush1.msra.mxu0 0.0
    %4332 = vmatprep.mubr.f32.mxu0 0.0
    %4333 = vmatmul.mubr.f32.gmra.mrb[0].mxu0 %v4263
    %v4334 = vpop.f32.mrb[0].mxu0
    %v4335 = vadd.f32 0.0, %v4334
    %v4336 = vpop.f32.mrb[0].mxu0
    %4337 = vmatprep.mubr.f32.mxu0 0.0
    %4338 = vmatmul.mubr.f32.gmra.mrb[0].mxu0 %v4266
    %v4339 = vpop.f32.mrb[0].mxu0
    %v4340 = vadd.f32 0.0, %v4339
    %v4341 = vpop.f32.mrb[0].mxu0
    %4342 = vdwg.mxu0
    %v4343 = vadd.f32 %v3930, %v4335
    %v4344 = vadd.f32 %v3931, %v4340
    %v4345 = vadd.f32 %v2426, %v4343
    %v4346 = vadd.f32 %v2427, %v4344
    %v4347 = vld [vmem:[%s14] sm:$0x1]
    %v4348 = vld [vmem:[%s15] sm:$0x1]
    %v4349 = vsel %vm126, %v4345, 0.0
    %4350 = vadd.xlane.f32.xlu0 %v4349
    %v4351 = vpop.xlane.xlu0 %4350
    %v4352 = vsel %vm126, %v4346, 0.0
    %4353 = vadd.xlane.f32.xlu0 %v4352
    %v4354 = vpop.xlane.xlu0 %4353
    %v4355 = vmul.f32 %v4351, %v133
    %v4356 = vmul.f32 %v4354, %v133
    %v4357 = vsub.f32 %v4345, %v4355
    %v4358 = vsub.f32 %v4346, %v4356
    %v4359 = vmul.f32 %v4357, %v4357
    %v4360 = vmul.f32 %v4358, %v4358
    %v4361 = vsel %vm126, %v4359, 0.0
    %4362 = vadd.xlane.f32.xlu0 %v4361
    %v4363 = vpop.xlane.xlu0 %4362
    %v4364 = vsel %vm126, %v4360, 0.0
    %4365 = vadd.xlane.f32.xlu0 %v4364
    %v4366 = vpop.xlane.xlu0 %4365
    %v4367 = vmul.f32 %v4363, %v133
    %v4368 = vmul.f32 %v4366, %v133
    %v4369 = vadd.f32 %v4367, 1e-12
    %v4370 = vadd.f32 %v4368, 1e-12
    %v4371 = vrsqrt.pop %v4369
    %v4372 = vrsqrt.pop %v4370
    %v4373 = vmul.f32 %v4357, %v4371
    %v4374 = vmul.f32 %v4358, %v4372
    %v4376 = vlaneseq
    %v4377 = vshrl.u32 %v4376, 7
    %v4378 = vsub.s32 0, %v4377
    %v4379 = vrot.slane %v4347, %v4378
    %v4381 = vmul.f32 %v4373, %v4379
    %v4382 = vmul.f32 %v4374, %v4379
    %v4384 = vlaneseq
    %v4385 = vshrl.u32 %v4384, 7
    %v4386 = vsub.s32 0, %v4385
    %v4387 = vrot.slane %v4348, %v4386
    %v4389 = vadd.f32 %v4381, %v4387
    %v4390 = vadd.f32 %v4382, %v4387
    %v4391 = vld [vmem:[%s16] sm:$0xff]
    %v4392 = vld [vmem:[%s16 + $0x8] sm:$0xff]
    %v4393 = vld [vmem:[%s16 + $0x10] sm:$0xff]
    %v4394 = vld [vmem:[%s16 + $0x18] sm:$0xff]
    %v4395 = vld [vmem:[%s17] sm:$0x1]
    %v4397 = vlaneseq
    %v4398 = vshrl.u32 %v4397, 7
    %v4399 = vsub.s32 0, %v4398
    %v4400 = vrot.slane %v4395, %v4399
    %v4403 = vsel %vm126, %v4389, 0
    %v4406 = vsel %vm126, %v4390, 0
    %4408 = vmatprep.subr.mxu0 0.0
    %4409 = vmatpush1.msra.mxu0 %v4391
    %4410 = vmatprep.subr.mxu0 0.0
    %4411 = vmatpush1.msra.mxu0 %v4392
    %4412 = vmatprep.subr.mxu0 0.0
    %4413 = vmatpush1.msra.mxu0 %v4393
    %4414 = vmatprep.subr.mxu0 0.0
    %4415 = vmatpush1.msra.mxu0 %v4394
    %4416 = vmatprep.subr.mxu0 0.0
    %4417 = vmatpush1.msra.mxu0 0.0
    %4418 = vmatprep.subr.mxu0 0.0
    %4419 = vmatpush1.msra.mxu0 0.0
    %4420 = vmatprep.subr.mxu0 0.0
    %4421 = vmatpush1.msra.mxu0 0.0
    %4422 = vmatprep.subr.mxu0 0.0
    %4423 = vmatpush1.msra.mxu0 0.0
    %4424 = vmatprep.subr.mxu0 0.0
    %4425 = vmatpush1.msra.mxu0 0.0
    %4426 = vmatprep.subr.mxu0 0.0
    %4427 = vmatpush1.msra.mxu0 0.0
    %4428 = vmatprep.subr.mxu0 0.0
    %4429 = vmatpush1.msra.mxu0 0.0
    %4430 = vmatprep.subr.mxu0 0.0
    %4431 = vmatpush1.msra.mxu0 0.0
    %4432 = vmatprep.subr.mxu0 0.0
    %4433 = vmatpush1.msra.mxu0 0.0
    %4434 = vmatprep.subr.mxu0 0.0
    %4435 = vmatpush1.msra.mxu0 0.0
    %4436 = vmatprep.subr.mxu0 0.0
    %4437 = vmatpush1.msra.mxu0 0.0
    %4438 = vmatprep.subr.mxu0 0.0
    %4439 = vmatpush1.msra.mxu0 0.0
    %4440 = vmatprep.subr.mxu0 0.0
    %4441 = vmatpush1.msra.mxu0 0.0
    %4442 = vmatprep.subr.mxu0 0.0
    %4443 = vmatpush1.msra.mxu0 0.0
    %4444 = vmatprep.subr.mxu0 0.0
    %4445 = vmatpush1.msra.mxu0 0.0
    %4446 = vmatprep.subr.mxu0 0.0
    %4447 = vmatpush1.msra.mxu0 0.0
    %4448 = vmatprep.subr.mxu0 0.0
    %4449 = vmatpush1.msra.mxu0 0.0
    %4450 = vmatprep.subr.mxu0 0.0
    %4451 = vmatpush1.msra.mxu0 0.0
    %4452 = vmatprep.subr.mxu0 0.0
    %4453 = vmatpush1.msra.mxu0 0.0
    %4454 = vmatprep.subr.mxu0 0.0
    %4455 = vmatpush1.msra.mxu0 0.0
    %4456 = vmatprep.subr.mxu0 0.0
    %4457 = vmatpush1.msra.mxu0 0.0
    %4458 = vmatprep.subr.mxu0 0.0
    %4459 = vmatpush1.msra.mxu0 0.0
    %4460 = vmatprep.subr.mxu0 0.0
    %4461 = vmatpush1.msra.mxu0 0.0
    %4462 = vmatprep.subr.mxu0 0.0
    %4463 = vmatpush1.msra.mxu0 0.0
    %4464 = vmatprep.subr.mxu0 0.0
    %4465 = vmatpush1.msra.mxu0 0.0
    %4466 = vmatprep.subr.mxu0 0.0
    %4467 = vmatpush1.msra.mxu0 0.0
    %4468 = vmatprep.subr.mxu0 0.0
    %4469 = vmatpush1.msra.mxu0 0.0
    %4470 = vmatprep.subr.mxu0 0.0
    %4471 = vmatpush1.msra.mxu0 0.0
    %4472 = vmatprep.mubr.f32.mxu0 0.0
    %4473 = vmatmul.mubr.f32.gmra.mrb[0].mxu0 %v4403
    %v4474 = vpop.f32.mrb[0].mxu0
    %v4475 = vadd.f32 %v4400, %v4474
    %v4476 = vpop.f32.mrb[0].mxu0
    %4477 = vmatprep.mubr.f32.mxu0 0.0
    %4478 = vmatmul.mubr.f32.gmra.mrb[0].mxu0 %v4406
    %v4479 = vpop.f32.mrb[0].mxu0
    %v4480 = vadd.f32 %v4400, %v4479
    %v4481 = vpop.f32.mrb[0].mxu0
    %4482 = vdwg.mxu0
    %v4483 = vmul.f32 %v4475, 0.5
    %v4484 = vmul.f32 %v4480, 0.5
    %v4485 = vmul.f32 %v4475, 0.044715
    %v4486 = vmul.f32 %v4480, 0.044715
    %v4487 = vmul.f32 %v4485, %v4475
    %v4488 = vmul.f32 %v4486, %v4480
    %v4489 = vmul.f32 %v4487, %v4475
    %v4490 = vmul.f32 %v4488, %v4480
    %v4491 = vadd.f32 %v4475, %v4489
    %v4492 = vadd.f32 %v4480, %v4490
    %v4493 = vmul.f32 %v4491, 0.7978846
    %v4494 = vmul.f32 %v4492, 0.7978846
    %v4495 = vtanh.pop %v4493
    %v4496 = vtanh.pop %v4494
    %v4497 = vadd.f32 %v4495, 1.0
    %v4498 = vadd.f32 %v4496, 1.0
    %v4499 = vmul.f32 %v4483, %v4497
    %v4500 = vmul.f32 %v4484, %v4498
    %v4501 = vld [vmem:[%s18] sm:$0xff]
    %v4502 = vld [vmem:[%s18 + $0x8] sm:$0xff]
    %v4503 = vld [vmem:[%s18 + $0x10] sm:$0xff]
    %v4504 = vld [vmem:[%s18 + $0x18] sm:$0xff]
    %v4505 = vld [vmem:[%s18 + $0x20] sm:$0xff]
    %v4506 = vld [vmem:[%s18 + $0x28] sm:$0xff]
    %v4507 = vld [vmem:[%s18 + $0x30] sm:$0xff]
    %v4508 = vld [vmem:[%s18 + $0x38] sm:$0xff]
    %v4509 = vld [vmem:[%s18 + $0x40] sm:$0xff]
    %v4510 = vld [vmem:[%s18 + $0x48] sm:$0xff]
    %v4511 = vld [vmem:[%s18 + $0x50] sm:$0xff]
    %v4512 = vld [vmem:[%s18 + $0x58] sm:$0xff]
    %v4513 = vld [vmem:[%s18 + $0x60] sm:$0xff]
    %v4514 = vld [vmem:[%s18 + $0x68] sm:$0xff]
    %v4515 = vld [vmem:[%s18 + $0x70] sm:$0xff]
    %v4516 = vld [vmem:[%s18 + $0x78] sm:$0xff]
    %v4517 = vld [vmem:[%s19] sm:$0x1]
    %v4519 = vlaneseq
    %v4520 = vshrl.u32 %v4519, 7
    %v4521 = vsub.s32 0, %v4520
    %v4522 = vrot.slane %v4517, %v4521
    %4524 = vmatprep.subr.mxu0 0.0
    %4525 = vmatpush1.msra.mxu0 %v4501
    %4526 = vmatprep.subr.mxu0 0.0
    %4527 = vmatpush1.msra.mxu0 %v4502
    %4528 = vmatprep.subr.mxu0 0.0
    %4529 = vmatpush1.msra.mxu0 %v4503
    %4530 = vmatprep.subr.mxu0 0.0
    %4531 = vmatpush1.msra.mxu0 %v4504
    %4532 = vmatprep.subr.mxu0 0.0
    %4533 = vmatpush1.msra.mxu0 %v4505
    %4534 = vmatprep.subr.mxu0 0.0
    %4535 = vmatpush1.msra.mxu0 %v4506
    %4536 = vmatprep.subr.mxu0 0.0
    %4537 = vmatpush1.msra.mxu0 %v4507
    %4538 = vmatprep.subr.mxu0 0.0
    %4539 = vmatpush1.msra.mxu0 %v4508
    %4540 = vmatprep.subr.mxu0 0.0
    %4541 = vmatpush1.msra.mxu0 %v4509
    %4542 = vmatprep.subr.mxu0 0.0
    %4543 = vmatpush1.msra.mxu0 %v4510
    %4544 = vmatprep.subr.mxu0 0.0
    %4545 = vmatpush1.msra.mxu0 %v4511
    %4546 = vmatprep.subr.mxu0 0.0
    %4547 = vmatpush1.msra.mxu0 %v4512
    %4548 = vmatprep.subr.mxu0 0.0
    %4549 = vmatpush1.msra.mxu0 %v4513
    %4550 = vmatprep.subr.mxu0 0.0
    %4551 = vmatpush1.msra.mxu0 %v4514
    %4552 = vmatprep.subr.mxu0 0.0
    %4553 = vmatpush1.msra.mxu0 %v4515
    %4554 = vmatprep.subr.mxu0 0.0
    %4555 = vmatpush1.msra.mxu0 %v4516
    %4556 = vmatprep.subr.mxu0 0.0
    %4557 = vmatpush1.msra.mxu0 0.0
    %4558 = vmatprep.subr.mxu0 0.0
    %4559 = vmatpush1.msra.mxu0 0.0
    %4560 = vmatprep.subr.mxu0 0.0
    %4561 = vmatpush1.msra.mxu0 0.0
    %4562 = vmatprep.subr.mxu0 0.0
    %4563 = vmatpush1.msra.mxu0 0.0
    %4564 = vmatprep.subr.mxu0 0.0
    %4565 = vmatpush1.msra.mxu0 0.0
    %4566 = vmatprep.subr.mxu0 0.0
    %4567 = vmatpush1.msra.mxu0 0.0
    %4568 = vmatprep.subr.mxu0 0.0
    %4569 = vmatpush1.msra.mxu0 0.0
    %4570 = vmatprep.subr.mxu0 0.0
    %4571 = vmatpush1.msra.mxu0 0.0
    %4572 = vmatprep.subr.mxu0 0.0
    %4573 = vmatpush1.msra.mxu0 0.0
    %4574 = vmatprep.subr.mxu0 0.0
    %4575 = vmatpush1.msra.mxu0 0.0
    %4576 = vmatprep.subr.mxu0 0.0
    %4577 = vmatpush1.msra.mxu0 0.0
    %4578 = vmatprep.subr.mxu0 0.0
    %4579 = vmatpush1.msra.mxu0 0.0
    %4580 = vmatprep.subr.mxu0 0.0
    %4581 = vmatpush1.msra.mxu0 0.0
    %4582 = vmatprep.subr.mxu0 0.0
    %4583 = vmatpush1.msra.mxu0 0.0
    %4584 = vmatprep.subr.mxu0 0.0
    %4585 = vmatpush1.msra.mxu0 0.0
    %4586 = vmatprep.subr.mxu0 0.0
    %4587 = vmatpush1.msra.mxu0 0.0
    %4588 = vmatprep.mubr.f32.mxu0 0.0
    %4589 = vmatmul.mubr.f32.gmra.mrb[0].mxu0 %v4499
    %v4590 = vpop.f32.mrb[0].mxu0
    %v4591 = vadd.f32 %v4522, %v4590
    %v4592 = vpop.f32.mrb[0].mxu0
    %4593 = vmatprep.mubr.f32.mxu0 0.0
    %4594 = vmatmul.mubr.f32.gmra.mrb[0].mxu0 %v4500
    %v4595 = vpop.f32.mrb[0].mxu0
    %v4596 = vadd.f32 %v4522, %v4595
    %v4597 = vpop.f32.mrb[0].mxu0
    %4598 = vdwg.mxu0
    %v4599 = vadd.f32 %v4389, %v4591
    %v4600 = vadd.f32 %v4390, %v4596
    %v4601 = vld [vmem:[%s20] sm:$0x1]
    %v4602 = vld [vmem:[%s21] sm:$0x1]
    %v4603 = vsel %vm126, %v4599, 0.0
    %4604 = vadd.xlane.f32.xlu0 %v4603
    %v4605 = vpop.xlane.xlu0 %4604
    %v4606 = vsel %vm126, %v4600, 0.0
    %4607 = vadd.xlane.f32.xlu0 %v4606
    %v4608 = vpop.xlane.xlu0 %4607
    %v4609 = vmul.f32 %v4605, %v133
    %v4610 = vmul.f32 %v4608, %v133
    %v4611 = vsub.f32 %v4599, %v4609
    %v4612 = vsub.f32 %v4600, %v4610
    %v4613 = vmul.f32 %v4611, %v4611
    %v4614 = vmul.f32 %v4612, %v4612
    %v4615 = vsel %vm126, %v4613, 0.0
    %4616 = vadd.xlane.f32.xlu0 %v4615
    %v4617 = vpop.xlane.xlu0 %4616
    %v4618 = vsel %vm126, %v4614, 0.0
    %4619 = vadd.xlane.f32.xlu0 %v4618
    %v4620 = vpop.xlane.xlu0 %4619
    %v4621 = vmul.f32 %v4617, %v133
    %v4622 = vmul.f32 %v4620, %v133
    %v4623 = vadd.f32 %v4621, 1e-12
    %v4624 = vadd.f32 %v4622, 1e-12
    %v4625 = vrsqrt.pop %v4623
    %v4626 = vrsqrt.pop %v4624
    %v4627 = vmul.f32 %v4611, %v4625
    %v4628 = vmul.f32 %v4612, %v4626
    %v4630 = vlaneseq
    %v4631 = vshrl.u32 %v4630, 7
    %v4632 = vsub.s32 0, %v4631
    %v4633 = vrot.slane %v4601, %v4632
    %v4635 = vmul.f32 %v4627, %v4633
    %v4636 = vmul.f32 %v4628, %v4633
    %v4638 = vlaneseq
    %v4639 = vshrl.u32 %v4638, 7
    %v4640 = vsub.s32 0, %v4639
    %v4641 = vrot.slane %v4602, %v4640
    %v4643 = vadd.f32 %v4635, %v4641
    %v4644 = vadd.f32 %v4636, %v4641
    %v4645 = vld [vmem:[%s22] sm:$0xff]
    %v4646 = vld [vmem:[%s22 + $0x8] sm:$0xff]
    %v4647 = vld [vmem:[%s22 + $0x10] sm:$0xff]
    %v4648 = vld [vmem:[%s22 + $0x18] sm:$0xff]
    %v4649 = vld [vmem:[%s23] sm:$0x1]
    %v4651 = vlaneseq
    %v4652 = vshrl.u32 %v4651, 7
    %v4653 = vsub.s32 0, %v4652
    %v4654 = vrot.slane %v4649, %v4653
    %v4657 = vsel %vm126, %v4643, 0
    %v4660 = vsel %vm126, %v4644, 0
    %4662 = vmatprep.subr.mxu0 0.0
    %4663 = vmatpush1.msra.mxu0 %v4645
    %4664 = vmatprep.subr.mxu0 0.0
    %4665 = vmatpush1.msra.mxu0 %v4646
    %4666 = vmatprep.subr.mxu0 0.0
    %4667 = vmatpush1.msra.mxu0 %v4647
    %4668 = vmatprep.subr.mxu0 0.0
    %4669 = vmatpush1.msra.mxu0 %v4648
    %4670 = vmatprep.subr.mxu0 0.0
    %4671 = vmatpush1.msra.mxu0 0.0
    %4672 = vmatprep.subr.mxu0 0.0
    %4673 = vmatpush1.msra.mxu0 0.0
    %4674 = vmatprep.subr.mxu0 0.0
    %4675 = vmatpush1.msra.mxu0 0.0
    %4676 = vmatprep.subr.mxu0 0.0
    %4677 = vmatpush1.msra.mxu0 0.0
    %4678 = vmatprep.subr.mxu0 0.0
    %4679 = vmatpush1.msra.mxu0 0.0
    %4680 = vmatprep.subr.mxu0 0.0
    %4681 = vmatpush1.msra.mxu0 0.0
    %4682 = vmatprep.subr.mxu0 0.0
    %4683 = vmatpush1.msra.mxu0 0.0
    %4684 = vmatprep.subr.mxu0 0.0
    %4685 = vmatpush1.msra.mxu0 0.0
    %4686 = vmatprep.subr.mxu0 0.0
    %4687 = vmatpush1.msra.mxu0 0.0
    %4688 = vmatprep.subr.mxu0 0.0
    %4689 = vmatpush1.msra.mxu0 0.0
    %4690 = vmatprep.subr.mxu0 0.0
    %4691 = vmatpush1.msra.mxu0 0.0
    %4692 = vmatprep.subr.mxu0 0.0
    %4693 = vmatpush1.msra.mxu0 0.0
    %4694 = vmatprep.subr.mxu0 0.0
    %4695 = vmatpush1.msra.mxu0 0.0
    %4696 = vmatprep.subr.mxu0 0.0
    %4697 = vmatpush1.msra.mxu0 0.0
    %4698 = vmatprep.subr.mxu0 0.0
    %4699 = vmatpush1.msra.mxu0 0.0
    %4700 = vmatprep.subr.mxu0 0.0
    %4701 = vmatpush1.msra.mxu0 0.0
    %4702 = vmatprep.subr.mxu0 0.0
    %4703 = vmatpush1.msra.mxu0 0.0
    %4704 = vmatprep.subr.mxu0 0.0
    %4705 = vmatpush1.msra.mxu0 0.0
    %4706 = vmatprep.subr.mxu0 0.0
    %4707 = vmatpush1.msra.mxu0 0.0
    %4708 = vmatprep.subr.mxu0 0.0
    %4709 = vmatpush1.msra.mxu0 0.0
    %4710 = vmatprep.subr.mxu0 0.0
    %4711 = vmatpush1.msra.mxu0 0.0
    %4712 = vmatprep.subr.mxu0 0.0
    %4713 = vmatpush1.msra.mxu0 0.0
    %4714 = vmatprep.subr.mxu0 0.0
    %4715 = vmatpush1.msra.mxu0 0.0
    %4716 = vmatprep.subr.mxu0 0.0
    %4717 = vmatpush1.msra.mxu0 0.0
    %4718 = vmatprep.subr.mxu0 0.0
    %4719 = vmatpush1.msra.mxu0 0.0
    %4720 = vmatprep.subr.mxu0 0.0
    %4721 = vmatpush1.msra.mxu0 0.0
    %4722 = vmatprep.subr.mxu0 0.0
    %4723 = vmatpush1.msra.mxu0 0.0
    %4724 = vmatprep.subr.mxu0 0.0
    %4725 = vmatpush1.msra.mxu0 0.0
    %4726 = vmatprep.mubr.f32.mxu0 0.0
    %4727 = vmatmul.mubr.f32.gmra.mrb[0].mxu0 %v4657
    %v4728 = vpop.f32.mrb[0].mxu0
    %v4729 = vadd.f32 %v4654, %v4728
    %v4730 = vpop.f32.mrb[0].mxu0
    %4731 = vmatprep.mubr.f32.mxu0 0.0
    %4732 = vmatmul.mubr.f32.gmra.mrb[0].mxu0 %v4660
    %v4733 = vpop.f32.mrb[0].mxu0
    %v4734 = vadd.f32 %v4654, %v4733
    %v4735 = vpop.f32.mrb[0].mxu0
    %4736 = vdwg.mxu0
    %vm4737 = vcmask 113664
    %v4738 = vsel %vm4737, %v4729, -inf
    %4739 = vmax.xlane.f32.xlu0 %v4738
    %v4740 = vpop.xlane.xlu0 %4739
    %v4741 = vsel %vm4737, %v4734, -inf
    %4742 = vmax.xlane.f32.xlu0 %v4741
    %v4743 = vpop.xlane.xlu0 %4742
    %v4744 = vsub.f32 %v4729, %v4740
    %v4745 = vsub.f32 %v4734, %v4743
    %v4746 = vmul.f32 %v4744, 1.442695
    %v4747 = vpow.pop %v4746
    %v4748 = vmul.f32 %v4745, 1.442695
    %v4749 = vpow.pop %v4748
    %v4750 = vsel %vm4737, %v4747, 0.0
    %4751 = vadd.xlane.f32.xlu0 %v4750
    %v4752 = vpop.xlane.xlu0 %4751
    %v4753 = vsel %vm4737, %v4749, 0.0
    %4754 = vadd.xlane.f32.xlu0 %v4753
    %v4755 = vpop.xlane.xlu0 %4754
    %v4756 = vlog2.pop %v4752
    %v4757 = vmul.f32 %v4756, 0.6931472
    %v4758 = vlog2.pop %v4755
    %v4759 = vmul.f32 %v4758, 0.6931472
    %v4760 = vsub.f32 %v4744, %v4757
    %v4761 = vsub.f32 %v4745, %v4759
    %v4762 = vmul.f32 %v4760, 1.442695
    %v4763 = vpow.pop %v4762
    %v4764 = vmul.f32 %v4761, 1.442695
    %v4765 = vpow.pop %v4764
    %4766 = vst.msk [vmem:[#allocation9] sm:$0xff] %vm4737, %v4763
    %4767 = vst.msk [vmem:[#allocation9 + $0x8] sm:$0xff] %vm4737, %v4765
    %v4768 = vld [vmem:[%s3] sm:$0xff]
    %v4769 = vld [vmem:[%s3 + $0x8] sm:$0xff]
    %v4770 = vlaneseq
    %v4771 = vand.u32 %v4770, 127
    %4772 = vset.pattern.permute.xlu0 0
    %4773 = vperm.xlu0 %4772, %v4768
    %v4774 = vpop.permute.xlu0 %4773
    %4775 = vset.pattern.permute.xlu0 0
    %4776 = vperm.xlu0 %4775, %v4769
    %v4777 = vpop.permute.xlu0 %4776
    %vm4778 = vcmp.eq.s32.totalorder %v4774, %v4771
    %vm4779 = vcmp.eq.s32.totalorder %v4777, %v4771
    %v4780 = vsel %vm4778, %v4760, 0.0
    %v4781 = vsel %vm4779, %v4761, 0.0
    %v4782 = vsel %vm4737, %v4780, 0.0
    %4783 = vadd.xlane.f32.xlu0 %v4782
    %v4784 = vpop.xlane.xlu0 %4783
    %v4785 = vsel %vm4737, %v4781, 0.0
    %4786 = vadd.xlane.f32.xlu0 %v4785
    %v4787 = vpop.xlane.xlu0 %4786
    %v4788 = vsub.f32 0.0, %v4784
    %v4789 = vsub.f32 0.0, %v4787
    %v4790 = vld [vmem:[%s2] sm:$0xff]
    %v4791 = vld [vmem:[%s2 + $0x8] sm:$0xff]
    %v4792 = vmul.f32 %v4788, %v4790
    %v4793 = vmul.f32 %v4789, %v4791
    %vm4794 = vcmask 7168
    %v4795 = vsel %vm4794, %v4792, 0.0
    %v4796 = vsel %vm4794, %v4793, 0.0
    %v4797 = vadd.f32 %v4795, %v4796
    %4798 = vadd.xlane.f32.xlu0 %v4797
    %v4799 = vpop.xlane.xlu0 %4798
    %v4800 = vrot.slane %v4799, 4
    %v4801 = vadd.f32 %v4799, %v4800
    %v4802 = vrot.slane %v4801, 2
    %v4803 = vadd.f32 %v4801, %v4802
    %v4804 = vrot.slane %v4803, 1
    %v4805 = vadd.f32 %v4803, %v4804
    %s4806 = vtos %v4805
    %v4807 = vsel %vm4794, %v4790, 0.0
    %v4808 = vsel %vm4794, %v4791, 0.0
    %v4809 = vadd.f32 %v4807, %v4808
    %4810 = vadd.xlane.f32.xlu0 %v4809
    %v4811 = vpop.xlane.xlu0 %4810
    %v4812 = vrot.slane %v4811, 4
    %v4813 = vadd.f32 %v4811, %v4812
    %v4814 = vrot.slane %v4813, 2
    %v4815 = vadd.f32 %v4813, %v4814
    %v4816 = vrot.slane %v4815, 1
    %v4817 = vadd.f32 %v4815, %v4816
    %s4818 = vtos %v4817
    %s4819 = smax.f32 %s4818, 1.0
    %v4820 = vstv %s4819
    %v4821 = vrcp.pop %v4820
    %s4822 = vtos %v4821
    %s4823 = smul.f32 %s4806, %s4822
    %s4824 = scalar_lea.smem [#allocation10], 0
    %4825 = sst [smem:[%s4824]] %s4823
    // Predicated region
    $region110: #{forward.1} parent=1 // pred_check
      _
    $region111: #{forward.1} parent=1 // pred_check_branch
      %4827 = sbr.rel (0) target = $region113
    $region112: #{forward.1} parent=1 // pred_region
      %s4829 = ssub.s32 256, 256
      %4830 = vsyncadd [#allocation4], %s4829
      %s4831 = sshll.u32 [#allocation9], 4
      %s4832 = int_to_ptr.vmem [resolvable:$true] %s4831
      %4837 = dma.vmem_to_hbm [thread:$0]  %s4832, 256, %s24, [#allocation4], 128, 128, 8
    $region113: #{forward.1} parent=1 // pred_fallthru
      _
    // Predicated region
    $region114: #{forward.1} parent=1 // pred_check
      _
    $region115: #{forward.1} parent=1 // pred_check_branch
      %4839 = sbr.rel (0) target = $region117
    $region116: #{forward.1} parent=1 // pred_region
      %s4841 = ssub.s32 16, 16
      %4842 = vsyncadd [#allocation5], %s4841
      %4845 = dma.smem_to_hbm [#allocation10], 16, %s25, [#allocation5]
    $region117: #{forward.1} parent=1 // pred_fallthru
      _
    // Predicated region
    $region118: #{forward.1} parent=1 // pred_check
      _
    $region119: #{forward.1} parent=1 // pred_check_branch
      %4847 = sbr.rel (0) target = $region121
    $region120: #{forward.1} parent=1 // pred_region
      %4848 = dma.done [#allocation4], 256
    $region121: #{forward.1} parent=1 // pred_fallthru
      _
    // Predicated region
    $region122: #{forward.1} parent=1 // pred_check
      _
    $region123: #{forward.1} parent=1 // pred_check_branch
      %4850 = sbr.rel (0) target = $region125
    $region124: #{forward.1} parent=1 // pred_region
      %4851 = dma.done [#allocation5], 16
    $region125: #{forward.1} parent=1 // pred_fallthru
      _
    %4852 = sfence
    %4853 = vsyncpa [#allocation3], 1
    %4854 = vsyncpa [#allocation7], 1
    %4855 = vsyncpa [#allocation4], 1
    %4856 = vsyncpa [#allocation5], 1

</llo_original>
